<compile_context>
chip_gen: v6e
topology: v6e:2x2x1
jax: 0.10.0
libtpu: 0.0.40
codegen_flags: <defaults>
</compile_context>

<pallas_src>
import functools

import jax
import jax.numpy as jnp
from jax import lax
from jax.experimental import pallas as pl
from jax.experimental.pallas import tpu as pltpu

_LANE = 128


def _round_up(x, m):
    return (x + m - 1) // m * m


def _zero_halo(ref):
    """Zero only the 1-pixel halo border of a (Hp, Wp, C) VMEM scratch."""
    hp, wp, c = ref.shape
    zrow = jnp.zeros((1, wp, c), ref.dtype)
    ref[0:1, :, :] = zrow
    ref[hp - 1:hp, :, :] = zrow
    zcol = jnp.zeros((hp, 1, c), ref.dtype)
    ref[:, 0:1, :] = zcol
    ref[:, wp - 1:wp, :] = zcol


def _im2col_bf16(src_ref, ho, wo, stride):
    """Build (ho*wo, 9*C) bf16 im2col patches from a zero-padded (Hp, Wp, C) scratch.

    C is a multiple of 128, so the 9-way minor-axis concat is lane-aligned.
    """
    c = src_ref.shape[-1]
    if stride == 1:
        src = src_ref[...].astype(jnp.bfloat16)
        wins = [src[kh:kh + ho, kw:kw + wo, :]
                for kh in range(3) for kw in range(3)]
    else:
        # Strided tap windows read straight from the padded VMEM scratch.
        wins = [src_ref[pl.ds(kh, ho, stride), pl.ds(kw, wo, stride), :]
                .astype(jnp.bfloat16)
                for kh in range(3) for kw in range(3)]
    patches = jnp.concatenate(wins, axis=-1)            # (ho, wo, 9*C)
    return patches.reshape(ho * wo, 9 * c)               # major-dim merge only


def _basic_block_kernel(x_ref, w1_ref, b1_ref, w2_ref, b2_ref, wsc_ref,
                        o_ref, xpad_ref, midpad_ref, *, stride):
    H, W, cpad = x_ref.shape[1], x_ref.shape[2], x_ref.shape[3]
    ho = midpad_ref.shape[0] - 2
    wo = midpad_ref.shape[1] - 2
    ppad = midpad_ref.shape[2]

    # Halo-only zeroing (interiors are fully overwritten below).  Done every
    # step: scratch is per-TensorCore under "parallel" batch sharding, so a
    # program_id==0 guard would be unsafe.
    _zero_halo(xpad_ref)
    _zero_halo(midpad_ref)

    xpad_ref[1:H + 1, 1:W + 1, :] = x_ref[0]

    # conv1 (+ folded bn1 scale) -> bias -> ReLU : one bf16 MXU matmul.
    p1 = _im2col_bf16(xpad_ref, ho, wo, stride)          # (ho*wo, 9*cpad) bf16
    h1 = jnp.dot(p1, w1_ref[...], preferred_element_type=jnp.float32)
    h1 = jnp.maximum(h1 + b1_ref[...], 0.0)              # (ho*wo, ppad) f32
    midpad_ref[1:ho + 1, 1:wo + 1, :] = h1.reshape(ho, wo, ppad)

    # conv2 (+ folded bn2 scale) : one bf16 MXU matmul from the VMEM-resident
    # intermediate (no HBM round trip between the two convs).
    p2 = _im2col_bf16(midpad_ref, ho, wo, 1)             # (ho*wo, 9*ppad) bf16
    y = jnp.dot(p2, w2_ref[...], preferred_element_type=jnp.float32)

    # Shortcut fused in: folded 1x1+BN projection, or identity via eye weight.
    if stride == 1:
        xs = xpad_ref[1:ho + 1, 1:wo + 1, :]
    else:
        xs = xpad_ref[pl.ds(1, ho, stride), pl.ds(1, wo, stride), :]
    xs = xs.astype(jnp.bfloat16).reshape(ho * wo, cpad)
    y = y + jnp.dot(xs, wsc_ref[...], preferred_element_type=jnp.float32)

    # bn2 bias (+ shortcut-BN bias when projecting), final ReLU, lane-dense store.
    y = jnp.maximum(y + b2_ref[...], 0.0)
    o_ref[...] = y.reshape(1, ho, wo, ppad).astype(o_ref.dtype)


def _fold_bn(bn, eps=1e-5):
    scale = bn["gamma"] * lax.rsqrt(bn["var"] + eps)
    bias = bn["beta"] - bn["mean"] * scale
    return scale, bias


def basic_block_forward(x, params, *, stride=1):
    """Fused Pallas BasicBlock forward.  x: NHWC (N, H, W, in_planes) -> NHWC."""
    N, H, W, in_planes = x.shape
    planes = params["w1"].shape[-1]
    ho = (H - 1) // stride + 1
    wo = (W - 1) // stride + 1
    has_projection = (stride != 1) or (in_planes != planes)

    cpad = _round_up(in_planes, _LANE)
    ppad = _round_up(planes, _LANE)

    # Fold BN into conv weights; pad channels to lane multiples; cast to bf16.
    s1, b1 = _fold_bn(params["bn1"])
    s2, b2 = _fold_bn(params["bn2"])
    w1f = jnp.pad(params["w1"] * s1,
                  ((0, 0), (0, 0), (0, cpad - in_planes), (0, ppad - planes)))
    w1f = w1f.reshape(9 * cpad, ppad).astype(jnp.bfloat16)
    w2f = jnp.pad(params["w2"] * s2,
                  ((0, 0), (0, 0), (0, ppad - planes), (0, ppad - planes)))
    w2f = w2f.reshape(9 * ppad, ppad).astype(jnp.bfloat16)
    b1p = jnp.pad(b1, (0, ppad - planes)).reshape(1, ppad).astype(jnp.float32)

    if has_projection:
        ssc, bsc = _fold_bn(params["bn_sc"])
        wsc = params["w_sc"][0, 0] * ssc                 # (in_planes, planes)
        b2tot = b2 + bsc
    else:
        wsc = jnp.eye(in_planes, dtype=jnp.float32)      # identity shortcut
        b2tot = b2
    wscf = jnp.pad(wsc, ((0, cpad - in_planes), (0, ppad - planes))
                   ).astype(jnp.bfloat16)
    b2p = jnp.pad(b2tot, (0, ppad - planes)).reshape(1, ppad).astype(jnp.float32)

    # Lane-dense input block: pad channels to cpad (no-op when C % 128 == 0).
    xp = jnp.pad(x, ((0, 0), (0, 0), (0, 0), (0, cpad - in_planes)))

    kernel = functools.partial(_basic_block_kernel, stride=stride)

    out = pl.pallas_call(
        kernel,
        out_shape=jax.ShapeDtypeStruct((N, ho, wo, ppad), x.dtype),
        grid=(N,),
        in_specs=[
            pl.BlockSpec((1, H, W, cpad), lambda n: (n, 0, 0, 0)),
            pl.BlockSpec((9 * cpad, ppad), lambda n: (0, 0)),
            pl.BlockSpec((1, ppad), lambda n: (0, 0)),
            pl.BlockSpec((9 * ppad, ppad), lambda n: (0, 0)),
            pl.BlockSpec((1, ppad), lambda n: (0, 0)),
            pl.BlockSpec((cpad, ppad), lambda n: (0, 0)),
        ],
        out_specs=pl.BlockSpec((1, ho, wo, ppad), lambda n: (n, 0, 0, 0)),
        scratch_shapes=[
            pltpu.VMEM((H + 2, W + 2, cpad), jnp.float32),    # padded input
            pltpu.VMEM((ho + 2, wo + 2, ppad), jnp.float32),  # padded conv1 out
        ],
        compiler_params=pltpu.CompilerParams(
            dimension_semantics=("parallel",)),
    )(xp, w1f, b1p, w2f, b2p, wscf)

    return out[..., :planes]      # slice off Cout padding (layout plumbing)


# ---------------------------------------------------------------------------
# Pure-JAX reference (correctness check only).
# ---------------------------------------------------------------------------
def _ref_bn(y, b, eps=1e-5):
    return (y - b["mean"]) * (b["gamma"] / jnp.sqrt(b["var"] + eps)) + b["beta"]


def ref_basic_block(x, params, *, stride=1):
    dn = ("NHWC", "HWIO", "NHWC")
    hp = lax.Precision.HIGHEST
    out = lax.conv_general_dilated(x, params["w1"], (stride, stride),
                                   [(1, 1), (1, 1)], dimension_numbers=dn,
                                   precision=hp)
    out = jax.nn.relu(_ref_bn(out, params["bn1"]))
    out = lax.conv_general_dilated(out, params["w2"], (1, 1),
                                   [(1, 1), (1, 1)], dimension_numbers=dn,
                                   precision=hp)
    out = _ref_bn(out, params["bn2"])
    if stride != 1 or x.shape[-1] != params["w1"].shape[-1]:
        sc = lax.conv_general_dilated(x, params["w_sc"], (stride, stride),
                                      [(0, 0), (0, 0)], dimension_numbers=dn,
                                      precision=hp)
        sc = _ref_bn(sc, params["bn_sc"])
    else:
        sc = x
    return jax.nn.relu(out + sc)


def _check(out, ref, name):
    err = float(jnp.max(jnp.abs(out - ref)))
    assert out.shape == ref.shape, (name, out.shape, ref.shape)
    # bf16 MXU operands vs HIGHEST-precision f32 reference -> widened tolerance
    # (expected numeric shift per review, not a bug).
    assert jnp.allclose(out, ref, rtol=2e-2, atol=3e-2), (name, err)


if __name__ == "__main__":
    # Module config: BasicBlock(in_planes=4, planes=8) -> input NCHW [2,4,16,16]
    # corresponds to NHWC [2,16,16,4] used here.
    N, H, W = 2, 16, 16
    key = jax.random.PRNGKey(0)
    ks = jax.random.split(key, 24)

    def bn_params(k, c):
        k1, k2, k3, k4 = jax.random.split(k, 4)
        return dict(
            gamma=1.0 + 0.1 * jax.random.normal(k1, (c,), jnp.float32),
            beta=0.1 * jax.random.normal(k2, (c,), jnp.float32),
            mean=0.1 * jax.random.normal(k3, (c,), jnp.float32),
            var=0.5 + jnp.abs(jax.random.normal(k4, (c,), jnp.float32)),
        )

    # --- config A: projection shortcut (in_planes=4 != planes=8, stride=1) ---
    in_planes, planes = 4, 8
    x = jax.random.normal(ks[0], (N, H, W, in_planes), jnp.float32)
    params = {
        "w1": 0.1 * jax.random.normal(ks[1], (3, 3, in_planes, planes), jnp.float32),
        "w2": 0.1 * jax.random.normal(ks[2], (3, 3, planes, planes), jnp.float32),
        "w_sc": 0.1 * jax.random.normal(ks[3], (1, 1, in_planes, planes), jnp.float32),
        "bn1": bn_params(ks[4], planes),
        "bn2": bn_params(ks[5], planes),
        "bn_sc": bn_params(ks[6], planes),
    }
    out = jax.block_until_ready(basic_block_forward(x, params, stride=1))
    ref = jax.block_until_ready(ref_basic_block(x, params, stride=1))
    _check(out, ref, "projection/stride1")

    # --- config B: identity shortcut (in_planes == planes == 8, stride=1) ---
    c2 = 8
    x2 = jax.random.normal(ks[7], (N, H, W, c2), jnp.float32)
    params2 = {
        "w1": 0.1 * jax.random.normal(ks[8], (3, 3, c2, c2), jnp.float32),
        "w2": 0.1 * jax.random.normal(ks[9], (3, 3, c2, c2), jnp.float32),
        "bn1": bn_params(ks[10], c2),
        "bn2": bn_params(ks[11], c2),
    }
    out2 = jax.block_until_ready(basic_block_forward(x2, params2, stride=1))
    ref2 = jax.block_until_ready(ref_basic_block(x2, params2, stride=1))
    _check(out2, ref2, "identity/stride1")

    # --- config C: strided projection shortcut (stride=2) ---
    out3 = jax.block_until_ready(basic_block_forward(x, params, stride=2))
    ref3 = jax.block_until_ready(ref_basic_block(x, params, stride=2))
    assert out3.shape == (N, H // 2, W // 2, planes)
    _check(out3, ref3, "projection/stride2")

    print("KERNEL_OK")
</pallas_src>

<mosaic_0001>
module attributes {stable_mosaic.version = 11 : i64} {
  func.func @_basic_block_kernel(%arg0: i32, %arg1: memref<1x16x16x128xf32, #tpu.memory_space<vmem>>, %arg2: memref<1152x128xbf16, #tpu.memory_space<vmem>>, %arg3: memref<1x128xf32, #tpu.memory_space<vmem>>, %arg4: memref<1152x128xbf16, #tpu.memory_space<vmem>>, %arg5: memref<1x128xf32, #tpu.memory_space<vmem>>, %arg6: memref<128x128xbf16, #tpu.memory_space<vmem>>, %arg7: memref<1x16x16x128xf32, #tpu.memory_space<vmem>>, %arg8: memref<18x18x128xf32, #tpu.memory_space<vmem>>, %arg9: memref<18x18x128xf32, #tpu.memory_space<vmem>>) attributes {dimension_semantics = [#tpu.dimension_semantics<parallel>], iteration_bounds = array<i64: 2>, scalar_prefetch = 0 : i64, scratch_operands = 2 : i64, tpu.core_type = #tpu.core_type<tc>, window_params = [{transform_indices = @transform_0, window_bounds = array<i64: 1, 16, 16, 128>}, {pipeline_mode = #tpu.pipeline_mode<synchronous>, transform_indices = @transform_1, window_bounds = array<i64: 1152, 128>}, {pipeline_mode = #tpu.pipeline_mode<synchronous>, transform_indices = @transform_2, window_bounds = array<i64: 1, 128>}, {pipeline_mode = #tpu.pipeline_mode<synchronous>, transform_indices = @transform_3, window_bounds = array<i64: 1152, 128>}, {pipeline_mode = #tpu.pipeline_mode<synchronous>, transform_indices = @transform_4, window_bounds = array<i64: 1, 128>}, {pipeline_mode = #tpu.pipeline_mode<synchronous>, transform_indices = @transform_5, window_bounds = array<i64: 128, 128>}, {transform_indices = @transform_6, window_bounds = array<i64: 1, 16, 16, 128>}]} {
    %cst = arith.constant 0.000000e+00 : f32
    %0 = vector.broadcast %cst : f32 to vector<1x18x128xf32>
    %c0 = arith.constant 0 : index
    %c0_0 = arith.constant 0 : index
    %c0_1 = arith.constant 0 : index
    %1 = vector.load %arg8[%c0, %c0_0, %c0_1] : memref<18x18x128xf32, #tpu.memory_space<vmem>>, vector<1x18x128xf32>
    tpu.vector_store %arg8[%c0, %c0_0, %c0_1], %0 {strides = array<i32>} : memref<18x18x128xf32, #tpu.memory_space<vmem>>, vector<1x18x128xf32>,
    %c17 = arith.constant 17 : index
    %c0_2 = arith.constant 0 : index
    %c0_3 = arith.constant 0 : index
    %2 = vector.load %arg8[%c17, %c0_2, %c0_3] : memref<18x18x128xf32, #tpu.memory_space<vmem>>, vector<1x18x128xf32>
    tpu.vector_store %arg8[%c17, %c0_2, %c0_3], %0 {strides = array<i32>} : memref<18x18x128xf32, #tpu.memory_space<vmem>>, vector<1x18x128xf32>,
    %cst_4 = arith.constant 0.000000e+00 : f32
    %3 = vector.broadcast %cst_4 : f32 to vector<18x1x128xf32>
    %c0_5 = arith.constant 0 : index
    %c0_6 = arith.constant 0 : index
    %c0_7 = arith.constant 0 : index
    %4 = vector.load %arg8[%c0_5, %c0_6, %c0_7] : memref<18x18x128xf32, #tpu.memory_space<vmem>>, vector<18x1x128xf32>
    tpu.vector_store %arg8[%c0_5, %c0_6, %c0_7], %3 {strides = array<i32>} : memref<18x18x128xf32, #tpu.memory_space<vmem>>, vector<18x1x128xf32>,
    %c0_8 = arith.constant 0 : index
    %c17_9 = arith.constant 17 : index
    %c0_10 = arith.constant 0 : index
    %5 = vector.load %arg8[%c0_8, %c17_9, %c0_10] : memref<18x18x128xf32, #tpu.memory_space<vmem>>, vector<18x1x128xf32>
    tpu.vector_store %arg8[%c0_8, %c17_9, %c0_10], %3 {strides = array<i32>} : memref<18x18x128xf32, #tpu.memory_space<vmem>>, vector<18x1x128xf32>,
    %cst_11 = arith.constant 0.000000e+00 : f32
    %6 = vector.broadcast %cst_11 : f32 to vector<1x18x128xf32>
    %c0_12 = arith.constant 0 : index
    %c0_13 = arith.constant 0 : index
    %c0_14 = arith.constant 0 : index
    %7 = vector.load %arg9[%c0_12, %c0_13, %c0_14] : memref<18x18x128xf32, #tpu.memory_space<vmem>>, vector<1x18x128xf32>
    tpu.vector_store %arg9[%c0_12, %c0_13, %c0_14], %6 {strides = array<i32>} : memref<18x18x128xf32, #tpu.memory_space<vmem>>, vector<1x18x128xf32>,
    %c17_15 = arith.constant 17 : index
    %c0_16 = arith.constant 0 : index
    %c0_17 = arith.constant 0 : index
    %8 = vector.load %arg9[%c17_15, %c0_16, %c0_17] : memref<18x18x128xf32, #tpu.memory_space<vmem>>, vector<1x18x128xf32>
    tpu.vector_store %arg9[%c17_15, %c0_16, %c0_17], %6 {strides = array<i32>} : memref<18x18x128xf32, #tpu.memory_space<vmem>>, vector<1x18x128xf32>,
    %cst_18 = arith.constant 0.000000e+00 : f32
    %9 = vector.broadcast %cst_18 : f32 to vector<18x1x128xf32>
    %c0_19 = arith.constant 0 : index
    %c0_20 = arith.constant 0 : index
    %c0_21 = arith.constant 0 : index
    %10 = vector.load %arg9[%c0_19, %c0_20, %c0_21] : memref<18x18x128xf32, #tpu.memory_space<vmem>>, vector<18x1x128xf32>
    tpu.vector_store %arg9[%c0_19, %c0_20, %c0_21], %9 {strides = array<i32>} : memref<18x18x128xf32, #tpu.memory_space<vmem>>, vector<18x1x128xf32>,
    %c0_22 = arith.constant 0 : index
    %c17_23 = arith.constant 17 : index
    %c0_24 = arith.constant 0 : index
    %11 = vector.load %arg9[%c0_22, %c17_23, %c0_24] : memref<18x18x128xf32, #tpu.memory_space<vmem>>, vector<18x1x128xf32>
    tpu.vector_store %arg9[%c0_22, %c17_23, %c0_24], %9 {strides = array<i32>} : memref<18x18x128xf32, #tpu.memory_space<vmem>>, vector<18x1x128xf32>,
    %c0_25 = arith.constant 0 : index
    %c0_26 = arith.constant 0 : index
    %c0_27 = arith.constant 0 : index
    %c0_28 = arith.constant 0 : index
    %12 = vector.load %arg1[%c0_25, %c0_26, %c0_27, %c0_28] : memref<1x16x16x128xf32, #tpu.memory_space<vmem>>, vector<1x16x16x128xf32>
    %13 = vector.shape_cast %12 : vector<1x16x16x128xf32> to vector<16x16x128xf32>
    %c1 = arith.constant 1 : index
    %c1_29 = arith.constant 1 : index
    %c0_30 = arith.constant 0 : index
    %14 = vector.load %arg8[%c1, %c1_29, %c0_30] : memref<18x18x128xf32, #tpu.memory_space<vmem>>, vector<16x16x128xf32>
    tpu.vector_store %arg8[%c1, %c1_29, %c0_30], %13 {strides = array<i32>} : memref<18x18x128xf32, #tpu.memory_space<vmem>>, vector<16x16x128xf32>,
    %c0_31 = arith.constant 0 : index
    %c0_32 = arith.constant 0 : index
    %c0_33 = arith.constant 0 : index
    %15 = vector.load %arg8[%c0_31, %c0_32, %c0_33] : memref<18x18x128xf32, #tpu.memory_space<vmem>>, vector<18x18x128xf32>
    %16 = arith.truncf %15 : vector<18x18x128xf32> to vector<18x18x128xbf16>
    %17 = vector.extract_strided_slice %16 {offsets = [0, 0, 0], sizes = [16, 16, 128], strides = [1, 1, 1]} : vector<18x18x128xbf16> to vector<16x16x128xbf16>
    %18 = vector.extract_strided_slice %16 {offsets = [0, 1, 0], sizes = [16, 16, 128], strides = [1, 1, 1]} : vector<18x18x128xbf16> to vector<16x16x128xbf16>
    %19 = vector.extract_strided_slice %16 {offsets = [0, 2, 0], sizes = [16, 16, 128], strides = [1, 1, 1]} : vector<18x18x128xbf16> to vector<16x16x128xbf16>
    %20 = vector.extract_strided_slice %16 {offsets = [1, 0, 0], sizes = [16, 16, 128], strides = [1, 1, 1]} : vector<18x18x128xbf16> to vector<16x16x128xbf16>
    %21 = vector.extract_strided_slice %16 {offsets = [1, 1, 0], sizes = [16, 16, 128], strides = [1, 1, 1]} : vector<18x18x128xbf16> to vector<16x16x128xbf16>
    %22 = vector.extract_strided_slice %16 {offsets = [1, 2, 0], sizes = [16, 16, 128], strides = [1, 1, 1]} : vector<18x18x128xbf16> to vector<16x16x128xbf16>
    %23 = vector.extract_strided_slice %16 {offsets = [2, 0, 0], sizes = [16, 16, 128], strides = [1, 1, 1]} : vector<18x18x128xbf16> to vector<16x16x128xbf16>
    %24 = vector.extract_strided_slice %16 {offsets = [2, 1, 0], sizes = [16, 16, 128], strides = [1, 1, 1]} : vector<18x18x128xbf16> to vector<16x16x128xbf16>
    %25 = vector.extract_strided_slice %16 {offsets = [2, 2, 0], sizes = [16, 16, 128], strides = [1, 1, 1]} : vector<18x18x128xbf16> to vector<16x16x128xbf16>
    %26 = tpu.concatenate %17, %18, %19, %20, %21, %22, %23, %24, %25 in 2 : vector<16x16x128xbf16>, vector<16x16x128xbf16>, vector<16x16x128xbf16>, vector<16x16x128xbf16>, vector<16x16x128xbf16>, vector<16x16x128xbf16>, vector<16x16x128xbf16>, vector<16x16x128xbf16>, vector<16x16x128xbf16> -> vector<16x16x1152xbf16>
    %27 = vector.shape_cast %26 : vector<16x16x1152xbf16> to vector<256x1152xbf16>
    %c0_34 = arith.constant 0 : index
    %c0_35 = arith.constant 0 : index
    %28 = vector.load %arg2[%c0_34, %c0_35] : memref<1152x128xbf16, #tpu.memory_space<vmem>>, vector<1152x128xbf16>
    %cst_36 = arith.constant dense<0.000000e+00> : vector<256x128xf32>
    %29 = tpu.matmul %27, %28, %cst_36 {dimension_numbers = #tpu.dot_dimension_numbers<[1], [0], [0], [1], [0, 0, 1, 1], [], []>} : vector<256x1152xbf16>, vector<1152x128xbf16>, vector<256x128xf32> -> vector<256x128xf32>
    %c0_37 = arith.constant 0 : index
    %c0_38 = arith.constant 0 : index
    %30 = vector.load %arg3[%c0_37, %c0_38] : memref<1x128xf32, #tpu.memory_space<vmem>>, vector<1x128xf32>
    %31 = vector.broadcast %30 : vector<1x128xf32> to vector<256x128xf32>
    %32 = arith.addf %29, %31 : vector<256x128xf32>
    %cst_39 = arith.constant 0.000000e+00 : f32
    %33 = vector.broadcast %cst_39 : f32 to vector<256x128xf32>
    %34 = arith.maximumf %32, %33 : vector<256x128xf32>
    %35 = vector.shape_cast %34 : vector<256x128xf32> to vector<16x16x128xf32>
    %c1_40 = arith.constant 1 : index
    %c1_41 = arith.constant 1 : index
    %c0_42 = arith.constant 0 : index
    %36 = vector.load %arg9[%c1_40, %c1_41, %c0_42] : memref<18x18x128xf32, #tpu.memory_space<vmem>>, vector<16x16x128xf32>
    tpu.vector_store %arg9[%c1_40, %c1_41, %c0_42], %35 {strides = array<i32>} : memref<18x18x128xf32, #tpu.memory_space<vmem>>, vector<16x16x128xf32>,
    %c0_43 = arith.constant 0 : index
    %c0_44 = arith.constant 0 : index
    %c0_45 = arith.constant 0 : index
    %37 = vector.load %arg9[%c0_43, %c0_44, %c0_45] : memref<18x18x128xf32, #tpu.memory_space<vmem>>, vector<18x18x128xf32>
    %38 = arith.truncf %37 : vector<18x18x128xf32> to vector<18x18x128xbf16>
    %39 = vector.extract_strided_slice %38 {offsets = [0, 0, 0], sizes = [16, 16, 128], strides = [1, 1, 1]} : vector<18x18x128xbf16> to vector<16x16x128xbf16>
    %40 = vector.extract_strided_slice %38 {offsets = [0, 1, 0], sizes = [16, 16, 128], strides = [1, 1, 1]} : vector<18x18x128xbf16> to vector<16x16x128xbf16>
    %41 = vector.extract_strided_slice %38 {offsets = [0, 2, 0], sizes = [16, 16, 128], strides = [1, 1, 1]} : vector<18x18x128xbf16> to vector<16x16x128xbf16>
    %42 = vector.extract_strided_slice %38 {offsets = [1, 0, 0], sizes = [16, 16, 128], strides = [1, 1, 1]} : vector<18x18x128xbf16> to vector<16x16x128xbf16>
    %43 = vector.extract_strided_slice %38 {offsets = [1, 1, 0], sizes = [16, 16, 128], strides = [1, 1, 1]} : vector<18x18x128xbf16> to vector<16x16x128xbf16>
    %44 = vector.extract_strided_slice %38 {offsets = [1, 2, 0], sizes = [16, 16, 128], strides = [1, 1, 1]} : vector<18x18x128xbf16> to vector<16x16x128xbf16>
    %45 = vector.extract_strided_slice %38 {offsets = [2, 0, 0], sizes = [16, 16, 128], strides = [1, 1, 1]} : vector<18x18x128xbf16> to vector<16x16x128xbf16>
    %46 = vector.extract_strided_slice %38 {offsets = [2, 1, 0], sizes = [16, 16, 128], strides = [1, 1, 1]} : vector<18x18x128xbf16> to vector<16x16x128xbf16>
    %47 = vector.extract_strided_slice %38 {offsets = [2, 2, 0], sizes = [16, 16, 128], strides = [1, 1, 1]} : vector<18x18x128xbf16> to vector<16x16x128xbf16>
    %48 = tpu.concatenate %39, %40, %41, %42, %43, %44, %45, %46, %47 in 2 : vector<16x16x128xbf16>, vector<16x16x128xbf16>, vector<16x16x128xbf16>, vector<16x16x128xbf16>, vector<16x16x128xbf16>, vector<16x16x128xbf16>, vector<16x16x128xbf16>, vector<16x16x128xbf16>, vector<16x16x128xbf16> -> vector<16x16x1152xbf16>
    %49 = vector.shape_cast %48 : vector<16x16x1152xbf16> to vector<256x1152xbf16>
    %c0_46 = arith.constant 0 : index
    %c0_47 = arith.constant 0 : index
    %50 = vector.load %arg4[%c0_46, %c0_47] : memref<1152x128xbf16, #tpu.memory_space<vmem>>, vector<1152x128xbf16>
    %cst_48 = arith.constant dense<0.000000e+00> : vector<256x128xf32>
    %51 = tpu.matmul %49, %50, %cst_48 {dimension_numbers = #tpu.dot_dimension_numbers<[1], [0], [0], [1], [0, 0, 1, 1], [], []>} : vector<256x1152xbf16>, vector<1152x128xbf16>, vector<256x128xf32> -> vector<256x128xf32>
    %c1_49 = arith.constant 1 : index
    %c1_50 = arith.constant 1 : index
    %c0_51 = arith.constant 0 : index
    %52 = vector.load %arg8[%c1_49, %c1_50, %c0_51] : memref<18x18x128xf32, #tpu.memory_space<vmem>>, vector<16x16x128xf32>
    %53 = arith.truncf %52 : vector<16x16x128xf32> to vector<16x16x128xbf16>
    %54 = vector.shape_cast %53 : vector<16x16x128xbf16> to vector<256x128xbf16>
    %c0_52 = arith.constant 0 : index
    %c0_53 = arith.constant 0 : index
    %55 = vector.load %arg6[%c0_52, %c0_53] : memref<128x128xbf16, #tpu.memory_space<vmem>>, vector<128x128xbf16>
    %cst_54 = arith.constant dense<0.000000e+00> : vector<256x128xf32>
    %56 = tpu.matmul %54, %55, %cst_54 {dimension_numbers = #tpu.dot_dimension_numbers<[1], [0], [0], [1], [0, 0, 1, 1], [], []>} : vector<256x128xbf16>, vector<128x128xbf16>, vector<256x128xf32> -> vector<256x128xf32>
    %57 = arith.addf %51, %56 : vector<256x128xf32>
    %c0_55 = arith.constant 0 : index
    %c0_56 = arith.constant 0 : index
    %58 = vector.load %arg5[%c0_55, %c0_56] : memref<1x128xf32, #tpu.memory_space<vmem>>, vector<1x128xf32>
    %59 = vector.broadcast %58 : vector<1x128xf32> to vector<256x128xf32>
    %60 = arith.addf %57, %59 : vector<256x128xf32>
    %cst_57 = arith.constant 0.000000e+00 : f32
    %61 = vector.broadcast %cst_57 : f32 to vector<256x128xf32>
    %62 = arith.maximumf %60, %61 : vector<256x128xf32>
    %63 = vector.shape_cast %62 : vector<256x128xf32> to vector<1x16x16x128xf32>
    %c0_58 = arith.constant 0 : index
    %c0_59 = arith.constant 0 : index
    %c0_60 = arith.constant 0 : index
    %c0_61 = arith.constant 0 : index
    %64 = vector.load %arg7[%c0_58, %c0_59, %c0_60, %c0_61] : memref<1x16x16x128xf32, #tpu.memory_space<vmem>>, vector<1x16x16x128xf32>
    tpu.vector_store %arg7[%c0_58, %c0_59, %c0_60, %c0_61], %63 {strides = array<i32>} : memref<1x16x16x128xf32, #tpu.memory_space<vmem>>, vector<1x16x16x128xf32>,
    return
  }
  func.func @transform_0(%arg0: i32) -> (i32, i32, i32, i32) {
    %c0_i32 = arith.constant 0 : i32
    %c0_i32_0 = arith.constant 0 : i32
    %c0_i32_1 = arith.constant 0 : i32
    %c0_i32_2 = arith.constant 0 : i32
    return %arg0, %c0_i32, %c0_i32_0, %c0_i32_1 : i32, i32, i32, i32
  }
  func.func @transform_1(%arg0: i32) -> (i32, i32) {
    %c0_i32 = arith.constant 0 : i32
    %c0_i32_0 = arith.constant 0 : i32
    %c0_i32_1 = arith.constant 0 : i32
    return %c0_i32, %c0_i32_0 : i32, i32
  }
  func.func @transform_2(%arg0: i32) -> (i32, i32) {
    %c0_i32 = arith.constant 0 : i32
    %c0_i32_0 = arith.constant 0 : i32
    %c0_i32_1 = arith.constant 0 : i32
    return %c0_i32, %c0_i32_0 : i32, i32
  }
  func.func @transform_3(%arg0: i32) -> (i32, i32) {
    %c0_i32 = arith.constant 0 : i32
    %c0_i32_0 = arith.constant 0 : i32
    %c0_i32_1 = arith.constant 0 : i32
    return %c0_i32, %c0_i32_0 : i32, i32
  }
  func.func @transform_4(%arg0: i32) -> (i32, i32) {
    %c0_i32 = arith.constant 0 : i32
    %c0_i32_0 = arith.constant 0 : i32
    %c0_i32_1 = arith.constant 0 : i32
    return %c0_i32, %c0_i32_0 : i32, i32
  }
  func.func @transform_5(%arg0: i32) -> (i32, i32) {
    %c0_i32 = arith.constant 0 : i32
    %c0_i32_0 = arith.constant 0 : i32
    %c0_i32_1 = arith.constant 0 : i32
    return %c0_i32, %c0_i32_0 : i32, i32
  }
  func.func @transform_6(%arg0: i32) -> (i32, i32, i32, i32) {
    %c0_i32 = arith.constant 0 : i32
    %c0_i32_0 = arith.constant 0 : i32
    %c0_i32_1 = arith.constant 0 : i32
    %c0_i32_2 = arith.constant 0 : i32
    return %arg0, %c0_i32, %c0_i32_0, %c0_i32_1 : i32, i32, i32, i32
  }
}

</mosaic_0001>

<llo_original>
// kernel: tpu_custom_call.1
$region0: #{tpu_custom_call.1}
  #allocation0 [shape = 'u32[]', space=smem, size = 0x4, offset = 0x4, fixed_abs, tag = 'smem constant byte address 0x4 - core index']
  #allocation1 [shape = 'u32[144,128]{1,0:T(1,128)}', space=vmem, size = 0x12000, scoped, tag = 'internal scratch']
  #allocation2 [shape = 'f32[18,18,128]{2,1,0:T(8,128)}', space=vmem, size = 0x36000, scoped, tag = 'scratch operand']
  #allocation3 [shape = 'f32[18,18,128]{2,1,0:T(8,128)}', space=vmem, size = 0x36000, scoped, tag = 'scratch operand']
  %s0 = inlined_call_operand.hbm [shape: f32[2,16,16,128], index: 0, kind: input, shape index: {}]
  %s1 = inlined_call_operand.hbm [shape: bf16[1152,128], index: 1, kind: input, shape index: {}]
  %s2 = inlined_call_operand.vmem [shape: f32[1,128], index: 2, kind: input, shape index: {}]
  %s3 = inlined_call_operand.hbm [shape: bf16[1152,128], index: 3, kind: input, shape index: {}]
  %s4 = inlined_call_operand.vmem [shape: f32[1,128], index: 4, kind: input, shape index: {}]
  %s5 = inlined_call_operand.hbm [shape: bf16[128,128], index: 5, kind: input, shape index: {}]
  %s6 = inlined_call_operand.hbm [shape: f32[2,16,16,128], index: 6, kind: output, shape index: {}]
  %s7 = sld [smem:[#allocation0]]
  $region73: #{tpu_custom_call.1} parent=0
    _
  %s9 = ssub.s32 1, %s7
  %s10 = scalar_select 0, %s9, %s7
  $region1: #{tpu_custom_call.1} parent=0
    #allocation4 [shape = 'u8[262144]{0}', space=vmem, size = 0x40000, scoped, tag = 'input window, operand 0']
    #allocation5 [shape = 's32[2]{0}', space=sflag, size = 0x8, scoped, tag = 'scoped memory for tpu_custom_call.1']
    #allocation6 [shape = 's32[2]{0}', space=sflag, size = 0x8, scoped, tag = 'scoped memory for tpu_custom_call.1']
    #allocation7 [shape = 'u8[294912]{0}', space=vmem, size = 0x48000, scoped, tag = 'input window, operand 1, single buffered']
    #allocation8 [shape = 's32[1]{0}', space=sflag, size = 0x4, scoped, tag = 'scoped memory for tpu_custom_call.1']
    #allocation9 [shape = 'u8[294912]{0}', space=vmem, size = 0x48000, scoped, tag = 'input window, operand 3, single buffered']
    #allocation10 [shape = 'u8[32768]{0}', space=vmem, size = 0x8000, scoped, tag = 'input window, operand 5, single buffered']
    #allocation11 [shape = 's32[1]{0}', space=sflag, size = 0x4, scoped, tag = 'scoped memory for tpu_custom_call.1']
    #allocation12 [shape = 'u8[262144]{0}', space=vmem, size = 0x40000, scoped, tag = 'output window, operand 0']
    %11 = vsyncpa [#allocation5], 0
    %s12 = scalar_lea.sflag [#allocation5], 1
    %13 = vsyncpa %s12, 0
    %14 = vsyncpa [#allocation8], 0
    %15 = vsyncpa [#allocation11], 0
    %16 = vsyncpa [#allocation6], 0
    %s17 = scalar_lea.sflag [#allocation6], 1
    %18 = vsyncpa %s17, 0
    loop: start=0, step=1, limit=4
    $region2: #{tpu_custom_call.1} parent=1 // loop_pre_header
      _
    $region3: #{tpu_custom_call.1} parent=1 // loop_header
      %s20 = sphi 0, %s24
      %p21 = scmp.ge.s32.totalorder %s20, 4
      %s30 = sphi 0, %s32
      %s33 = sphi 0, %s30
      %s34 = sphi 0, %s33
      %s50 = sphi 0, %s34
      %s54 = sphi 0, %s54
      %s56 = sphi 0, %s54
      %s57 = sphi 0, %s56
      %s71 = sphi 0, %s57
      %s75 = sphi 0, %s75
      %s77 = sphi 0, %s75
      %s78 = sphi 0, %s77
      %s92 = sphi 0, %s78
      %s96 = sphi 0, %s96
      %s98 = sphi 0, %s96
      %s99 = sphi 0, %s98
      %s113 = sphi 0, %s99
      %s117 = sphi 0, %s117
      %s119 = sphi 0, %s117
      %s120 = sphi 0, %s119
      %s134 = sphi 0, %s120
      %s138 = sphi 0, %s138
      %s140 = sphi 0, %s138
      %s141 = sphi 0, %s140
      %s155 = sphi 0, %s141
      %s161 = sphi 0, %s163
      %s164 = sphi 0, %s161
      %s165 = sphi 0, %s164
      %s181 = sphi 0, %s165
    $region4: #{tpu_custom_call.1} parent=1 // loop_header_branch
      %23 = sbr.rel (%p21) target = $region8
    $region5: #{tpu_custom_call.1} parent=1 // loop_body
      %s25 = ssub.s32 %s20, 1
      %s26 = ssub.s32 %s20, 2
      %s27 = sadd.s32 %s20, 1
      %s28 = ssub.s32 %s20, %s27
      %p29 = scmp.eq.s32.totalorder %s28, 0
      %s31 = sadd.s32 %s30, 1
      %s32 = scalar_select %p29, %s30, %s31
      %p35 = pneg %p29
      %p36 = scmp.eq.s32.totalorder %s20, 1
      %p37 = por %p35, %p36
      %p38 = scmp.ne.s32.totalorder %s30, %s33
      %p39 = scmp.eq.s32.totalorder %s20, 0
      %p40 = por %p38, %p39
      %p41 = scmp.ne.s32.totalorder %s30, %s33
      %p42 = scmp.eq.s32.totalorder %s25, 1
      %p43 = por %p41, %p42
      %p44 = scmp.ne.s32.totalorder %s33, %s34
      %p45 = scmp.eq.s32.totalorder %s25, 0
      %p46 = por %p44, %p45
      %p47 = scmp.ne.s32.totalorder %s33, %s34
      %p48 = scmp.eq.s32.totalorder %s26, 1
      %p49 = por %p47, %p48
      %p51 = scmp.ne.s32.totalorder %s34, %s50
      %p52 = scmp.eq.s32.totalorder %s26, 0
      %p53 = por %p51, %p52
      %s55 = sadd.s32 %s54, 1
      %p58 = scmp.eq.s32.totalorder %s20, 1
      %p59 = scmp.ne.s32.totalorder %s54, %s56
      %p60 = scmp.eq.s32.totalorder %s20, 0
      %p61 = por %p59, %p60
      %p62 = scmp.ne.s32.totalorder %s54, %s56
      %p63 = scmp.eq.s32.totalorder %s25, 1
      %p64 = por %p62, %p63
      %p65 = scmp.ne.s32.totalorder %s56, %s57
      %p66 = scmp.eq.s32.totalorder %s25, 0
      %p67 = por %p65, %p66
      %p68 = scmp.ne.s32.totalorder %s56, %s57
      %p69 = scmp.eq.s32.totalorder %s26, 1
      %p70 = por %p68, %p69
      %p72 = scmp.ne.s32.totalorder %s57, %s71
      %p73 = scmp.eq.s32.totalorder %s26, 0
      %p74 = por %p72, %p73
      %s76 = sadd.s32 %s75, 1
      %p79 = scmp.eq.s32.totalorder %s20, 1
      %p80 = scmp.ne.s32.totalorder %s75, %s77
      %p81 = scmp.eq.s32.totalorder %s20, 0
      %p82 = por %p80, %p81
      %p83 = scmp.ne.s32.totalorder %s75, %s77
      %p84 = scmp.eq.s32.totalorder %s25, 1
      %p85 = por %p83, %p84
      %p86 = scmp.ne.s32.totalorder %s77, %s78
      %p87 = scmp.eq.s32.totalorder %s25, 0
      %p88 = por %p86, %p87
      %p89 = scmp.ne.s32.totalorder %s77, %s78
      %p90 = scmp.eq.s32.totalorder %s26, 1
      %p91 = por %p89, %p90
      %p93 = scmp.ne.s32.totalorder %s78, %s92
      %p94 = scmp.eq.s32.totalorder %s26, 0
      %p95 = por %p93, %p94
      %s97 = sadd.s32 %s96, 1
      %p100 = scmp.eq.s32.totalorder %s20, 1
      %p101 = scmp.ne.s32.totalorder %s96, %s98
      %p102 = scmp.eq.s32.totalorder %s20, 0
      %p103 = por %p101, %p102
      %p104 = scmp.ne.s32.totalorder %s96, %s98
      %p105 = scmp.eq.s32.totalorder %s25, 1
      %p106 = por %p104, %p105
      %p107 = scmp.ne.s32.totalorder %s98, %s99
      %p108 = scmp.eq.s32.totalorder %s25, 0
      %p109 = por %p107, %p108
      %p110 = scmp.ne.s32.totalorder %s98, %s99
      %p111 = scmp.eq.s32.totalorder %s26, 1
      %p112 = por %p110, %p111
      %p114 = scmp.ne.s32.totalorder %s99, %s113
      %p115 = scmp.eq.s32.totalorder %s26, 0
      %p116 = por %p114, %p115
      %s118 = sadd.s32 %s117, 1
      %p121 = scmp.eq.s32.totalorder %s20, 1
      %p122 = scmp.ne.s32.totalorder %s117, %s119
      %p123 = scmp.eq.s32.totalorder %s20, 0
      %p124 = por %p122, %p123
      %p125 = scmp.ne.s32.totalorder %s117, %s119
      %p126 = scmp.eq.s32.totalorder %s25, 1
      %p127 = por %p125, %p126
      %p128 = scmp.ne.s32.totalorder %s119, %s120
      %p129 = scmp.eq.s32.totalorder %s25, 0
      %p130 = por %p128, %p129
      %p131 = scmp.ne.s32.totalorder %s119, %s120
      %p132 = scmp.eq.s32.totalorder %s26, 1
      %p133 = por %p131, %p132
      %p135 = scmp.ne.s32.totalorder %s120, %s134
      %p136 = scmp.eq.s32.totalorder %s26, 0
      %p137 = por %p135, %p136
      %s139 = sadd.s32 %s138, 1
      %p142 = scmp.eq.s32.totalorder %s20, 1
      %p143 = scmp.ne.s32.totalorder %s138, %s140
      %p144 = scmp.eq.s32.totalorder %s20, 0
      %p145 = por %p143, %p144
      %p146 = scmp.ne.s32.totalorder %s138, %s140
      %p147 = scmp.eq.s32.totalorder %s25, 1
      %p148 = por %p146, %p147
      %p149 = scmp.ne.s32.totalorder %s140, %s141
      %p150 = scmp.eq.s32.totalorder %s25, 0
      %p151 = por %p149, %p150
      %p152 = scmp.ne.s32.totalorder %s140, %s141
      %p153 = scmp.eq.s32.totalorder %s26, 1
      %p154 = por %p152, %p153
      %p156 = scmp.ne.s32.totalorder %s141, %s155
      %p157 = scmp.eq.s32.totalorder %s26, 0
      %p158 = por %p156, %p157
      %s159 = ssub.s32 %s20, %s27
      %p160 = scmp.eq.s32.totalorder %s159, 0
      %s162 = sadd.s32 %s161, 1
      %s163 = scalar_select %p160, %s161, %s162
      %p166 = pneg %p160
      %p167 = scmp.eq.s32.totalorder %s20, 1
      %p168 = por %p166, %p167
      %p169 = scmp.ne.s32.totalorder %s161, %s164
      %p170 = scmp.eq.s32.totalorder %s20, 0
      %p171 = por %p169, %p170
      %p172 = scmp.ne.s32.totalorder %s161, %s164
      %p173 = scmp.eq.s32.totalorder %s25, 1
      %p174 = por %p172, %p173
      %p175 = scmp.ne.s32.totalorder %s164, %s165
      %p176 = scmp.eq.s32.totalorder %s25, 0
      %p177 = por %p175, %p176
      %p178 = scmp.ne.s32.totalorder %s164, %s165
      %p179 = scmp.eq.s32.totalorder %s26, 1
      %p180 = por %p178, %p179
      %p182 = scmp.ne.s32.totalorder %s165, %s181
      %p183 = scmp.eq.s32.totalorder %s26, 0
      %p184 = por %p182, %p183
      %p185 = scmp.le.s32.totalorder 1, %s20
      %p186 = scmp.lt.s32.totalorder %s20, 3
      %p187 = pnand %p185, %p186
      %p188 = pneg %p187
      // Predicated region
      $region9: #{tpu_custom_call.1} parent=5 // pred_check
        _
      $region10: #{tpu_custom_call.1} parent=5 // pred_check_branch
        %190 = sbr.rel (%p187) target = $region12
      $region11: #{tpu_custom_call.1} parent=5 // pred_region
        %s191 = ssub.s32 %s20, 1
        // Predicated region
        $region13: #{tpu_custom_call.1} parent=11 // pred_check
          %p192 = pneg %p67
        $region14: #{tpu_custom_call.1} parent=11 // pred_check_branch
          %194 = sbr.rel (%p192) target = $region16
        $region15: #{tpu_custom_call.1} parent=11 // pred_region
          %s196 = ssub.s32 9216, 9216
          %197 = vsyncadd [#allocation8], %s196
          %s198 = sshll.u32 [#allocation7], 4
          %s199 = int_to_ptr.vmem [resolvable:$true] %s198
          %204 = dma.hbm_to_vmem [thread:$0]  %s1, 9216, %s199, [#allocation8], 64, 64, 4
        $region16: #{tpu_custom_call.1} parent=11 // pred_fallthru
          _
        // Predicated region
        $region17: #{tpu_custom_call.1} parent=11 // pred_check
          %p205 = pneg %p88
        $region18: #{tpu_custom_call.1} parent=11 // pred_check_branch
          %207 = sbr.rel (%p205) target = $region20
        $region19: #{tpu_custom_call.1} parent=11 // pred_region
          _
        $region20: #{tpu_custom_call.1} parent=11 // pred_fallthru
          _
        // Predicated region
        $region21: #{tpu_custom_call.1} parent=11 // pred_check
          %p208 = pneg %p109
        $region22: #{tpu_custom_call.1} parent=11 // pred_check_branch
          %210 = sbr.rel (%p208) target = $region24
        $region23: #{tpu_custom_call.1} parent=11 // pred_region
          %s212 = ssub.s32 9216, 9216
          %213 = vsyncadd [#allocation8], %s212
          %s214 = sshll.u32 [#allocation9], 4
          %s215 = int_to_ptr.vmem [resolvable:$true] %s214
          %220 = dma.hbm_to_vmem [thread:$0]  %s3, 9216, %s215, [#allocation8], 64, 64, 4
        $region24: #{tpu_custom_call.1} parent=11 // pred_fallthru
          _
        // Predicated region
        $region25: #{tpu_custom_call.1} parent=11 // pred_check
          %p221 = pneg %p130
        $region26: #{tpu_custom_call.1} parent=11 // pred_check_branch
          %223 = sbr.rel (%p221) target = $region28
        $region27: #{tpu_custom_call.1} parent=11 // pred_region
          _
        $region28: #{tpu_custom_call.1} parent=11 // pred_fallthru
          _
        // Predicated region
        $region29: #{tpu_custom_call.1} parent=11 // pred_check
          %p224 = pneg %p151
        $region30: #{tpu_custom_call.1} parent=11 // pred_check_branch
          %226 = sbr.rel (%p224) target = $region32
        $region31: #{tpu_custom_call.1} parent=11 // pred_region
          %s228 = ssub.s32 1024, 1024
          %229 = vsyncadd [#allocation11], %s228
          %s230 = sshll.u32 [#allocation10], 4
          %s231 = int_to_ptr.vmem [resolvable:$true] %s230
          %236 = dma.hbm_to_vmem [thread:$0]  %s5, 1024, %s231, [#allocation11], 64, 64, 4
        $region32: #{tpu_custom_call.1} parent=11 // pred_fallthru
          _
      $region12: #{tpu_custom_call.1} parent=5 // pred_fallthru
        _
      %p237 = scmp.lt.s32.totalorder %s20, 2
      // Predicated region
      $region33: #{tpu_custom_call.1} parent=5 // pred_check
        %p238 = pneg %p237
      $region34: #{tpu_custom_call.1} parent=5 // pred_check_branch
        %240 = sbr.rel (%p238) target = $region36
      $region35: #{tpu_custom_call.1} parent=5 // pred_region
        // Predicated region
        $region37: #{tpu_custom_call.1} parent=35 // pred_check
          %p241 = pneg %p40
        $region38: #{tpu_custom_call.1} parent=35 // pred_check_branch
          %243 = sbr.rel (%p241) target = $region40
        $region39: #{tpu_custom_call.1} parent=35 // pred_region
          %s244 = sand.u32 %s30, 1
          %s245 = scalar_lea.sflag [#allocation5], %s244
          %s246 = sand.u32 %s30, 1
          %s247 = smul.addr %s246, 256
          %s248 = scalar_lea.vmem [#allocation4], %s247
          %s250 = ssub.s32 4096, 4096
          %251 = vsyncadd %s245, %s250
          %s252 = smul.addr %s20, 32
          %s253 = smul.addr %s252, 128
          %s254 = scalar_lea.hbm %s0, %s253
          %s255 = sshll.u32 %s248, 4
          %s256 = int_to_ptr.vmem [resolvable:$true] %s255
          %261 = dma.hbm_to_vmem [thread:$0]  %s254, 4096, %s256, %s245, 128, 128, 8
        $region40: #{tpu_custom_call.1} parent=35 // pred_fallthru
          _
      $region36: #{tpu_custom_call.1} parent=5 // pred_fallthru
        _
      %p262 = scmp.le.s32.totalorder 1, %s20
      %p263 = scmp.lt.s32.totalorder %s20, 3
      %p264 = pnand %p262, %p263
      %p265 = pneg %p264
      // Predicated region
      $region41: #{tpu_custom_call.1} parent=5 // pred_check
        _
      $region42: #{tpu_custom_call.1} parent=5 // pred_check_branch
        %267 = sbr.rel (%p264) target = $region44
      $region43: #{tpu_custom_call.1} parent=5 // pred_region
        %s268 = ssub.s32 %s20, 1
        %s269 = sand.u32 %s33, 1
        %s270 = scalar_lea.sflag [#allocation5], %s269
        %s271 = sand.u32 %s33, 1
        %s272 = smul.addr %s271, 256
        %s273 = scalar_lea.vmem [#allocation4], %s272
        // Predicated region
        $region45: #{tpu_custom_call.1} parent=43 // pred_check
          %p274 = pneg %p46
        $region46: #{tpu_custom_call.1} parent=43 // pred_check_branch
          %276 = sbr.rel (%p274) target = $region48
        $region47: #{tpu_custom_call.1} parent=43 // pred_region
          %277 = dma.done %s270, 4096
        $region48: #{tpu_custom_call.1} parent=43 // pred_fallthru
          _
        // Predicated region
        $region49: #{tpu_custom_call.1} parent=43 // pred_check
          %p278 = pneg %p67
        $region50: #{tpu_custom_call.1} parent=43 // pred_check_branch
          %280 = sbr.rel (%p278) target = $region52
        $region51: #{tpu_custom_call.1} parent=43 // pred_region
          %281 = dma.done [#allocation8], 9216
        $region52: #{tpu_custom_call.1} parent=43 // pred_fallthru
          _
        // Predicated region
        $region53: #{tpu_custom_call.1} parent=43 // pred_check
          %p282 = pneg %p109
        $region54: #{tpu_custom_call.1} parent=43 // pred_check_branch
          %284 = sbr.rel (%p282) target = $region56
        $region55: #{tpu_custom_call.1} parent=43 // pred_region
          %285 = dma.done [#allocation8], 9216
        $region56: #{tpu_custom_call.1} parent=43 // pred_fallthru
          _
        // Predicated region
        $region57: #{tpu_custom_call.1} parent=43 // pred_check
          %p286 = pneg %p151
        $region58: #{tpu_custom_call.1} parent=43 // pred_check_branch
          %288 = sbr.rel (%p286) target = $region60
        $region59: #{tpu_custom_call.1} parent=43 // pred_region
          %289 = dma.done [#allocation11], 1024
        $region60: #{tpu_custom_call.1} parent=43 // pred_fallthru
          _
        %s290 = sand.u32 %s33, 1
        %s291 = scalar_lea.sflag [#allocation5], %s290
        %s292 = sand.u32 %s33, 1
        %s293 = smul.addr %s292, 256
        %s294 = scalar_lea.vmem [#allocation4], %s293
        %p295 = pneg %p46
        %p296 = pneg %p43
        %p297 = pneg %p67
        %p298 = pneg %p64
        %p299 = pneg %p88
        %p300 = pneg %p85
        %p301 = pneg %p109
        %p302 = pneg %p106
        %p303 = pneg %p130
        %p304 = pneg %p127
        %p305 = pneg %p151
        %p306 = pneg %p148
        %p307 = pneg %p177
        %p308 = pneg %p174
        %s309 = sand.u32 %s164, 1
        %s310 = scalar_lea.sflag [#allocation6], %s309
        %s311 = sand.u32 %s164, 1
        %s312 = smul.addr %s311, 256
        %s313 = scalar_lea.vmem [#allocation12], %s312
        %315 = vst [vmem:[#allocation2] sm:$0xff] 0.0
        %316 = vst [vmem:[#allocation2 + $0x8] sm:$0xff] 0.0
        %317 = vst [vmem:[#allocation2 + $0x10] sm:$0x3] 0.0
        %s318 = scalar_lea.vmem [#allocation2], 408
        %319 = vst [vmem:[%s318] sm:$0xff] 0.0
        %320 = vst [vmem:[%s318 + $0x8] sm:$0xff] 0.0
        %321 = vst [vmem:[%s318 + $0x10] sm:$0x3] 0.0
        %322 = vst [vmem:[#allocation2] sm:$0x1] 0.0
        %323 = vst [vmem:[#allocation2 + $0x18] sm:$0x1] 0.0
        %324 = vst [vmem:[#allocation2 + $0x30] sm:$0x1] 0.0
        %325 = vst [vmem:[#allocation2 + $0x48] sm:$0x1] 0.0
        %326 = vst [vmem:[#allocation2 + $0x60] sm:$0x1] 0.0
        %327 = vst [vmem:[#allocation2 + $0x78] sm:$0x1] 0.0
        %328 = vst [vmem:[#allocation2 + $0x90] sm:$0x1] 0.0
        %329 = vst [vmem:[#allocation2 + $0xa8] sm:$0x1] 0.0
        %330 = vst [vmem:[#allocation2 + $0xc0] sm:$0x1] 0.0
        %331 = vst [vmem:[#allocation2 + $0xd8] sm:$0x1] 0.0
        %332 = vst [vmem:[#allocation2 + $0xf0] sm:$0x1] 0.0
        %333 = vst [vmem:[#allocation2 + $0x108] sm:$0x1] 0.0
        %334 = vst [vmem:[#allocation2 + $0x120] sm:$0x1] 0.0
        %335 = vst [vmem:[#allocation2 + $0x138] sm:$0x1] 0.0
        %336 = vst [vmem:[#allocation2 + $0x150] sm:$0x1] 0.0
        %337 = vst [vmem:[#allocation2 + $0x168] sm:$0x1] 0.0
        %338 = vst [vmem:[#allocation2 + $0x180] sm:$0x1] 0.0
        %339 = vst [vmem:[#allocation2 + $0x198] sm:$0x1] 0.0
        %340 = vst [vmem:[#allocation2 + $0x11] sm:$0x1] 0.0
        %341 = vst [vmem:[#allocation2 + $0x29] sm:$0x1] 0.0
        %342 = vst [vmem:[#allocation2 + $0x41] sm:$0x1] 0.0
        %343 = vst [vmem:[#allocation2 + $0x59] sm:$0x1] 0.0
        %344 = vst [vmem:[#allocation2 + $0x71] sm:$0x1] 0.0
        %345 = vst [vmem:[#allocation2 + $0x89] sm:$0x1] 0.0
        %346 = vst [vmem:[#allocation2 + $0xa1] sm:$0x1] 0.0
        %347 = vst [vmem:[#allocation2 + $0xb9] sm:$0x1] 0.0
        %348 = vst [vmem:[#allocation2 + $0xd1] sm:$0x1] 0.0
        %349 = vst [vmem:[#allocation2 + $0xe9] sm:$0x1] 0.0
        %350 = vst [vmem:[#allocation2 + $0x101] sm:$0x1] 0.0
        %351 = vst [vmem:[#allocation2 + $0x119] sm:$0x1] 0.0
        %352 = vst [vmem:[#allocation2 + $0x131] sm:$0x1] 0.0
        %353 = vst [vmem:[#allocation2 + $0x149] sm:$0x1] 0.0
        %354 = vst [vmem:[#allocation2 + $0x161] sm:$0x1] 0.0
        %355 = vst [vmem:[#allocation2 + $0x179] sm:$0x1] 0.0
        %356 = vst [vmem:[#allocation2 + $0x191] sm:$0x1] 0.0
        %357 = vst [vmem:[#allocation2 + $0x1a9] sm:$0x1] 0.0
        %358 = vst [vmem:[#allocation3] sm:$0xff] 0.0
        %359 = vst [vmem:[#allocation3 + $0x8] sm:$0xff] 0.0
        %360 = vst [vmem:[#allocation3 + $0x10] sm:$0x3] 0.0
        %s361 = scalar_lea.vmem [#allocation3], 408
        %362 = vst [vmem:[%s361] sm:$0xff] 0.0
        %363 = vst [vmem:[%s361 + $0x8] sm:$0xff] 0.0
        %364 = vst [vmem:[%s361 + $0x10] sm:$0x3] 0.0
        %365 = vst [vmem:[#allocation3] sm:$0x1] 0.0
        %366 = vst [vmem:[#allocation3 + $0x18] sm:$0x1] 0.0
        %367 = vst [vmem:[#allocation3 + $0x30] sm:$0x1] 0.0
        %368 = vst [vmem:[#allocation3 + $0x48] sm:$0x1] 0.0
        %369 = vst [vmem:[#allocation3 + $0x60] sm:$0x1] 0.0
        %370 = vst [vmem:[#allocation3 + $0x78] sm:$0x1] 0.0
        %371 = vst [vmem:[#allocation3 + $0x90] sm:$0x1] 0.0
        %372 = vst [vmem:[#allocation3 + $0xa8] sm:$0x1] 0.0
        %373 = vst [vmem:[#allocation3 + $0xc0] sm:$0x1] 0.0
        %374 = vst [vmem:[#allocation3 + $0xd8] sm:$0x1] 0.0
        %375 = vst [vmem:[#allocation3 + $0xf0] sm:$0x1] 0.0
        %376 = vst [vmem:[#allocation3 + $0x108] sm:$0x1] 0.0
        %377 = vst [vmem:[#allocation3 + $0x120] sm:$0x1] 0.0
        %378 = vst [vmem:[#allocation3 + $0x138] sm:$0x1] 0.0
        %379 = vst [vmem:[#allocation3 + $0x150] sm:$0x1] 0.0
        %380 = vst [vmem:[#allocation3 + $0x168] sm:$0x1] 0.0
        %381 = vst [vmem:[#allocation3 + $0x180] sm:$0x1] 0.0
        %382 = vst [vmem:[#allocation3 + $0x198] sm:$0x1] 0.0
        %383 = vst [vmem:[#allocation3 + $0x11] sm:$0x1] 0.0
        %384 = vst [vmem:[#allocation3 + $0x29] sm:$0x1] 0.0
        %385 = vst [vmem:[#allocation3 + $0x41] sm:$0x1] 0.0
        %386 = vst [vmem:[#allocation3 + $0x59] sm:$0x1] 0.0
        %387 = vst [vmem:[#allocation3 + $0x71] sm:$0x1] 0.0
        %388 = vst [vmem:[#allocation3 + $0x89] sm:$0x1] 0.0
        %389 = vst [vmem:[#allocation3 + $0xa1] sm:$0x1] 0.0
        %390 = vst [vmem:[#allocation3 + $0xb9] sm:$0x1] 0.0
        %391 = vst [vmem:[#allocation3 + $0xd1] sm:$0x1] 0.0
        %392 = vst [vmem:[#allocation3 + $0xe9] sm:$0x1] 0.0
        %393 = vst [vmem:[#allocation3 + $0x101] sm:$0x1] 0.0
        %394 = vst [vmem:[#allocation3 + $0x119] sm:$0x1] 0.0
        %395 = vst [vmem:[#allocation3 + $0x131] sm:$0x1] 0.0
        %396 = vst [vmem:[#allocation3 + $0x149] sm:$0x1] 0.0
        %397 = vst [vmem:[#allocation3 + $0x161] sm:$0x1] 0.0
        %398 = vst [vmem:[#allocation3 + $0x179] sm:$0x1] 0.0
        %399 = vst [vmem:[#allocation3 + $0x191] sm:$0x1] 0.0
        %400 = vst [vmem:[#allocation3 + $0x1a9] sm:$0x1] 0.0
        %v401 = vld [vmem:[%s273] sm:$0xff]
        %v402 = vld [vmem:[%s273 + $0x8] sm:$0xff]
        %v403 = vld [vmem:[%s273 + $0x10] sm:$0xff]
        %v404 = vld [vmem:[%s273 + $0x18] sm:$0xff]
        %v405 = vld [vmem:[%s273 + $0x20] sm:$0xff]
        %v406 = vld [vmem:[%s273 + $0x28] sm:$0xff]
        %v407 = vld [vmem:[%s273 + $0x30] sm:$0xff]
        %v408 = vld [vmem:[%s273 + $0x38] sm:$0xff]
        %v409 = vld [vmem:[%s273 + $0x40] sm:$0xff]
        %v410 = vld [vmem:[%s273 + $0x48] sm:$0xff]
        %v411 = vld [vmem:[%s273 + $0x50] sm:$0xff]
        %v412 = vld [vmem:[%s273 + $0x58] sm:$0xff]
        %v413 = vld [vmem:[%s273 + $0x60] sm:$0xff]
        %v414 = vld [vmem:[%s273 + $0x68] sm:$0xff]
        %v415 = vld [vmem:[%s273 + $0x70] sm:$0xff]
        %v416 = vld [vmem:[%s273 + $0x78] sm:$0xff]
        %v417 = vld [vmem:[%s273 + $0x80] sm:$0xff]
        %v418 = vld [vmem:[%s273 + $0x88] sm:$0xff]
        %v419 = vld [vmem:[%s273 + $0x90] sm:$0xff]
        %v420 = vld [vmem:[%s273 + $0x98] sm:$0xff]
        %v421 = vld [vmem:[%s273 + $0xa0] sm:$0xff]
        %v422 = vld [vmem:[%s273 + $0xa8] sm:$0xff]
        %v423 = vld [vmem:[%s273 + $0xb0] sm:$0xff]
        %v424 = vld [vmem:[%s273 + $0xb8] sm:$0xff]
        %v425 = vld [vmem:[%s273 + $0xc0] sm:$0xff]
        %v426 = vld [vmem:[%s273 + $0xc8] sm:$0xff]
        %v427 = vld [vmem:[%s273 + $0xd0] sm:$0xff]
        %v428 = vld [vmem:[%s273 + $0xd8] sm:$0xff]
        %v429 = vld [vmem:[%s273 + $0xe0] sm:$0xff]
        %v430 = vld [vmem:[%s273 + $0xe8] sm:$0xff]
        %v431 = vld [vmem:[%s273 + $0xf0] sm:$0xff]
        %v432 = vld [vmem:[%s273 + $0xf8] sm:$0xff]
        %s433 = scalar_lea.vmem [#allocation2], 24
        %434 = vst [vmem:[%s433 + $0x1] sm:$0xff] %v401
        %435 = vst [vmem:[%s433 + $0x9] sm:$0xff] %v402
        %436 = vst [vmem:[%s433 + $0x19] sm:$0xff] %v403
        %437 = vst [vmem:[%s433 + $0x21] sm:$0xff] %v404
        %438 = vst [vmem:[%s433 + $0x31] sm:$0xff] %v405
        %439 = vst [vmem:[%s433 + $0x39] sm:$0xff] %v406
        %440 = vst [vmem:[%s433 + $0x49] sm:$0xff] %v407
        %441 = vst [vmem:[%s433 + $0x51] sm:$0xff] %v408
        %442 = vst [vmem:[%s433 + $0x61] sm:$0xff] %v409
        %443 = vst [vmem:[%s433 + $0x69] sm:$0xff] %v410
        %444 = vst [vmem:[%s433 + $0x79] sm:$0xff] %v411
        %445 = vst [vmem:[%s433 + $0x81] sm:$0xff] %v412
        %446 = vst [vmem:[%s433 + $0x91] sm:$0xff] %v413
        %447 = vst [vmem:[%s433 + $0x99] sm:$0xff] %v414
        %448 = vst [vmem:[%s433 + $0xa9] sm:$0xff] %v415
        %449 = vst [vmem:[%s433 + $0xb1] sm:$0xff] %v416
        %450 = vst [vmem:[%s433 + $0xc1] sm:$0xff] %v417
        %451 = vst [vmem:[%s433 + $0xc9] sm:$0xff] %v418
        %452 = vst [vmem:[%s433 + $0xd9] sm:$0xff] %v419
        %453 = vst [vmem:[%s433 + $0xe1] sm:$0xff] %v420
        %454 = vst [vmem:[%s433 + $0xf1] sm:$0xff] %v421
        %455 = vst [vmem:[%s433 + $0xf9] sm:$0xff] %v422
        %456 = vst [vmem:[%s433 + $0x109] sm:$0xff] %v423
        %457 = vst [vmem:[%s433 + $0x111] sm:$0xff] %v424
        %458 = vst [vmem:[%s433 + $0x121] sm:$0xff] %v425
        %459 = vst [vmem:[%s433 + $0x129] sm:$0xff] %v426
        %460 = vst [vmem:[%s433 + $0x139] sm:$0xff] %v427
        %461 = vst [vmem:[%s433 + $0x141] sm:$0xff] %v428
        %462 = vst [vmem:[%s433 + $0x151] sm:$0xff] %v429
        %463 = vst [vmem:[%s433 + $0x159] sm:$0xff] %v430
        %464 = vst [vmem:[%s433 + $0x169] sm:$0xff] %v431
        %465 = vst [vmem:[%s433 + $0x171] sm:$0xff] %v432
        %v466 = vld [vmem:[#allocation2] sm:$0xff]
        %v467 = vld [vmem:[#allocation2 + $0x8] sm:$0xff]
        %v468 = vld [vmem:[#allocation2 + $0x10] sm:$0x3]
        %v469 = vld [vmem:[#allocation2 + $0x18] sm:$0xff]
        %v470 = vld [vmem:[#allocation2 + $0x20] sm:$0xff]
        %v471 = vld [vmem:[#allocation2 + $0x28] sm:$0x3]
        %v472 = vld [vmem:[#allocation2 + $0x30] sm:$0xff]
        %v473 = vld [vmem:[#allocation2 + $0x38] sm:$0xff]
        %v474 = vld [vmem:[#allocation2 + $0x40] sm:$0x3]
        %v475 = vld [vmem:[#allocation2 + $0x48] sm:$0xff]
        %v476 = vld [vmem:[#allocation2 + $0x50] sm:$0xff]
        %v477 = vld [vmem:[#allocation2 + $0x58] sm:$0x3]
        %v478 = vld [vmem:[#allocation2 + $0x60] sm:$0xff]
        %v479 = vld [vmem:[#allocation2 + $0x68] sm:$0xff]
        %v480 = vld [vmem:[#allocation2 + $0x70] sm:$0x3]
        %v481 = vld [vmem:[#allocation2 + $0x78] sm:$0xff]
        %v482 = vld [vmem:[#allocation2 + $0x80] sm:$0xff]
        %v483 = vld [vmem:[#allocation2 + $0x88] sm:$0x3]
        %v484 = vld [vmem:[#allocation2 + $0x90] sm:$0xff]
        %v485 = vld [vmem:[#allocation2 + $0x98] sm:$0xff]
        %v486 = vld [vmem:[#allocation2 + $0xa0] sm:$0x3]
        %v487 = vld [vmem:[#allocation2 + $0xa8] sm:$0xff]
        %v488 = vld [vmem:[#allocation2 + $0xb0] sm:$0xff]
        %v489 = vld [vmem:[#allocation2 + $0xb8] sm:$0x3]
        %v490 = vld [vmem:[#allocation2 + $0xc0] sm:$0xff]
        %v491 = vld [vmem:[#allocation2 + $0xc8] sm:$0xff]
        %v492 = vld [vmem:[#allocation2 + $0xd0] sm:$0x3]
        %v493 = vld [vmem:[#allocation2 + $0xd8] sm:$0xff]
        %v494 = vld [vmem:[#allocation2 + $0xe0] sm:$0xff]
        %v495 = vld [vmem:[#allocation2 + $0xe8] sm:$0x3]
        %v496 = vld [vmem:[#allocation2 + $0xf0] sm:$0xff]
        %v497 = vld [vmem:[#allocation2 + $0xf8] sm:$0xff]
        %v498 = vld [vmem:[#allocation2 + $0x100] sm:$0x3]
        %v499 = vld [vmem:[#allocation2 + $0x108] sm:$0xff]
        %v500 = vld [vmem:[#allocation2 + $0x110] sm:$0xff]
        %v501 = vld [vmem:[#allocation2 + $0x118] sm:$0x3]
        %v502 = vld [vmem:[#allocation2 + $0x120] sm:$0xff]
        %v503 = vld [vmem:[#allocation2 + $0x128] sm:$0xff]
        %v504 = vld [vmem:[#allocation2 + $0x130] sm:$0x3]
        %v505 = vld [vmem:[#allocation2 + $0x138] sm:$0xff]
        %v506 = vld [vmem:[#allocation2 + $0x140] sm:$0xff]
        %v507 = vld [vmem:[#allocation2 + $0x148] sm:$0x3]
        %v508 = vld [vmem:[#allocation2 + $0x150] sm:$0xff]
        %v509 = vld [vmem:[#allocation2 + $0x158] sm:$0xff]
        %v510 = vld [vmem:[#allocation2 + $0x160] sm:$0x3]
        %v511 = vld [vmem:[#allocation2 + $0x168] sm:$0xff]
        %v512 = vld [vmem:[#allocation2 + $0x170] sm:$0xff]
        %v513 = vld [vmem:[#allocation2 + $0x178] sm:$0x3]
        %v514 = vld [vmem:[#allocation2 + $0x180] sm:$0xff]
        %v515 = vld [vmem:[#allocation2 + $0x188] sm:$0xff]
        %v516 = vld [vmem:[#allocation2 + $0x190] sm:$0x3]
        %v517 = vld [vmem:[#allocation2 + $0x198] sm:$0xff]
        %v518 = vld [vmem:[#allocation2 + $0x1a0] sm:$0xff]
        %v519 = vld [vmem:[#allocation2 + $0x1a8] sm:$0x3]
        %v520 = vpack.c.bf16 %v467, %v466
        %v521 = vpack.c.bf16 %v468, %v468
        %v522 = vpack.c.bf16 %v470, %v469
        %v523 = vpack.c.bf16 %v471, %v471
        %v524 = vpack.c.bf16 %v473, %v472
        %v525 = vpack.c.bf16 %v474, %v474
        %v526 = vpack.c.bf16 %v476, %v475
        %v527 = vpack.c.bf16 %v477, %v477
        %v528 = vpack.c.bf16 %v479, %v478
        %v529 = vpack.c.bf16 %v480, %v480
        %v530 = vpack.c.bf16 %v482, %v481
        %v531 = vpack.c.bf16 %v483, %v483
        %v532 = vpack.c.bf16 %v485, %v484
        %v533 = vpack.c.bf16 %v486, %v486
        %v534 = vpack.c.bf16 %v488, %v487
        %v535 = vpack.c.bf16 %v489, %v489
        %v536 = vpack.c.bf16 %v491, %v490
        %v537 = vpack.c.bf16 %v492, %v492
        %v538 = vpack.c.bf16 %v494, %v493
        %v539 = vpack.c.bf16 %v495, %v495
        %v540 = vpack.c.bf16 %v497, %v496
        %v541 = vpack.c.bf16 %v498, %v498
        %v542 = vpack.c.bf16 %v500, %v499
        %v543 = vpack.c.bf16 %v501, %v501
        %v544 = vpack.c.bf16 %v503, %v502
        %v545 = vpack.c.bf16 %v504, %v504
        %v546 = vpack.c.bf16 %v506, %v505
        %v547 = vpack.c.bf16 %v507, %v507
        %v548 = vpack.c.bf16 %v509, %v508
        %v549 = vpack.c.bf16 %v510, %v510
        %v550 = vpack.c.bf16 %v512, %v511
        %v551 = vpack.c.bf16 %v513, %v513
        %v552 = vpack.c.bf16 %v515, %v514
        %v553 = vpack.c.bf16 %v516, %v516
        %v554 = vpack.c.bf16 %v518, %v517
        %v555 = vpack.c.bf16 %v519, %v519
        %vm556 = vsmask.f32 7424
        %v558 = vshrl.u32 %v520, 16
        %v560 = vshll.u32 %v520, 16
        %v562 = vrot.slane %v560, 1
        %v563 = vor.u32 %v558, %v562
        %v565 = vshll.u32 %v521, 16
        %v567 = vrot.slane %v565, 1
        %v568 = vsel %vm556, %v563, %v567
        %v570 = vshrl.u32 %v522, 16
        %v572 = vshll.u32 %v522, 16
        %v574 = vrot.slane %v572, 1
        %v575 = vor.u32 %v570, %v574
        %v577 = vshll.u32 %v523, 16
        %v579 = vrot.slane %v577, 1
        %v580 = vsel %vm556, %v575, %v579
        %v582 = vshrl.u32 %v524, 16
        %v584 = vshll.u32 %v524, 16
        %v586 = vrot.slane %v584, 1
        %v587 = vor.u32 %v582, %v586
        %v589 = vshll.u32 %v525, 16
        %v591 = vrot.slane %v589, 1
        %v592 = vsel %vm556, %v587, %v591
        %v594 = vshrl.u32 %v526, 16
        %v596 = vshll.u32 %v526, 16
        %v598 = vrot.slane %v596, 1
        %v599 = vor.u32 %v594, %v598
        %v601 = vshll.u32 %v527, 16
        %v603 = vrot.slane %v601, 1
        %v604 = vsel %vm556, %v599, %v603
        %v606 = vshrl.u32 %v528, 16
        %v608 = vshll.u32 %v528, 16
        %v610 = vrot.slane %v608, 1
        %v611 = vor.u32 %v606, %v610
        %v613 = vshll.u32 %v529, 16
        %v615 = vrot.slane %v613, 1
        %v616 = vsel %vm556, %v611, %v615
        %v618 = vshrl.u32 %v530, 16
        %v620 = vshll.u32 %v530, 16
        %v622 = vrot.slane %v620, 1
        %v623 = vor.u32 %v618, %v622
        %v625 = vshll.u32 %v531, 16
        %v627 = vrot.slane %v625, 1
        %v628 = vsel %vm556, %v623, %v627
        %v630 = vshrl.u32 %v532, 16
        %v632 = vshll.u32 %v532, 16
        %v634 = vrot.slane %v632, 1
        %v635 = vor.u32 %v630, %v634
        %v637 = vshll.u32 %v533, 16
        %v639 = vrot.slane %v637, 1
        %v640 = vsel %vm556, %v635, %v639
        %v642 = vshrl.u32 %v534, 16
        %v644 = vshll.u32 %v534, 16
        %v646 = vrot.slane %v644, 1
        %v647 = vor.u32 %v642, %v646
        %v649 = vshll.u32 %v535, 16
        %v651 = vrot.slane %v649, 1
        %v652 = vsel %vm556, %v647, %v651
        %v654 = vshrl.u32 %v536, 16
        %v656 = vshll.u32 %v536, 16
        %v658 = vrot.slane %v656, 1
        %v659 = vor.u32 %v654, %v658
        %v661 = vshll.u32 %v537, 16
        %v663 = vrot.slane %v661, 1
        %v664 = vsel %vm556, %v659, %v663
        %v666 = vshrl.u32 %v538, 16
        %v668 = vshll.u32 %v538, 16
        %v670 = vrot.slane %v668, 1
        %v671 = vor.u32 %v666, %v670
        %v673 = vshll.u32 %v539, 16
        %v675 = vrot.slane %v673, 1
        %v676 = vsel %vm556, %v671, %v675
        %v678 = vshrl.u32 %v540, 16
        %v680 = vshll.u32 %v540, 16
        %v682 = vrot.slane %v680, 1
        %v683 = vor.u32 %v678, %v682
        %v685 = vshll.u32 %v541, 16
        %v687 = vrot.slane %v685, 1
        %v688 = vsel %vm556, %v683, %v687
        %v690 = vshrl.u32 %v542, 16
        %v692 = vshll.u32 %v542, 16
        %v694 = vrot.slane %v692, 1
        %v695 = vor.u32 %v690, %v694
        %v697 = vshll.u32 %v543, 16
        %v699 = vrot.slane %v697, 1
        %v700 = vsel %vm556, %v695, %v699
        %v702 = vshrl.u32 %v544, 16
        %v704 = vshll.u32 %v544, 16
        %v706 = vrot.slane %v704, 1
        %v707 = vor.u32 %v702, %v706
        %v709 = vshll.u32 %v545, 16
        %v711 = vrot.slane %v709, 1
        %v712 = vsel %vm556, %v707, %v711
        %v714 = vshrl.u32 %v546, 16
        %v716 = vshll.u32 %v546, 16
        %v718 = vrot.slane %v716, 1
        %v719 = vor.u32 %v714, %v718
        %v721 = vshll.u32 %v547, 16
        %v723 = vrot.slane %v721, 1
        %v724 = vsel %vm556, %v719, %v723
        %v726 = vshrl.u32 %v548, 16
        %v728 = vshll.u32 %v548, 16
        %v730 = vrot.slane %v728, 1
        %v731 = vor.u32 %v726, %v730
        %v733 = vshll.u32 %v549, 16
        %v735 = vrot.slane %v733, 1
        %v736 = vsel %vm556, %v731, %v735
        %v738 = vshrl.u32 %v550, 16
        %v740 = vshll.u32 %v550, 16
        %v742 = vrot.slane %v740, 1
        %v743 = vor.u32 %v738, %v742
        %v745 = vshll.u32 %v551, 16
        %v747 = vrot.slane %v745, 1
        %v748 = vsel %vm556, %v743, %v747
        %vm797 = vcmask 1046528
        %v798 = vrot.slane %v520, 1
        %v799 = vrot.slane %v521, 1
        %v800 = vsel %vm797, %v798, %v799
        %v801 = vrot.slane %v522, 1
        %v802 = vrot.slane %v523, 1
        %v803 = vsel %vm797, %v801, %v802
        %v804 = vrot.slane %v524, 1
        %v805 = vrot.slane %v525, 1
        %v806 = vsel %vm797, %v804, %v805
        %v807 = vrot.slane %v526, 1
        %v808 = vrot.slane %v527, 1
        %v809 = vsel %vm797, %v807, %v808
        %v810 = vrot.slane %v528, 1
        %v811 = vrot.slane %v529, 1
        %v812 = vsel %vm797, %v810, %v811
        %v813 = vrot.slane %v530, 1
        %v814 = vrot.slane %v531, 1
        %v815 = vsel %vm797, %v813, %v814
        %v816 = vrot.slane %v532, 1
        %v817 = vrot.slane %v533, 1
        %v818 = vsel %vm797, %v816, %v817
        %v819 = vrot.slane %v534, 1
        %v820 = vrot.slane %v535, 1
        %v821 = vsel %vm797, %v819, %v820
        %v822 = vrot.slane %v536, 1
        %v823 = vrot.slane %v537, 1
        %v824 = vsel %vm797, %v822, %v823
        %v825 = vrot.slane %v538, 1
        %v826 = vrot.slane %v539, 1
        %v827 = vsel %vm797, %v825, %v826
        %v828 = vrot.slane %v540, 1
        %v829 = vrot.slane %v541, 1
        %v830 = vsel %vm797, %v828, %v829
        %v831 = vrot.slane %v542, 1
        %v832 = vrot.slane %v543, 1
        %v833 = vsel %vm797, %v831, %v832
        %v834 = vrot.slane %v544, 1
        %v835 = vrot.slane %v545, 1
        %v836 = vsel %vm797, %v834, %v835
        %v837 = vrot.slane %v546, 1
        %v838 = vrot.slane %v547, 1
        %v839 = vsel %vm797, %v837, %v838
        %v840 = vrot.slane %v548, 1
        %v841 = vrot.slane %v549, 1
        %v842 = vsel %vm797, %v840, %v841
        %v843 = vrot.slane %v550, 1
        %v844 = vrot.slane %v551, 1
        %v845 = vsel %vm797, %v843, %v844
        %v863 = vshrl.u32 %v552, 16
        %v865 = vshll.u32 %v552, 16
        %v867 = vrot.slane %v865, 1
        %v868 = vor.u32 %v863, %v867
        %v870 = vshll.u32 %v553, 16
        %v872 = vrot.slane %v870, 1
        %v873 = vsel %vm556, %v868, %v872
        %v877 = vrot.slane %v552, 1
        %v878 = vrot.slane %v553, 1
        %v879 = vsel %vm797, %v877, %v878
        %v882 = vshrl.u32 %v554, 16
        %v884 = vshll.u32 %v554, 16
        %v886 = vrot.slane %v884, 1
        %v887 = vor.u32 %v882, %v886
        %v889 = vshll.u32 %v555, 16
        %v891 = vrot.slane %v889, 1
        %v892 = vsel %vm556, %v887, %v891
        %v896 = vrot.slane %v554, 1
        %v897 = vrot.slane %v555, 1
        %v898 = vsel %vm797, %v896, %v897
        %v900 = vld [vmem:[#allocation7] sm:$0xf]
        %v901 = vld [vmem:[#allocation7 + $0x4] sm:$0xf]
        %v902 = vld [vmem:[#allocation7 + $0x8] sm:$0xf]
        %v903 = vld [vmem:[#allocation7 + $0xc] sm:$0xf]
        %v904 = vld [vmem:[#allocation7 + $0x10] sm:$0xf]
        %v905 = vld [vmem:[#allocation7 + $0x14] sm:$0xf]
        %v906 = vld [vmem:[#allocation7 + $0x18] sm:$0xf]
        %v907 = vld [vmem:[#allocation7 + $0x1c] sm:$0xf]
        %v908 = vld [vmem:[#allocation7 + $0x20] sm:$0xf]
        %v909 = vld [vmem:[#allocation7 + $0x24] sm:$0xf]
        %v910 = vld [vmem:[#allocation7 + $0x28] sm:$0xf]
        %v911 = vld [vmem:[#allocation7 + $0x2c] sm:$0xf]
        %v912 = vld [vmem:[#allocation7 + $0x30] sm:$0xf]
        %v913 = vld [vmem:[#allocation7 + $0x34] sm:$0xf]
        %v914 = vld [vmem:[#allocation7 + $0x38] sm:$0xf]
        %v915 = vld [vmem:[#allocation7 + $0x3c] sm:$0xf]
        %v916 = vld [vmem:[#allocation7 + $0x40] sm:$0xf]
        %v917 = vld [vmem:[#allocation7 + $0x44] sm:$0xf]
        %v918 = vld [vmem:[#allocation7 + $0x48] sm:$0xf]
        %v919 = vld [vmem:[#allocation7 + $0x4c] sm:$0xf]
        %v920 = vld [vmem:[#allocation7 + $0x50] sm:$0xf]
        %v921 = vld [vmem:[#allocation7 + $0x54] sm:$0xf]
        %v922 = vld [vmem:[#allocation7 + $0x58] sm:$0xf]
        %v923 = vld [vmem:[#allocation7 + $0x5c] sm:$0xf]
        %v924 = vld [vmem:[#allocation7 + $0x60] sm:$0xf]
        %v925 = vld [vmem:[#allocation7 + $0x64] sm:$0xf]
        %v926 = vld [vmem:[#allocation7 + $0x68] sm:$0xf]
        %v927 = vld [vmem:[#allocation7 + $0x6c] sm:$0xf]
        %v928 = vld [vmem:[#allocation7 + $0x70] sm:$0xf]
        %v929 = vld [vmem:[#allocation7 + $0x74] sm:$0xf]
        %v930 = vld [vmem:[#allocation7 + $0x78] sm:$0xf]
        %v931 = vld [vmem:[#allocation7 + $0x7c] sm:$0xf]
        %v932 = vld [vmem:[#allocation7 + $0x80] sm:$0xf]
        %v933 = vld [vmem:[#allocation7 + $0x84] sm:$0xf]
        %v934 = vld [vmem:[#allocation7 + $0x88] sm:$0xf]
        %v935 = vld [vmem:[#allocation7 + $0x8c] sm:$0xf]
        %v936 = vld [vmem:[#allocation7 + $0x90] sm:$0xf]
        %v937 = vld [vmem:[#allocation7 + $0x94] sm:$0xf]
        %v938 = vld [vmem:[#allocation7 + $0x98] sm:$0xf]
        %v939 = vld [vmem:[#allocation7 + $0x9c] sm:$0xf]
        %v940 = vld [vmem:[#allocation7 + $0xa0] sm:$0xf]
        %v941 = vld [vmem:[#allocation7 + $0xa4] sm:$0xf]
        %v942 = vld [vmem:[#allocation7 + $0xa8] sm:$0xf]
        %v943 = vld [vmem:[#allocation7 + $0xac] sm:$0xf]
        %v944 = vld [vmem:[#allocation7 + $0xb0] sm:$0xf]
        %v945 = vld [vmem:[#allocation7 + $0xb4] sm:$0xf]
        %v946 = vld [vmem:[#allocation7 + $0xb8] sm:$0xf]
        %v947 = vld [vmem:[#allocation7 + $0xbc] sm:$0xf]
        %v948 = vld [vmem:[#allocation7 + $0xc0] sm:$0xf]
        %v949 = vld [vmem:[#allocation7 + $0xc4] sm:$0xf]
        %v950 = vld [vmem:[#allocation7 + $0xc8] sm:$0xf]
        %v951 = vld [vmem:[#allocation7 + $0xcc] sm:$0xf]
        %v952 = vld [vmem:[#allocation7 + $0xd0] sm:$0xf]
        %v953 = vld [vmem:[#allocation7 + $0xd4] sm:$0xf]
        %v954 = vld [vmem:[#allocation7 + $0xd8] sm:$0xf]
        %v955 = vld [vmem:[#allocation7 + $0xdc] sm:$0xf]
        %v956 = vld [vmem:[#allocation7 + $0xe0] sm:$0xf]
        %v957 = vld [vmem:[#allocation7 + $0xe4] sm:$0xf]
        %v958 = vld [vmem:[#allocation7 + $0xe8] sm:$0xf]
        %v959 = vld [vmem:[#allocation7 + $0xec] sm:$0xf]
        %v960 = vld [vmem:[#allocation7 + $0xf0] sm:$0xf]
        %v961 = vld [vmem:[#allocation7 + $0xf4] sm:$0xf]
        %v962 = vld [vmem:[#allocation7 + $0xf8] sm:$0xf]
        %v963 = vld [vmem:[#allocation7 + $0xfc] sm:$0xf]
        %v964 = vld [vmem:[#allocation7 + $0x100] sm:$0xf]
        %v965 = vld [vmem:[#allocation7 + $0x104] sm:$0xf]
        %v966 = vld [vmem:[#allocation7 + $0x108] sm:$0xf]
        %v967 = vld [vmem:[#allocation7 + $0x10c] sm:$0xf]
        %v968 = vld [vmem:[#allocation7 + $0x110] sm:$0xf]
        %v969 = vld [vmem:[#allocation7 + $0x114] sm:$0xf]
        %v970 = vld [vmem:[#allocation7 + $0x118] sm:$0xf]
        %v971 = vld [vmem:[#allocation7 + $0x11c] sm:$0xf]
        %v972 = vld [vmem:[#allocation7 + $0x120] sm:$0xf]
        %v973 = vld [vmem:[#allocation7 + $0x124] sm:$0xf]
        %v974 = vld [vmem:[#allocation7 + $0x128] sm:$0xf]
        %v975 = vld [vmem:[#allocation7 + $0x12c] sm:$0xf]
        %v976 = vld [vmem:[#allocation7 + $0x130] sm:$0xf]
        %v977 = vld [vmem:[#allocation7 + $0x134] sm:$0xf]
        %v978 = vld [vmem:[#allocation7 + $0x138] sm:$0xf]
        %v979 = vld [vmem:[#allocation7 + $0x13c] sm:$0xf]
        %v980 = vld [vmem:[#allocation7 + $0x140] sm:$0xf]
        %v981 = vld [vmem:[#allocation7 + $0x144] sm:$0xf]
        %v982 = vld [vmem:[#allocation7 + $0x148] sm:$0xf]
        %v983 = vld [vmem:[#allocation7 + $0x14c] sm:$0xf]
        %v984 = vld [vmem:[#allocation7 + $0x150] sm:$0xf]
        %v985 = vld [vmem:[#allocation7 + $0x154] sm:$0xf]
        %v986 = vld [vmem:[#allocation7 + $0x158] sm:$0xf]
        %v987 = vld [vmem:[#allocation7 + $0x15c] sm:$0xf]
        %v988 = vld [vmem:[#allocation7 + $0x160] sm:$0xf]
        %v989 = vld [vmem:[#allocation7 + $0x164] sm:$0xf]
        %v990 = vld [vmem:[#allocation7 + $0x168] sm:$0xf]
        %v991 = vld [vmem:[#allocation7 + $0x16c] sm:$0xf]
        %v992 = vld [vmem:[#allocation7 + $0x170] sm:$0xf]
        %v993 = vld [vmem:[#allocation7 + $0x174] sm:$0xf]
        %v994 = vld [vmem:[#allocation7 + $0x178] sm:$0xf]
        %v995 = vld [vmem:[#allocation7 + $0x17c] sm:$0xf]
        %v996 = vld [vmem:[#allocation7 + $0x180] sm:$0xf]
        %v997 = vld [vmem:[#allocation7 + $0x184] sm:$0xf]
        %v998 = vld [vmem:[#allocation7 + $0x188] sm:$0xf]
        %v999 = vld [vmem:[#allocation7 + $0x18c] sm:$0xf]
        %v1000 = vld [vmem:[#allocation7 + $0x190] sm:$0xf]
        %v1001 = vld [vmem:[#allocation7 + $0x194] sm:$0xf]
        %v1002 = vld [vmem:[#allocation7 + $0x198] sm:$0xf]
        %v1003 = vld [vmem:[#allocation7 + $0x19c] sm:$0xf]
        %v1004 = vld [vmem:[#allocation7 + $0x1a0] sm:$0xf]
        %v1005 = vld [vmem:[#allocation7 + $0x1a4] sm:$0xf]
        %v1006 = vld [vmem:[#allocation7 + $0x1a8] sm:$0xf]
        %v1007 = vld [vmem:[#allocation7 + $0x1ac] sm:$0xf]
        %v1008 = vld [vmem:[#allocation7 + $0x1b0] sm:$0xf]
        %v1009 = vld [vmem:[#allocation7 + $0x1b4] sm:$0xf]
        %v1010 = vld [vmem:[#allocation7 + $0x1b8] sm:$0xf]
        %v1011 = vld [vmem:[#allocation7 + $0x1bc] sm:$0xf]
        %v1012 = vld [vmem:[#allocation7 + $0x1c0] sm:$0xf]
        %v1013 = vld [vmem:[#allocation7 + $0x1c4] sm:$0xf]
        %v1014 = vld [vmem:[#allocation7 + $0x1c8] sm:$0xf]
        %v1015 = vld [vmem:[#allocation7 + $0x1cc] sm:$0xf]
        %v1016 = vld [vmem:[#allocation7 + $0x1d0] sm:$0xf]
        %v1017 = vld [vmem:[#allocation7 + $0x1d4] sm:$0xf]
        %v1018 = vld [vmem:[#allocation7 + $0x1d8] sm:$0xf]
        %v1019 = vld [vmem:[#allocation7 + $0x1dc] sm:$0xf]
        %v1020 = vld [vmem:[#allocation7 + $0x1e0] sm:$0xf]
        %v1021 = vld [vmem:[#allocation7 + $0x1e4] sm:$0xf]
        %v1022 = vld [vmem:[#allocation7 + $0x1e8] sm:$0xf]
        %v1023 = vld [vmem:[#allocation7 + $0x1ec] sm:$0xf]
        %v1024 = vld [vmem:[#allocation7 + $0x1f0] sm:$0xf]
        %v1025 = vld [vmem:[#allocation7 + $0x1f4] sm:$0xf]
        %v1026 = vld [vmem:[#allocation7 + $0x1f8] sm:$0xf]
        %v1027 = vld [vmem:[#allocation7 + $0x1fc] sm:$0xf]
        %v1028 = vld [vmem:[#allocation7 + $0x200] sm:$0xf]
        %v1029 = vld [vmem:[#allocation7 + $0x204] sm:$0xf]
        %v1030 = vld [vmem:[#allocation7 + $0x208] sm:$0xf]
        %v1031 = vld [vmem:[#allocation7 + $0x20c] sm:$0xf]
        %v1032 = vld [vmem:[#allocation7 + $0x210] sm:$0xf]
        %v1033 = vld [vmem:[#allocation7 + $0x214] sm:$0xf]
        %v1034 = vld [vmem:[#allocation7 + $0x218] sm:$0xf]
        %v1035 = vld [vmem:[#allocation7 + $0x21c] sm:$0xf]
        %v1036 = vld [vmem:[#allocation7 + $0x220] sm:$0xf]
        %v1037 = vld [vmem:[#allocation7 + $0x224] sm:$0xf]
        %v1038 = vld [vmem:[#allocation7 + $0x228] sm:$0xf]
        %v1039 = vld [vmem:[#allocation7 + $0x22c] sm:$0xf]
        %v1040 = vld [vmem:[#allocation7 + $0x230] sm:$0xf]
        %v1041 = vld [vmem:[#allocation7 + $0x234] sm:$0xf]
        %v1042 = vld [vmem:[#allocation7 + $0x238] sm:$0xf]
        %v1043 = vld [vmem:[#allocation7 + $0x23c] sm:$0xf]
        %v1044 = vld [vmem:[%s2] sm:$0x1]
        %v1046 = vlaneseq
        %v1047 = vshrl.u32 %v1046, 7
        %v1048 = vsub.s32 0, %v1047
        %v1049 = vrot.slane %v1044, %v1048
        %v1195 = vunpack.c.l.b16 %v900
        %v1196 = vunpack.c.l.b16 %v901
        %v1197 = vunpack.c.l.b16 %v902
        %v1198 = vunpack.c.l.b16 %v903
        %v1199 = vunpack.c.l.b16 %v904
        %v1200 = vunpack.c.l.b16 %v905
        %v1201 = vunpack.c.l.b16 %v906
        %v1202 = vunpack.c.l.b16 %v907
        %v1203 = vunpack.c.l.b16 %v908
        %v1204 = vunpack.c.l.b16 %v909
        %v1205 = vunpack.c.l.b16 %v910
        %v1206 = vunpack.c.l.b16 %v911
        %v1207 = vunpack.c.l.b16 %v912
        %v1208 = vunpack.c.l.b16 %v913
        %v1209 = vunpack.c.l.b16 %v914
        %v1210 = vunpack.c.l.b16 %v915
        %v1211 = vunpack.c.l.b16 %v916
        %v1212 = vunpack.c.l.b16 %v917
        %v1213 = vunpack.c.l.b16 %v918
        %v1214 = vunpack.c.l.b16 %v919
        %v1215 = vunpack.c.l.b16 %v920
        %v1216 = vunpack.c.l.b16 %v921
        %v1217 = vunpack.c.l.b16 %v922
        %v1218 = vunpack.c.l.b16 %v923
        %v1219 = vunpack.c.l.b16 %v924
        %v1220 = vunpack.c.l.b16 %v925
        %v1221 = vunpack.c.l.b16 %v926
        %v1222 = vunpack.c.l.b16 %v927
        %v1223 = vunpack.c.l.b16 %v928
        %v1224 = vunpack.c.l.b16 %v929
        %v1225 = vunpack.c.l.b16 %v930
        %v1226 = vunpack.c.l.b16 %v931
        %v1227 = vunpack.c.l.b16 %v932
        %v1228 = vunpack.c.l.b16 %v933
        %v1229 = vunpack.c.l.b16 %v934
        %v1230 = vunpack.c.l.b16 %v935
        %v1231 = vunpack.c.l.b16 %v936
        %v1232 = vunpack.c.l.b16 %v937
        %v1233 = vunpack.c.l.b16 %v938
        %v1234 = vunpack.c.l.b16 %v939
        %v1235 = vunpack.c.l.b16 %v940
        %v1236 = vunpack.c.l.b16 %v941
        %v1237 = vunpack.c.l.b16 %v942
        %v1238 = vunpack.c.l.b16 %v943
        %v1239 = vunpack.c.l.b16 %v944
        %v1240 = vunpack.c.l.b16 %v945
        %v1241 = vunpack.c.l.b16 %v946
        %v1242 = vunpack.c.l.b16 %v947
        %v1243 = vunpack.c.l.b16 %v948
        %v1244 = vunpack.c.l.b16 %v949
        %v1245 = vunpack.c.l.b16 %v950
        %v1246 = vunpack.c.l.b16 %v951
        %v1247 = vunpack.c.l.b16 %v952
        %v1248 = vunpack.c.l.b16 %v953
        %v1249 = vunpack.c.l.b16 %v954
        %v1250 = vunpack.c.l.b16 %v955
        %v1251 = vunpack.c.l.b16 %v956
        %v1252 = vunpack.c.l.b16 %v957
        %v1253 = vunpack.c.l.b16 %v958
        %v1254 = vunpack.c.l.b16 %v959
        %v1255 = vunpack.c.l.b16 %v960
        %v1256 = vunpack.c.l.b16 %v961
        %v1257 = vunpack.c.l.b16 %v962
        %v1258 = vunpack.c.l.b16 %v963
        %v1259 = vunpack.c.l.b16 %v964
        %v1260 = vunpack.c.l.b16 %v965
        %v1261 = vunpack.c.l.b16 %v966
        %v1262 = vunpack.c.l.b16 %v967
        %v1263 = vunpack.c.l.b16 %v968
        %v1264 = vunpack.c.l.b16 %v969
        %v1265 = vunpack.c.l.b16 %v970
        %v1266 = vunpack.c.l.b16 %v971
        %v1267 = vunpack.c.l.b16 %v972
        %v1268 = vunpack.c.l.b16 %v973
        %v1269 = vunpack.c.l.b16 %v974
        %v1270 = vunpack.c.l.b16 %v975
        %v1271 = vunpack.c.l.b16 %v976
        %v1272 = vunpack.c.l.b16 %v977
        %v1273 = vunpack.c.l.b16 %v978
        %v1274 = vunpack.c.l.b16 %v979
        %v1275 = vunpack.c.l.b16 %v980
        %v1276 = vunpack.c.l.b16 %v981
        %v1277 = vunpack.c.l.b16 %v982
        %v1278 = vunpack.c.l.b16 %v983
        %v1279 = vunpack.c.l.b16 %v984
        %v1280 = vunpack.c.l.b16 %v985
        %v1281 = vunpack.c.l.b16 %v986
        %v1282 = vunpack.c.l.b16 %v987
        %v1283 = vunpack.c.l.b16 %v988
        %v1284 = vunpack.c.l.b16 %v989
        %v1285 = vunpack.c.l.b16 %v990
        %v1286 = vunpack.c.l.b16 %v991
        %v1287 = vunpack.c.l.b16 %v992
        %v1288 = vunpack.c.l.b16 %v993
        %v1289 = vunpack.c.l.b16 %v994
        %v1290 = vunpack.c.l.b16 %v995
        %v1291 = vunpack.c.l.b16 %v996
        %v1292 = vunpack.c.l.b16 %v997
        %v1293 = vunpack.c.l.b16 %v998
        %v1294 = vunpack.c.l.b16 %v999
        %v1295 = vunpack.c.l.b16 %v1000
        %v1296 = vunpack.c.l.b16 %v1001
        %v1297 = vunpack.c.l.b16 %v1002
        %v1298 = vunpack.c.l.b16 %v1003
        %v1299 = vunpack.c.l.b16 %v1004
        %v1300 = vunpack.c.l.b16 %v1005
        %v1301 = vunpack.c.l.b16 %v1006
        %v1302 = vunpack.c.l.b16 %v1007
        %v1303 = vunpack.c.l.b16 %v1008
        %v1304 = vunpack.c.l.b16 %v1009
        %v1305 = vunpack.c.l.b16 %v1010
        %v1306 = vunpack.c.l.b16 %v1011
        %v1307 = vunpack.c.l.b16 %v1012
        %v1308 = vunpack.c.l.b16 %v1013
        %v1309 = vunpack.c.l.b16 %v1014
        %v1310 = vunpack.c.l.b16 %v1015
        %v1311 = vunpack.c.l.b16 %v1016
        %v1312 = vunpack.c.l.b16 %v1017
        %v1313 = vunpack.c.l.b16 %v1018
        %v1314 = vunpack.c.l.b16 %v1019
        %v1315 = vunpack.c.l.b16 %v1020
        %v1316 = vunpack.c.l.b16 %v1021
        %v1317 = vunpack.c.l.b16 %v1022
        %v1318 = vunpack.c.l.b16 %v1023
        %v1319 = vunpack.c.l.b16 %v1024
        %v1320 = vunpack.c.l.b16 %v1025
        %v1321 = vunpack.c.l.b16 %v1026
        %v1322 = vunpack.c.l.b16 %v1027
        %v1323 = vunpack.c.l.b16 %v1028
        %v1324 = vunpack.c.l.b16 %v1029
        %v1325 = vunpack.c.l.b16 %v1030
        %v1326 = vunpack.c.l.b16 %v1031
        %v1327 = vunpack.c.l.b16 %v1032
        %v1328 = vunpack.c.l.b16 %v1033
        %v1329 = vunpack.c.l.b16 %v1034
        %v1330 = vunpack.c.l.b16 %v1035
        %v1331 = vunpack.c.l.b16 %v1036
        %v1332 = vunpack.c.l.b16 %v1037
        %v1333 = vunpack.c.l.b16 %v1038
        %v1334 = vunpack.c.l.b16 %v1039
        %v1335 = vunpack.c.l.b16 %v1040
        %v1336 = vunpack.c.l.b16 %v1041
        %v1337 = vunpack.c.l.b16 %v1042
        %v1338 = vunpack.c.l.b16 %v1043
        %v1339 = vpack.c.b16 %v1196, %v1195
        %v1340 = vpack.c.b16 %v1198, %v1197
        %v1341 = vpack.c.b16 %v1200, %v1199
        %v1342 = vpack.c.b16 %v1202, %v1201
        %v1343 = vpack.c.b16 %v1204, %v1203
        %v1344 = vpack.c.b16 %v1206, %v1205
        %v1345 = vpack.c.b16 %v1208, %v1207
        %v1346 = vpack.c.b16 %v1210, %v1209
        %v1347 = vpack.c.b16 %v1212, %v1211
        %v1348 = vpack.c.b16 %v1214, %v1213
        %v1349 = vpack.c.b16 %v1216, %v1215
        %v1350 = vpack.c.b16 %v1218, %v1217
        %v1351 = vpack.c.b16 %v1220, %v1219
        %v1352 = vpack.c.b16 %v1222, %v1221
        %v1353 = vpack.c.b16 %v1224, %v1223
        %v1354 = vpack.c.b16 %v1226, %v1225
        %v1355 = vpack.c.b16 %v1228, %v1227
        %v1356 = vpack.c.b16 %v1230, %v1229
        %v1357 = vpack.c.b16 %v1232, %v1231
        %v1358 = vpack.c.b16 %v1234, %v1233
        %v1359 = vpack.c.b16 %v1236, %v1235
        %v1360 = vpack.c.b16 %v1238, %v1237
        %v1361 = vpack.c.b16 %v1240, %v1239
        %v1362 = vpack.c.b16 %v1242, %v1241
        %v1363 = vpack.c.b16 %v1244, %v1243
        %v1364 = vpack.c.b16 %v1246, %v1245
        %v1365 = vpack.c.b16 %v1248, %v1247
        %v1366 = vpack.c.b16 %v1250, %v1249
        %v1367 = vpack.c.b16 %v1252, %v1251
        %v1368 = vpack.c.b16 %v1254, %v1253
        %v1369 = vpack.c.b16 %v1256, %v1255
        %v1370 = vpack.c.b16 %v1258, %v1257
        %v1371 = vpack.c.b16 %v1260, %v1259
        %v1372 = vpack.c.b16 %v1262, %v1261
        %v1373 = vpack.c.b16 %v1264, %v1263
        %v1374 = vpack.c.b16 %v1266, %v1265
        %v1375 = vpack.c.b16 %v1268, %v1267
        %v1376 = vpack.c.b16 %v1270, %v1269
        %v1377 = vpack.c.b16 %v1272, %v1271
        %v1378 = vpack.c.b16 %v1274, %v1273
        %v1379 = vpack.c.b16 %v1276, %v1275
        %v1380 = vpack.c.b16 %v1278, %v1277
        %v1381 = vpack.c.b16 %v1280, %v1279
        %v1382 = vpack.c.b16 %v1282, %v1281
        %v1383 = vpack.c.b16 %v1284, %v1283
        %v1384 = vpack.c.b16 %v1286, %v1285
        %v1385 = vpack.c.b16 %v1288, %v1287
        %v1386 = vpack.c.b16 %v1290, %v1289
        %v1387 = vpack.c.b16 %v1292, %v1291
        %v1388 = vpack.c.b16 %v1294, %v1293
        %v1389 = vpack.c.b16 %v1296, %v1295
        %v1390 = vpack.c.b16 %v1298, %v1297
        %v1391 = vpack.c.b16 %v1300, %v1299
        %v1392 = vpack.c.b16 %v1302, %v1301
        %v1393 = vpack.c.b16 %v1304, %v1303
        %v1394 = vpack.c.b16 %v1306, %v1305
        %v1395 = vpack.c.b16 %v1308, %v1307
        %v1396 = vpack.c.b16 %v1310, %v1309
        %v1397 = vpack.c.b16 %v1312, %v1311
        %v1398 = vpack.c.b16 %v1314, %v1313
        %v1399 = vpack.c.b16 %v1316, %v1315
        %v1400 = vpack.c.b16 %v1318, %v1317
        %v1401 = vpack.c.b16 %v1320, %v1319
        %v1402 = vpack.c.b16 %v1322, %v1321
        %v1403 = vpack.c.b16 %v1324, %v1323
        %v1404 = vpack.c.b16 %v1326, %v1325
        %v1405 = vpack.c.b16 %v1328, %v1327
        %v1406 = vpack.c.b16 %v1330, %v1329
        %v1407 = vpack.c.b16 %v1332, %v1331
        %v1408 = vpack.c.b16 %v1334, %v1333
        %v1409 = vpack.c.b16 %v1336, %v1335
        %v1410 = vpack.c.b16 %v1338, %v1337
        %1483 = vmatprep.subr.bf16.mxu0 0
        %1484 = vmatpush1.bf16.msra.mxu0 %v1346
        %1485 = vmatprep.subr.bf16.mxu0 0
        %1486 = vmatpush1.bf16.msra.mxu0 %v1345
        %1487 = vmatprep.subr.bf16.mxu0 0
        %1488 = vmatpush1.bf16.msra.mxu0 %v1344
        %1489 = vmatprep.subr.bf16.mxu0 0
        %1490 = vmatpush1.bf16.msra.mxu0 %v1343
        %1491 = vmatprep.subr.bf16.mxu0 0
        %1492 = vmatpush1.bf16.msra.mxu0 %v1342
        %1493 = vmatprep.subr.bf16.mxu0 0
        %1494 = vmatpush1.bf16.msra.mxu0 %v1341
        %1495 = vmatprep.subr.bf16.mxu0 0
        %1496 = vmatpush1.bf16.msra.mxu0 %v1340
        %1497 = vmatprep.subr.bf16.mxu0 0
        %1498 = vmatpush1.bf16.msra.mxu0 %v1339
        %1499 = vmatprep.subr.bf16.mxu0 0
        %1500 = vmatpush2.bf16.msra.mxu0 %v1354
        %1501 = vmatprep.subr.bf16.mxu0 0
        %1502 = vmatpush2.bf16.msra.mxu0 %v1353
        %1503 = vmatprep.subr.bf16.mxu0 0
        %1504 = vmatpush2.bf16.msra.mxu0 %v1352
        %1505 = vmatprep.subr.bf16.mxu0 0
        %1506 = vmatpush2.bf16.msra.mxu0 %v1351
        %1507 = vmatprep.subr.bf16.mxu0 0
        %1508 = vmatpush2.bf16.msra.mxu0 %v1350
        %1509 = vmatprep.subr.bf16.mxu0 0
        %1510 = vmatpush2.bf16.msra.mxu0 %v1349
        %1511 = vmatprep.subr.bf16.mxu0 0
        %1512 = vmatpush2.bf16.msra.mxu0 %v1348
        %1513 = vmatprep.subr.bf16.mxu0 0
        %1514 = vmatpush2.bf16.msra.mxu0 %v1347
        %1515 = vmatprep.mubr.bf16.mxu0 %v568
        %1516 = vmatmul.mubr.bf16.gmra.mxu0 %v520
        %v1517 = vpop.f32.mrf.mxu0
        %v1518 = vadd.f32 %v1049, %v1517
        %v1519 = vpop.f32.mrf.mxu0
        %v1520 = vpop.f32.mrf.mxu0
        %v1521 = vadd.f32 %v1049, %v1520
        %v1522 = vpop.f32.mrf.mxu0
        %1523 = vmatprep.mubr.bf16.mxu0 %v580
        %1524 = vmatmul.mubr.bf16.gmra.mxu0 %v522
        %v1525 = vpop.f32.mrf.mxu0
        %v1526 = vadd.f32 %v1049, %v1525
        %v1527 = vpop.f32.mrf.mxu0
        %v1528 = vpop.f32.mrf.mxu0
        %v1529 = vadd.f32 %v1049, %v1528
        %v1530 = vpop.f32.mrf.mxu0
        %1531 = vmatprep.mubr.bf16.mxu0 %v592
        %1532 = vmatmul.mubr.bf16.gmra.mxu0 %v524
        %v1533 = vpop.f32.mrf.mxu0
        %v1534 = vadd.f32 %v1049, %v1533
        %v1535 = vpop.f32.mrf.mxu0
        %v1536 = vpop.f32.mrf.mxu0
        %v1537 = vadd.f32 %v1049, %v1536
        %v1538 = vpop.f32.mrf.mxu0
        %1539 = vmatprep.mubr.bf16.mxu0 %v604
        %1540 = vmatmul.mubr.bf16.gmra.mxu0 %v526
        %v1541 = vpop.f32.mrf.mxu0
        %v1542 = vadd.f32 %v1049, %v1541
        %v1543 = vpop.f32.mrf.mxu0
        %v1544 = vpop.f32.mrf.mxu0
        %v1545 = vadd.f32 %v1049, %v1544
        %v1546 = vpop.f32.mrf.mxu0
        %1547 = vmatprep.mubr.bf16.mxu0 %v616
        %1548 = vmatmul.mubr.bf16.gmra.mxu0 %v528
        %v1549 = vpop.f32.mrf.mxu0
        %v1550 = vadd.f32 %v1049, %v1549
        %v1551 = vpop.f32.mrf.mxu0
        %v1552 = vpop.f32.mrf.mxu0
        %v1553 = vadd.f32 %v1049, %v1552
        %v1554 = vpop.f32.mrf.mxu0
        %1555 = vmatprep.mubr.bf16.mxu0 %v628
        %1556 = vmatmul.mubr.bf16.gmra.mxu0 %v530
        %v1557 = vpop.f32.mrf.mxu0
        %v1558 = vadd.f32 %v1049, %v1557
        %v1559 = vpop.f32.mrf.mxu0
        %v1560 = vpop.f32.mrf.mxu0
        %v1561 = vadd.f32 %v1049, %v1560
        %v1562 = vpop.f32.mrf.mxu0
        %1563 = vmatprep.mubr.bf16.mxu0 %v640
        %1564 = vmatmul.mubr.bf16.gmra.mxu0 %v532
        %v1565 = vpop.f32.mrf.mxu0
        %v1566 = vadd.f32 %v1049, %v1565
        %v1567 = vpop.f32.mrf.mxu0
        %v1568 = vpop.f32.mrf.mxu0
        %v1569 = vadd.f32 %v1049, %v1568
        %v1570 = vpop.f32.mrf.mxu0
        %1571 = vmatprep.mubr.bf16.mxu0 %v652
        %1572 = vmatmul.mubr.bf16.gmra.mxu0 %v534
        %v1573 = vpop.f32.mrf.mxu0
        %v1574 = vadd.f32 %v1049, %v1573
        %v1575 = vpop.f32.mrf.mxu0
        %v1576 = vpop.f32.mrf.mxu0
        %v1577 = vadd.f32 %v1049, %v1576
        %v1578 = vpop.f32.mrf.mxu0
        %1579 = vmatprep.mubr.bf16.mxu0 %v664
        %1580 = vmatmul.mubr.bf16.gmra.mxu0 %v536
        %v1581 = vpop.f32.mrf.mxu0
        %v1582 = vadd.f32 %v1049, %v1581
        %v1583 = vpop.f32.mrf.mxu0
        %v1584 = vpop.f32.mrf.mxu0
        %v1585 = vadd.f32 %v1049, %v1584
        %v1586 = vpop.f32.mrf.mxu0
        %1587 = vmatprep.mubr.bf16.mxu0 %v676
        %1588 = vmatmul.mubr.bf16.gmra.mxu0 %v538
        %v1589 = vpop.f32.mrf.mxu0
        %v1590 = vadd.f32 %v1049, %v1589
        %v1591 = vpop.f32.mrf.mxu0
        %v1592 = vpop.f32.mrf.mxu0
        %v1593 = vadd.f32 %v1049, %v1592
        %v1594 = vpop.f32.mrf.mxu0
        %1595 = vmatprep.mubr.bf16.mxu0 %v688
        %1596 = vmatmul.mubr.bf16.gmra.mxu0 %v540
        %v1597 = vpop.f32.mrf.mxu0
        %v1598 = vadd.f32 %v1049, %v1597
        %v1599 = vpop.f32.mrf.mxu0
        %v1600 = vpop.f32.mrf.mxu0
        %v1601 = vadd.f32 %v1049, %v1600
        %v1602 = vpop.f32.mrf.mxu0
        %1603 = vmatprep.mubr.bf16.mxu0 %v700
        %1604 = vmatmul.mubr.bf16.gmra.mxu0 %v542
        %v1605 = vpop.f32.mrf.mxu0
        %v1606 = vadd.f32 %v1049, %v1605
        %v1607 = vpop.f32.mrf.mxu0
        %v1608 = vpop.f32.mrf.mxu0
        %v1609 = vadd.f32 %v1049, %v1608
        %v1610 = vpop.f32.mrf.mxu0
        %1611 = vmatprep.mubr.bf16.mxu0 %v712
        %1612 = vmatmul.mubr.bf16.gmra.mxu0 %v544
        %v1613 = vpop.f32.mrf.mxu0
        %v1614 = vadd.f32 %v1049, %v1613
        %v1615 = vpop.f32.mrf.mxu0
        %v1616 = vpop.f32.mrf.mxu0
        %v1617 = vadd.f32 %v1049, %v1616
        %v1618 = vpop.f32.mrf.mxu0
        %1619 = vmatprep.mubr.bf16.mxu0 %v724
        %1620 = vmatmul.mubr.bf16.gmra.mxu0 %v546
        %v1621 = vpop.f32.mrf.mxu0
        %v1622 = vadd.f32 %v1049, %v1621
        %v1623 = vpop.f32.mrf.mxu0
        %v1624 = vpop.f32.mrf.mxu0
        %v1625 = vadd.f32 %v1049, %v1624
        %v1626 = vpop.f32.mrf.mxu0
        %1627 = vmatprep.mubr.bf16.mxu0 %v736
        %1628 = vmatmul.mubr.bf16.gmra.mxu0 %v548
        %v1629 = vpop.f32.mrf.mxu0
        %v1630 = vadd.f32 %v1049, %v1629
        %v1631 = vpop.f32.mrf.mxu0
        %v1632 = vpop.f32.mrf.mxu0
        %v1633 = vadd.f32 %v1049, %v1632
        %v1634 = vpop.f32.mrf.mxu0
        %1635 = vmatprep.mubr.bf16.mxu0 %v748
        %1636 = vmatmul.mubr.bf16.gmra.mxu0 %v550
        %v1637 = vpop.f32.mrf.mxu0
        %v1638 = vadd.f32 %v1049, %v1637
        %v1639 = vpop.f32.mrf.mxu0
        %v1640 = vpop.f32.mrf.mxu0
        %v1641 = vadd.f32 %v1049, %v1640
        %v1642 = vpop.f32.mrf.mxu0
        %1643 = vdwg.mxu0
        %1644 = vmatprep.subr.bf16.mxu0 0
        %1645 = vmatpush1.bf16.msra.mxu0 %v1362
        %1646 = vmatprep.subr.bf16.mxu0 0
        %1647 = vmatpush1.bf16.msra.mxu0 %v1361
        %1648 = vmatprep.subr.bf16.mxu0 0
        %1649 = vmatpush1.bf16.msra.mxu0 %v1360
        %1650 = vmatprep.subr.bf16.mxu0 0
        %1651 = vmatpush1.bf16.msra.mxu0 %v1359
        %1652 = vmatprep.subr.bf16.mxu0 0
        %1653 = vmatpush1.bf16.msra.mxu0 %v1358
        %1654 = vmatprep.subr.bf16.mxu0 0
        %1655 = vmatpush1.bf16.msra.mxu0 %v1357
        %1656 = vmatprep.subr.bf16.mxu0 0
        %1657 = vmatpush1.bf16.msra.mxu0 %v1356
        %1658 = vmatprep.subr.bf16.mxu0 0
        %1659 = vmatpush1.bf16.msra.mxu0 %v1355
        %1660 = vmatprep.subr.bf16.mxu0 0
        %1661 = vmatpush2.bf16.msra.mxu0 %v1370
        %1662 = vmatprep.subr.bf16.mxu0 0
        %1663 = vmatpush2.bf16.msra.mxu0 %v1369
        %1664 = vmatprep.subr.bf16.mxu0 0
        %1665 = vmatpush2.bf16.msra.mxu0 %v1368
        %1666 = vmatprep.subr.bf16.mxu0 0
        %1667 = vmatpush2.bf16.msra.mxu0 %v1367
        %1668 = vmatprep.subr.bf16.mxu0 0
        %1669 = vmatpush2.bf16.msra.mxu0 %v1366
        %1670 = vmatprep.subr.bf16.mxu0 0
        %1671 = vmatpush2.bf16.msra.mxu0 %v1365
        %1672 = vmatprep.subr.bf16.mxu0 0
        %1673 = vmatpush2.bf16.msra.mxu0 %v1364
        %1674 = vmatprep.subr.bf16.mxu0 0
        %1675 = vmatpush2.bf16.msra.mxu0 %v1363
        %1676 = vmatprep.mubr.bf16.mxu0 %v522
        %1677 = vmatmul.mubr.bf16.gmra.mxu0 %v800
        %v1678 = vpop.f32.mrf.mxu0
        %v1679 = vadd.f32 %v1518, %v1678
        %v1680 = vpop.f32.mrf.mxu0
        %v1681 = vpop.f32.mrf.mxu0
        %v1682 = vadd.f32 %v1521, %v1681
        %v1683 = vpop.f32.mrf.mxu0
        %1684 = vmatprep.mubr.bf16.mxu0 %v524
        %1685 = vmatmul.mubr.bf16.gmra.mxu0 %v803
        %v1686 = vpop.f32.mrf.mxu0
        %v1687 = vadd.f32 %v1526, %v1686
        %v1688 = vpop.f32.mrf.mxu0
        %v1689 = vpop.f32.mrf.mxu0
        %v1690 = vadd.f32 %v1529, %v1689
        %v1691 = vpop.f32.mrf.mxu0
        %1692 = vmatprep.mubr.bf16.mxu0 %v526
        %1693 = vmatmul.mubr.bf16.gmra.mxu0 %v806
        %v1694 = vpop.f32.mrf.mxu0
        %v1695 = vadd.f32 %v1534, %v1694
        %v1696 = vpop.f32.mrf.mxu0
        %v1697 = vpop.f32.mrf.mxu0
        %v1698 = vadd.f32 %v1537, %v1697
        %v1699 = vpop.f32.mrf.mxu0
        %1700 = vmatprep.mubr.bf16.mxu0 %v528
        %1701 = vmatmul.mubr.bf16.gmra.mxu0 %v809
        %v1702 = vpop.f32.mrf.mxu0
        %v1703 = vadd.f32 %v1542, %v1702
        %v1704 = vpop.f32.mrf.mxu0
        %v1705 = vpop.f32.mrf.mxu0
        %v1706 = vadd.f32 %v1545, %v1705
        %v1707 = vpop.f32.mrf.mxu0
        %1708 = vmatprep.mubr.bf16.mxu0 %v530
        %1709 = vmatmul.mubr.bf16.gmra.mxu0 %v812
        %v1710 = vpop.f32.mrf.mxu0
        %v1711 = vadd.f32 %v1550, %v1710
        %v1712 = vpop.f32.mrf.mxu0
        %v1713 = vpop.f32.mrf.mxu0
        %v1714 = vadd.f32 %v1553, %v1713
        %v1715 = vpop.f32.mrf.mxu0
        %1716 = vmatprep.mubr.bf16.mxu0 %v532
        %1717 = vmatmul.mubr.bf16.gmra.mxu0 %v815
        %v1718 = vpop.f32.mrf.mxu0
        %v1719 = vadd.f32 %v1558, %v1718
        %v1720 = vpop.f32.mrf.mxu0
        %v1721 = vpop.f32.mrf.mxu0
        %v1722 = vadd.f32 %v1561, %v1721
        %v1723 = vpop.f32.mrf.mxu0
        %1724 = vmatprep.mubr.bf16.mxu0 %v534
        %1725 = vmatmul.mubr.bf16.gmra.mxu0 %v818
        %v1726 = vpop.f32.mrf.mxu0
        %v1727 = vadd.f32 %v1566, %v1726
        %v1728 = vpop.f32.mrf.mxu0
        %v1729 = vpop.f32.mrf.mxu0
        %v1730 = vadd.f32 %v1569, %v1729
        %v1731 = vpop.f32.mrf.mxu0
        %1732 = vmatprep.mubr.bf16.mxu0 %v536
        %1733 = vmatmul.mubr.bf16.gmra.mxu0 %v821
        %v1734 = vpop.f32.mrf.mxu0
        %v1735 = vadd.f32 %v1574, %v1734
        %v1736 = vpop.f32.mrf.mxu0
        %v1737 = vpop.f32.mrf.mxu0
        %v1738 = vadd.f32 %v1577, %v1737
        %v1739 = vpop.f32.mrf.mxu0
        %1740 = vmatprep.mubr.bf16.mxu0 %v538
        %1741 = vmatmul.mubr.bf16.gmra.mxu0 %v824
        %v1742 = vpop.f32.mrf.mxu0
        %v1743 = vadd.f32 %v1582, %v1742
        %v1744 = vpop.f32.mrf.mxu0
        %v1745 = vpop.f32.mrf.mxu0
        %v1746 = vadd.f32 %v1585, %v1745
        %v1747 = vpop.f32.mrf.mxu0
        %1748 = vmatprep.mubr.bf16.mxu0 %v540
        %1749 = vmatmul.mubr.bf16.gmra.mxu0 %v827
        %v1750 = vpop.f32.mrf.mxu0
        %v1751 = vadd.f32 %v1590, %v1750
        %v1752 = vpop.f32.mrf.mxu0
        %v1753 = vpop.f32.mrf.mxu0
        %v1754 = vadd.f32 %v1593, %v1753
        %v1755 = vpop.f32.mrf.mxu0
        %1756 = vmatprep.mubr.bf16.mxu0 %v542
        %1757 = vmatmul.mubr.bf16.gmra.mxu0 %v830
        %v1758 = vpop.f32.mrf.mxu0
        %v1759 = vadd.f32 %v1598, %v1758
        %v1760 = vpop.f32.mrf.mxu0
        %v1761 = vpop.f32.mrf.mxu0
        %v1762 = vadd.f32 %v1601, %v1761
        %v1763 = vpop.f32.mrf.mxu0
        %1764 = vmatprep.mubr.bf16.mxu0 %v544
        %1765 = vmatmul.mubr.bf16.gmra.mxu0 %v833
        %v1766 = vpop.f32.mrf.mxu0
        %v1767 = vadd.f32 %v1606, %v1766
        %v1768 = vpop.f32.mrf.mxu0
        %v1769 = vpop.f32.mrf.mxu0
        %v1770 = vadd.f32 %v1609, %v1769
        %v1771 = vpop.f32.mrf.mxu0
        %1772 = vmatprep.mubr.bf16.mxu0 %v546
        %1773 = vmatmul.mubr.bf16.gmra.mxu0 %v836
        %v1774 = vpop.f32.mrf.mxu0
        %v1775 = vadd.f32 %v1614, %v1774
        %v1776 = vpop.f32.mrf.mxu0
        %v1777 = vpop.f32.mrf.mxu0
        %v1778 = vadd.f32 %v1617, %v1777
        %v1779 = vpop.f32.mrf.mxu0
        %1780 = vmatprep.mubr.bf16.mxu0 %v548
        %1781 = vmatmul.mubr.bf16.gmra.mxu0 %v839
        %v1782 = vpop.f32.mrf.mxu0
        %v1783 = vadd.f32 %v1622, %v1782
        %v1784 = vpop.f32.mrf.mxu0
        %v1785 = vpop.f32.mrf.mxu0
        %v1786 = vadd.f32 %v1625, %v1785
        %v1787 = vpop.f32.mrf.mxu0
        %1788 = vmatprep.mubr.bf16.mxu0 %v550
        %1789 = vmatmul.mubr.bf16.gmra.mxu0 %v842
        %v1790 = vpop.f32.mrf.mxu0
        %v1791 = vadd.f32 %v1630, %v1790
        %v1792 = vpop.f32.mrf.mxu0
        %v1793 = vpop.f32.mrf.mxu0
        %v1794 = vadd.f32 %v1633, %v1793
        %v1795 = vpop.f32.mrf.mxu0
        %1796 = vmatprep.mubr.bf16.mxu0 %v552
        %1797 = vmatmul.mubr.bf16.gmra.mxu0 %v845
        %v1798 = vpop.f32.mrf.mxu0
        %v1799 = vadd.f32 %v1638, %v1798
        %v1800 = vpop.f32.mrf.mxu0
        %v1801 = vpop.f32.mrf.mxu0
        %v1802 = vadd.f32 %v1641, %v1801
        %v1803 = vpop.f32.mrf.mxu0
        %1804 = vdwg.mxu0
        %1805 = vmatprep.subr.bf16.mxu0 0
        %1806 = vmatpush1.bf16.msra.mxu0 %v1378
        %1807 = vmatprep.subr.bf16.mxu0 0
        %1808 = vmatpush1.bf16.msra.mxu0 %v1377
        %1809 = vmatprep.subr.bf16.mxu0 0
        %1810 = vmatpush1.bf16.msra.mxu0 %v1376
        %1811 = vmatprep.subr.bf16.mxu0 0
        %1812 = vmatpush1.bf16.msra.mxu0 %v1375
        %1813 = vmatprep.subr.bf16.mxu0 0
        %1814 = vmatpush1.bf16.msra.mxu0 %v1374
        %1815 = vmatprep.subr.bf16.mxu0 0
        %1816 = vmatpush1.bf16.msra.mxu0 %v1373
        %1817 = vmatprep.subr.bf16.mxu0 0
        %1818 = vmatpush1.bf16.msra.mxu0 %v1372
        %1819 = vmatprep.subr.bf16.mxu0 0
        %1820 = vmatpush1.bf16.msra.mxu0 %v1371
        %1821 = vmatprep.subr.bf16.mxu0 0
        %1822 = vmatpush2.bf16.msra.mxu0 %v1386
        %1823 = vmatprep.subr.bf16.mxu0 0
        %1824 = vmatpush2.bf16.msra.mxu0 %v1385
        %1825 = vmatprep.subr.bf16.mxu0 0
        %1826 = vmatpush2.bf16.msra.mxu0 %v1384
        %1827 = vmatprep.subr.bf16.mxu0 0
        %1828 = vmatpush2.bf16.msra.mxu0 %v1383
        %1829 = vmatprep.subr.bf16.mxu0 0
        %1830 = vmatpush2.bf16.msra.mxu0 %v1382
        %1831 = vmatprep.subr.bf16.mxu0 0
        %1832 = vmatpush2.bf16.msra.mxu0 %v1381
        %1833 = vmatprep.subr.bf16.mxu0 0
        %1834 = vmatpush2.bf16.msra.mxu0 %v1380
        %1835 = vmatprep.subr.bf16.mxu0 0
        %1836 = vmatpush2.bf16.msra.mxu0 %v1379
        %1837 = vmatprep.mubr.bf16.mxu0 %v803
        %1838 = vmatmul.mubr.bf16.gmra.mxu0 %v580
        %v1839 = vpop.f32.mrf.mxu0
        %v1840 = vadd.f32 %v1679, %v1839
        %v1841 = vpop.f32.mrf.mxu0
        %v1842 = vpop.f32.mrf.mxu0
        %v1843 = vadd.f32 %v1682, %v1842
        %v1844 = vpop.f32.mrf.mxu0
        %1845 = vmatprep.mubr.bf16.mxu0 %v806
        %1846 = vmatmul.mubr.bf16.gmra.mxu0 %v592
        %v1847 = vpop.f32.mrf.mxu0
        %v1848 = vadd.f32 %v1687, %v1847
        %v1849 = vpop.f32.mrf.mxu0
        %v1850 = vpop.f32.mrf.mxu0
        %v1851 = vadd.f32 %v1690, %v1850
        %v1852 = vpop.f32.mrf.mxu0
        %1853 = vmatprep.mubr.bf16.mxu0 %v809
        %1854 = vmatmul.mubr.bf16.gmra.mxu0 %v604
        %v1855 = vpop.f32.mrf.mxu0
        %v1856 = vadd.f32 %v1695, %v1855
        %v1857 = vpop.f32.mrf.mxu0
        %v1858 = vpop.f32.mrf.mxu0
        %v1859 = vadd.f32 %v1698, %v1858
        %v1860 = vpop.f32.mrf.mxu0
        %1861 = vmatprep.mubr.bf16.mxu0 %v812
        %1862 = vmatmul.mubr.bf16.gmra.mxu0 %v616
        %v1863 = vpop.f32.mrf.mxu0
        %v1864 = vadd.f32 %v1703, %v1863
        %v1865 = vpop.f32.mrf.mxu0
        %v1866 = vpop.f32.mrf.mxu0
        %v1867 = vadd.f32 %v1706, %v1866
        %v1868 = vpop.f32.mrf.mxu0
        %1869 = vmatprep.mubr.bf16.mxu0 %v815
        %1870 = vmatmul.mubr.bf16.gmra.mxu0 %v628
        %v1871 = vpop.f32.mrf.mxu0
        %v1872 = vadd.f32 %v1711, %v1871
        %v1873 = vpop.f32.mrf.mxu0
        %v1874 = vpop.f32.mrf.mxu0
        %v1875 = vadd.f32 %v1714, %v1874
        %v1876 = vpop.f32.mrf.mxu0
        %1877 = vmatprep.mubr.bf16.mxu0 %v818
        %1878 = vmatmul.mubr.bf16.gmra.mxu0 %v640
        %v1879 = vpop.f32.mrf.mxu0
        %v1880 = vadd.f32 %v1719, %v1879
        %v1881 = vpop.f32.mrf.mxu0
        %v1882 = vpop.f32.mrf.mxu0
        %v1883 = vadd.f32 %v1722, %v1882
        %v1884 = vpop.f32.mrf.mxu0
        %1885 = vmatprep.mubr.bf16.mxu0 %v821
        %1886 = vmatmul.mubr.bf16.gmra.mxu0 %v652
        %v1887 = vpop.f32.mrf.mxu0
        %v1888 = vadd.f32 %v1727, %v1887
        %v1889 = vpop.f32.mrf.mxu0
        %v1890 = vpop.f32.mrf.mxu0
        %v1891 = vadd.f32 %v1730, %v1890
        %v1892 = vpop.f32.mrf.mxu0
        %1893 = vmatprep.mubr.bf16.mxu0 %v824
        %1894 = vmatmul.mubr.bf16.gmra.mxu0 %v664
        %v1895 = vpop.f32.mrf.mxu0
        %v1896 = vadd.f32 %v1735, %v1895
        %v1897 = vpop.f32.mrf.mxu0
        %v1898 = vpop.f32.mrf.mxu0
        %v1899 = vadd.f32 %v1738, %v1898
        %v1900 = vpop.f32.mrf.mxu0
        %1901 = vmatprep.mubr.bf16.mxu0 %v827
        %1902 = vmatmul.mubr.bf16.gmra.mxu0 %v676
        %v1903 = vpop.f32.mrf.mxu0
        %v1904 = vadd.f32 %v1743, %v1903
        %v1905 = vpop.f32.mrf.mxu0
        %v1906 = vpop.f32.mrf.mxu0
        %v1907 = vadd.f32 %v1746, %v1906
        %v1908 = vpop.f32.mrf.mxu0
        %1909 = vmatprep.mubr.bf16.mxu0 %v830
        %1910 = vmatmul.mubr.bf16.gmra.mxu0 %v688
        %v1911 = vpop.f32.mrf.mxu0
        %v1912 = vadd.f32 %v1751, %v1911
        %v1913 = vpop.f32.mrf.mxu0
        %v1914 = vpop.f32.mrf.mxu0
        %v1915 = vadd.f32 %v1754, %v1914
        %v1916 = vpop.f32.mrf.mxu0
        %1917 = vmatprep.mubr.bf16.mxu0 %v833
        %1918 = vmatmul.mubr.bf16.gmra.mxu0 %v700
        %v1919 = vpop.f32.mrf.mxu0
        %v1920 = vadd.f32 %v1759, %v1919
        %v1921 = vpop.f32.mrf.mxu0
        %v1922 = vpop.f32.mrf.mxu0
        %v1923 = vadd.f32 %v1762, %v1922
        %v1924 = vpop.f32.mrf.mxu0
        %1925 = vmatprep.mubr.bf16.mxu0 %v836
        %1926 = vmatmul.mubr.bf16.gmra.mxu0 %v712
        %v1927 = vpop.f32.mrf.mxu0
        %v1928 = vadd.f32 %v1767, %v1927
        %v1929 = vpop.f32.mrf.mxu0
        %v1930 = vpop.f32.mrf.mxu0
        %v1931 = vadd.f32 %v1770, %v1930
        %v1932 = vpop.f32.mrf.mxu0
        %1933 = vmatprep.mubr.bf16.mxu0 %v839
        %1934 = vmatmul.mubr.bf16.gmra.mxu0 %v724
        %v1935 = vpop.f32.mrf.mxu0
        %v1936 = vadd.f32 %v1775, %v1935
        %v1937 = vpop.f32.mrf.mxu0
        %v1938 = vpop.f32.mrf.mxu0
        %v1939 = vadd.f32 %v1778, %v1938
        %v1940 = vpop.f32.mrf.mxu0
        %1941 = vmatprep.mubr.bf16.mxu0 %v842
        %1942 = vmatmul.mubr.bf16.gmra.mxu0 %v736
        %v1943 = vpop.f32.mrf.mxu0
        %v1944 = vadd.f32 %v1783, %v1943
        %v1945 = vpop.f32.mrf.mxu0
        %v1946 = vpop.f32.mrf.mxu0
        %v1947 = vadd.f32 %v1786, %v1946
        %v1948 = vpop.f32.mrf.mxu0
        %1949 = vmatprep.mubr.bf16.mxu0 %v845
        %1950 = vmatmul.mubr.bf16.gmra.mxu0 %v748
        %v1951 = vpop.f32.mrf.mxu0
        %v1952 = vadd.f32 %v1791, %v1951
        %v1953 = vpop.f32.mrf.mxu0
        %v1954 = vpop.f32.mrf.mxu0
        %v1955 = vadd.f32 %v1794, %v1954
        %v1956 = vpop.f32.mrf.mxu0
        %1957 = vmatprep.mubr.bf16.mxu0 %v879
        %1958 = vmatmul.mubr.bf16.gmra.mxu0 %v873
        %v1959 = vpop.f32.mrf.mxu0
        %v1960 = vadd.f32 %v1799, %v1959
        %v1961 = vpop.f32.mrf.mxu0
        %v1962 = vpop.f32.mrf.mxu0
        %v1963 = vadd.f32 %v1802, %v1962
        %v1964 = vpop.f32.mrf.mxu0
        %1965 = vdwg.mxu0
        %1966 = vmatprep.subr.bf16.mxu0 0
        %1967 = vmatpush1.bf16.msra.mxu0 %v1394
        %1968 = vmatprep.subr.bf16.mxu0 0
        %1969 = vmatpush1.bf16.msra.mxu0 %v1393
        %1970 = vmatprep.subr.bf16.mxu0 0
        %1971 = vmatpush1.bf16.msra.mxu0 %v1392
        %1972 = vmatprep.subr.bf16.mxu0 0
        %1973 = vmatpush1.bf16.msra.mxu0 %v1391
        %1974 = vmatprep.subr.bf16.mxu0 0
        %1975 = vmatpush1.bf16.msra.mxu0 %v1390
        %1976 = vmatprep.subr.bf16.mxu0 0
        %1977 = vmatpush1.bf16.msra.mxu0 %v1389
        %1978 = vmatprep.subr.bf16.mxu0 0
        %1979 = vmatpush1.bf16.msra.mxu0 %v1388
        %1980 = vmatprep.subr.bf16.mxu0 0
        %1981 = vmatpush1.bf16.msra.mxu0 %v1387
        %1982 = vmatprep.subr.bf16.mxu0 0
        %1983 = vmatpush2.bf16.msra.mxu0 %v1402
        %1984 = vmatprep.subr.bf16.mxu0 0
        %1985 = vmatpush2.bf16.msra.mxu0 %v1401
        %1986 = vmatprep.subr.bf16.mxu0 0
        %1987 = vmatpush2.bf16.msra.mxu0 %v1400
        %1988 = vmatprep.subr.bf16.mxu0 0
        %1989 = vmatpush2.bf16.msra.mxu0 %v1399
        %1990 = vmatprep.subr.bf16.mxu0 0
        %1991 = vmatpush2.bf16.msra.mxu0 %v1398
        %1992 = vmatprep.subr.bf16.mxu0 0
        %1993 = vmatpush2.bf16.msra.mxu0 %v1397
        %1994 = vmatprep.subr.bf16.mxu0 0
        %1995 = vmatpush2.bf16.msra.mxu0 %v1396
        %1996 = vmatprep.subr.bf16.mxu0 0
        %1997 = vmatpush2.bf16.msra.mxu0 %v1395
        %1998 = vmatprep.mubr.bf16.mxu0 %v592
        %1999 = vmatmul.mubr.bf16.gmra.mxu0 %v524
        %v2000 = vpop.f32.mrf.mxu0
        %v2001 = vadd.f32 %v1840, %v2000
        %v2002 = vpop.f32.mrf.mxu0
        %v2003 = vpop.f32.mrf.mxu0
        %v2004 = vadd.f32 %v1843, %v2003
        %v2005 = vpop.f32.mrf.mxu0
        %2006 = vmatprep.mubr.bf16.mxu0 %v604
        %2007 = vmatmul.mubr.bf16.gmra.mxu0 %v526
        %v2008 = vpop.f32.mrf.mxu0
        %v2009 = vadd.f32 %v1848, %v2008
        %v2010 = vpop.f32.mrf.mxu0
        %v2011 = vpop.f32.mrf.mxu0
        %v2012 = vadd.f32 %v1851, %v2011
        %v2013 = vpop.f32.mrf.mxu0
        %2014 = vmatprep.mubr.bf16.mxu0 %v616
        %2015 = vmatmul.mubr.bf16.gmra.mxu0 %v528
        %v2016 = vpop.f32.mrf.mxu0
        %v2017 = vadd.f32 %v1856, %v2016
        %v2018 = vpop.f32.mrf.mxu0
        %v2019 = vpop.f32.mrf.mxu0
        %v2020 = vadd.f32 %v1859, %v2019
        %v2021 = vpop.f32.mrf.mxu0
        %2022 = vmatprep.mubr.bf16.mxu0 %v628
        %2023 = vmatmul.mubr.bf16.gmra.mxu0 %v530
        %v2024 = vpop.f32.mrf.mxu0
        %v2025 = vadd.f32 %v1864, %v2024
        %v2026 = vpop.f32.mrf.mxu0
        %v2027 = vpop.f32.mrf.mxu0
        %v2028 = vadd.f32 %v1867, %v2027
        %v2029 = vpop.f32.mrf.mxu0
        %2030 = vmatprep.mubr.bf16.mxu0 %v640
        %2031 = vmatmul.mubr.bf16.gmra.mxu0 %v532
        %v2032 = vpop.f32.mrf.mxu0
        %v2033 = vadd.f32 %v1872, %v2032
        %v2034 = vpop.f32.mrf.mxu0
        %v2035 = vpop.f32.mrf.mxu0
        %v2036 = vadd.f32 %v1875, %v2035
        %v2037 = vpop.f32.mrf.mxu0
        %2038 = vmatprep.mubr.bf16.mxu0 %v652
        %2039 = vmatmul.mubr.bf16.gmra.mxu0 %v534
        %v2040 = vpop.f32.mrf.mxu0
        %v2041 = vadd.f32 %v1880, %v2040
        %v2042 = vpop.f32.mrf.mxu0
        %v2043 = vpop.f32.mrf.mxu0
        %v2044 = vadd.f32 %v1883, %v2043
        %v2045 = vpop.f32.mrf.mxu0
        %2046 = vmatprep.mubr.bf16.mxu0 %v664
        %2047 = vmatmul.mubr.bf16.gmra.mxu0 %v536
        %v2048 = vpop.f32.mrf.mxu0
        %v2049 = vadd.f32 %v1888, %v2048
        %v2050 = vpop.f32.mrf.mxu0
        %v2051 = vpop.f32.mrf.mxu0
        %v2052 = vadd.f32 %v1891, %v2051
        %v2053 = vpop.f32.mrf.mxu0
        %2054 = vmatprep.mubr.bf16.mxu0 %v676
        %2055 = vmatmul.mubr.bf16.gmra.mxu0 %v538
        %v2056 = vpop.f32.mrf.mxu0
        %v2057 = vadd.f32 %v1896, %v2056
        %v2058 = vpop.f32.mrf.mxu0
        %v2059 = vpop.f32.mrf.mxu0
        %v2060 = vadd.f32 %v1899, %v2059
        %v2061 = vpop.f32.mrf.mxu0
        %2062 = vmatprep.mubr.bf16.mxu0 %v688
        %2063 = vmatmul.mubr.bf16.gmra.mxu0 %v540
        %v2064 = vpop.f32.mrf.mxu0
        %v2065 = vadd.f32 %v1904, %v2064
        %v2066 = vpop.f32.mrf.mxu0
        %v2067 = vpop.f32.mrf.mxu0
        %v2068 = vadd.f32 %v1907, %v2067
        %v2069 = vpop.f32.mrf.mxu0
        %2070 = vmatprep.mubr.bf16.mxu0 %v700
        %2071 = vmatmul.mubr.bf16.gmra.mxu0 %v542
        %v2072 = vpop.f32.mrf.mxu0
        %v2073 = vadd.f32 %v1912, %v2072
        %v2074 = vpop.f32.mrf.mxu0
        %v2075 = vpop.f32.mrf.mxu0
        %v2076 = vadd.f32 %v1915, %v2075
        %v2077 = vpop.f32.mrf.mxu0
        %2078 = vmatprep.mubr.bf16.mxu0 %v712
        %2079 = vmatmul.mubr.bf16.gmra.mxu0 %v544
        %v2080 = vpop.f32.mrf.mxu0
        %v2081 = vadd.f32 %v1920, %v2080
        %v2082 = vpop.f32.mrf.mxu0
        %v2083 = vpop.f32.mrf.mxu0
        %v2084 = vadd.f32 %v1923, %v2083
        %v2085 = vpop.f32.mrf.mxu0
        %2086 = vmatprep.mubr.bf16.mxu0 %v724
        %2087 = vmatmul.mubr.bf16.gmra.mxu0 %v546
        %v2088 = vpop.f32.mrf.mxu0
        %v2089 = vadd.f32 %v1928, %v2088
        %v2090 = vpop.f32.mrf.mxu0
        %v2091 = vpop.f32.mrf.mxu0
        %v2092 = vadd.f32 %v1931, %v2091
        %v2093 = vpop.f32.mrf.mxu0
        %2094 = vmatprep.mubr.bf16.mxu0 %v736
        %2095 = vmatmul.mubr.bf16.gmra.mxu0 %v548
        %v2096 = vpop.f32.mrf.mxu0
        %v2097 = vadd.f32 %v1936, %v2096
        %v2098 = vpop.f32.mrf.mxu0
        %v2099 = vpop.f32.mrf.mxu0
        %v2100 = vadd.f32 %v1939, %v2099
        %v2101 = vpop.f32.mrf.mxu0
        %2102 = vmatprep.mubr.bf16.mxu0 %v748
        %2103 = vmatmul.mubr.bf16.gmra.mxu0 %v550
        %v2104 = vpop.f32.mrf.mxu0
        %v2105 = vadd.f32 %v1944, %v2104
        %v2106 = vpop.f32.mrf.mxu0
        %v2107 = vpop.f32.mrf.mxu0
        %v2108 = vadd.f32 %v1947, %v2107
        %v2109 = vpop.f32.mrf.mxu0
        %2110 = vmatprep.mubr.bf16.mxu0 %v873
        %2111 = vmatmul.mubr.bf16.gmra.mxu0 %v552
        %v2112 = vpop.f32.mrf.mxu0
        %v2113 = vadd.f32 %v1952, %v2112
        %v2114 = vpop.f32.mrf.mxu0
        %v2115 = vpop.f32.mrf.mxu0
        %v2116 = vadd.f32 %v1955, %v2115
        %v2117 = vpop.f32.mrf.mxu0
        %2118 = vmatprep.mubr.bf16.mxu0 %v892
        %2119 = vmatmul.mubr.bf16.gmra.mxu0 %v554
        %v2120 = vpop.f32.mrf.mxu0
        %v2121 = vadd.f32 %v1960, %v2120
        %v2122 = vpop.f32.mrf.mxu0
        %v2123 = vpop.f32.mrf.mxu0
        %v2124 = vadd.f32 %v1963, %v2123
        %v2125 = vpop.f32.mrf.mxu0
        %2126 = vdwg.mxu0
        %2127 = vmatprep.subr.bf16.mxu0 0
        %2128 = vmatpush1.bf16.msra.mxu0 %v1410
        %2129 = vmatprep.subr.bf16.mxu0 0
        %2130 = vmatpush1.bf16.msra.mxu0 %v1409
        %2131 = vmatprep.subr.bf16.mxu0 0
        %2132 = vmatpush1.bf16.msra.mxu0 %v1408
        %2133 = vmatprep.subr.bf16.mxu0 0
        %2134 = vmatpush1.bf16.msra.mxu0 %v1407
        %2135 = vmatprep.subr.bf16.mxu0 0
        %2136 = vmatpush1.bf16.msra.mxu0 %v1406
        %2137 = vmatprep.subr.bf16.mxu0 0
        %2138 = vmatpush1.bf16.msra.mxu0 %v1405
        %2139 = vmatprep.subr.bf16.mxu0 0
        %2140 = vmatpush1.bf16.msra.mxu0 %v1404
        %2141 = vmatprep.subr.bf16.mxu0 0
        %2142 = vmatpush1.bf16.msra.mxu0 %v1403
        %2143 = vmatprep.subr.bf16.mxu0 0
        %2144 = vmatpush2.bf16.msra.mxu0 0
        %2145 = vmatprep.subr.bf16.mxu0 0
        %2146 = vmatpush2.bf16.msra.mxu0 0
        %2147 = vmatprep.subr.bf16.mxu0 0
        %2148 = vmatpush2.bf16.msra.mxu0 0
        %2149 = vmatprep.subr.bf16.mxu0 0
        %2150 = vmatpush2.bf16.msra.mxu0 0
        %2151 = vmatprep.subr.bf16.mxu0 0
        %2152 = vmatpush2.bf16.msra.mxu0 0
        %2153 = vmatprep.subr.bf16.mxu0 0
        %2154 = vmatpush2.bf16.msra.mxu0 0
        %2155 = vmatprep.subr.bf16.mxu0 0
        %2156 = vmatpush2.bf16.msra.mxu0 0
        %2157 = vmatprep.subr.bf16.mxu0 0
        %2158 = vmatpush2.bf16.msra.mxu0 0
        %2159 = vmatprep.mubr.bf16.mxu0 0
        %2160 = vmatmul.mubr.bf16.gmra.mxu0 %v806
        %v2161 = vpop.f32.mrf.mxu0
        %v2162 = vadd.f32 %v2001, %v2161
        %v2163 = vpop.f32.mrf.mxu0
        %v2164 = vpop.f32.mrf.mxu0
        %v2165 = vadd.f32 %v2004, %v2164
        %v2166 = vpop.f32.mrf.mxu0
        %2167 = vmatprep.mubr.bf16.mxu0 0
        %2168 = vmatmul.mubr.bf16.gmra.mxu0 %v809
        %v2169 = vpop.f32.mrf.mxu0
        %v2170 = vadd.f32 %v2009, %v2169
        %v2171 = vpop.f32.mrf.mxu0
        %v2172 = vpop.f32.mrf.mxu0
        %v2173 = vadd.f32 %v2012, %v2172
        %v2174 = vpop.f32.mrf.mxu0
        %2175 = vmatprep.mubr.bf16.mxu0 0
        %2176 = vmatmul.mubr.bf16.gmra.mxu0 %v812
        %v2177 = vpop.f32.mrf.mxu0
        %v2178 = vadd.f32 %v2017, %v2177
        %v2179 = vpop.f32.mrf.mxu0
        %v2180 = vpop.f32.mrf.mxu0
        %v2181 = vadd.f32 %v2020, %v2180
        %v2182 = vpop.f32.mrf.mxu0
        %2183 = vmatprep.mubr.bf16.mxu0 0
        %2184 = vmatmul.mubr.bf16.gmra.mxu0 %v815
        %v2185 = vpop.f32.mrf.mxu0
        %v2186 = vadd.f32 %v2025, %v2185
        %v2187 = vpop.f32.mrf.mxu0
        %v2188 = vpop.f32.mrf.mxu0
        %v2189 = vadd.f32 %v2028, %v2188
        %v2190 = vpop.f32.mrf.mxu0
        %2191 = vmatprep.mubr.bf16.mxu0 0
        %2192 = vmatmul.mubr.bf16.gmra.mxu0 %v818
        %v2193 = vpop.f32.mrf.mxu0
        %v2194 = vadd.f32 %v2033, %v2193
        %v2195 = vpop.f32.mrf.mxu0
        %v2196 = vpop.f32.mrf.mxu0
        %v2197 = vadd.f32 %v2036, %v2196
        %v2198 = vpop.f32.mrf.mxu0
        %2199 = vmatprep.mubr.bf16.mxu0 0
        %2200 = vmatmul.mubr.bf16.gmra.mxu0 %v821
        %v2201 = vpop.f32.mrf.mxu0
        %v2202 = vadd.f32 %v2041, %v2201
        %v2203 = vpop.f32.mrf.mxu0
        %v2204 = vpop.f32.mrf.mxu0
        %v2205 = vadd.f32 %v2044, %v2204
        %v2206 = vpop.f32.mrf.mxu0
        %2207 = vmatprep.mubr.bf16.mxu0 0
        %2208 = vmatmul.mubr.bf16.gmra.mxu0 %v824
        %v2209 = vpop.f32.mrf.mxu0
        %v2210 = vadd.f32 %v2049, %v2209
        %v2211 = vpop.f32.mrf.mxu0
        %v2212 = vpop.f32.mrf.mxu0
        %v2213 = vadd.f32 %v2052, %v2212
        %v2214 = vpop.f32.mrf.mxu0
        %2215 = vmatprep.mubr.bf16.mxu0 0
        %2216 = vmatmul.mubr.bf16.gmra.mxu0 %v827
        %v2217 = vpop.f32.mrf.mxu0
        %v2218 = vadd.f32 %v2057, %v2217
        %v2219 = vpop.f32.mrf.mxu0
        %v2220 = vpop.f32.mrf.mxu0
        %v2221 = vadd.f32 %v2060, %v2220
        %v2222 = vpop.f32.mrf.mxu0
        %2223 = vmatprep.mubr.bf16.mxu0 0
        %2224 = vmatmul.mubr.bf16.gmra.mxu0 %v830
        %v2225 = vpop.f32.mrf.mxu0
        %v2226 = vadd.f32 %v2065, %v2225
        %v2227 = vpop.f32.mrf.mxu0
        %v2228 = vpop.f32.mrf.mxu0
        %v2229 = vadd.f32 %v2068, %v2228
        %v2230 = vpop.f32.mrf.mxu0
        %2231 = vmatprep.mubr.bf16.mxu0 0
        %2232 = vmatmul.mubr.bf16.gmra.mxu0 %v833
        %v2233 = vpop.f32.mrf.mxu0
        %v2234 = vadd.f32 %v2073, %v2233
        %v2235 = vpop.f32.mrf.mxu0
        %v2236 = vpop.f32.mrf.mxu0
        %v2237 = vadd.f32 %v2076, %v2236
        %v2238 = vpop.f32.mrf.mxu0
        %2239 = vmatprep.mubr.bf16.mxu0 0
        %2240 = vmatmul.mubr.bf16.gmra.mxu0 %v836
        %v2241 = vpop.f32.mrf.mxu0
        %v2242 = vadd.f32 %v2081, %v2241
        %v2243 = vpop.f32.mrf.mxu0
        %v2244 = vpop.f32.mrf.mxu0
        %v2245 = vadd.f32 %v2084, %v2244
        %v2246 = vpop.f32.mrf.mxu0
        %2247 = vmatprep.mubr.bf16.mxu0 0
        %2248 = vmatmul.mubr.bf16.gmra.mxu0 %v839
        %v2249 = vpop.f32.mrf.mxu0
        %v2250 = vadd.f32 %v2089, %v2249
        %v2251 = vpop.f32.mrf.mxu0
        %v2252 = vpop.f32.mrf.mxu0
        %v2253 = vadd.f32 %v2092, %v2252
        %v2254 = vpop.f32.mrf.mxu0
        %2255 = vmatprep.mubr.bf16.mxu0 0
        %2256 = vmatmul.mubr.bf16.gmra.mxu0 %v842
        %v2257 = vpop.f32.mrf.mxu0
        %v2258 = vadd.f32 %v2097, %v2257
        %v2259 = vpop.f32.mrf.mxu0
        %v2260 = vpop.f32.mrf.mxu0
        %v2261 = vadd.f32 %v2100, %v2260
        %v2262 = vpop.f32.mrf.mxu0
        %2263 = vmatprep.mubr.bf16.mxu0 0
        %2264 = vmatmul.mubr.bf16.gmra.mxu0 %v845
        %v2265 = vpop.f32.mrf.mxu0
        %v2266 = vadd.f32 %v2105, %v2265
        %v2267 = vpop.f32.mrf.mxu0
        %v2268 = vpop.f32.mrf.mxu0
        %v2269 = vadd.f32 %v2108, %v2268
        %v2270 = vpop.f32.mrf.mxu0
        %2271 = vmatprep.mubr.bf16.mxu0 0
        %2272 = vmatmul.mubr.bf16.gmra.mxu0 %v879
        %v2273 = vpop.f32.mrf.mxu0
        %v2274 = vadd.f32 %v2113, %v2273
        %v2275 = vpop.f32.mrf.mxu0
        %v2276 = vpop.f32.mrf.mxu0
        %v2277 = vadd.f32 %v2116, %v2276
        %v2278 = vpop.f32.mrf.mxu0
        %2279 = vmatprep.mubr.bf16.mxu0 0
        %2280 = vmatmul.mubr.bf16.gmra.mxu0 %v898
        %v2281 = vpop.f32.mrf.mxu0
        %v2282 = vadd.f32 %v2121, %v2281
        %v2283 = vpop.f32.mrf.mxu0
        %v2284 = vpop.f32.mrf.mxu0
        %v2285 = vadd.f32 %v2124, %v2284
        %v2286 = vpop.f32.mrf.mxu0
        %2287 = vdwg.mxu0
        %v2288 = vmax.f32 %v2162, 0.0
        %v2289 = vmax.f32 %v2165, 0.0
        %v2290 = vmax.f32 %v2170, 0.0
        %v2291 = vmax.f32 %v2173, 0.0
        %v2292 = vmax.f32 %v2178, 0.0
        %v2293 = vmax.f32 %v2181, 0.0
        %v2294 = vmax.f32 %v2186, 0.0
        %v2295 = vmax.f32 %v2189, 0.0
        %v2296 = vmax.f32 %v2194, 0.0
        %v2297 = vmax.f32 %v2197, 0.0
        %v2298 = vmax.f32 %v2202, 0.0
        %v2299 = vmax.f32 %v2205, 0.0
        %v2300 = vmax.f32 %v2210, 0.0
        %v2301 = vmax.f32 %v2213, 0.0
        %v2302 = vmax.f32 %v2218, 0.0
        %v2303 = vmax.f32 %v2221, 0.0
        %v2304 = vmax.f32 %v2226, 0.0
        %v2305 = vmax.f32 %v2229, 0.0
        %v2306 = vmax.f32 %v2234, 0.0
        %v2307 = vmax.f32 %v2237, 0.0
        %v2308 = vmax.f32 %v2242, 0.0
        %v2309 = vmax.f32 %v2245, 0.0
        %v2310 = vmax.f32 %v2250, 0.0
        %v2311 = vmax.f32 %v2253, 0.0
        %v2312 = vmax.f32 %v2258, 0.0
        %v2313 = vmax.f32 %v2261, 0.0
        %v2314 = vmax.f32 %v2266, 0.0
        %v2315 = vmax.f32 %v2269, 0.0
        %v2316 = vmax.f32 %v2274, 0.0
        %v2317 = vmax.f32 %v2277, 0.0
        %v2318 = vmax.f32 %v2282, 0.0
        %v2319 = vmax.f32 %v2285, 0.0
        %s2320 = scalar_lea.vmem [#allocation3], 24
        %2321 = vst [vmem:[%s2320 + $0x1] sm:$0xff] %v2288
        %2322 = vst [vmem:[%s2320 + $0x9] sm:$0xff] %v2289
        %2323 = vst [vmem:[%s2320 + $0x19] sm:$0xff] %v2290
        %2324 = vst [vmem:[%s2320 + $0x21] sm:$0xff] %v2291
        %2325 = vst [vmem:[%s2320 + $0x31] sm:$0xff] %v2292
        %2326 = vst [vmem:[%s2320 + $0x39] sm:$0xff] %v2293
        %2327 = vst [vmem:[%s2320 + $0x49] sm:$0xff] %v2294
        %2328 = vst [vmem:[%s2320 + $0x51] sm:$0xff] %v2295
        %2329 = vst [vmem:[%s2320 + $0x61] sm:$0xff] %v2296
        %2330 = vst [vmem:[%s2320 + $0x69] sm:$0xff] %v2297
        %2331 = vst [vmem:[%s2320 + $0x79] sm:$0xff] %v2298
        %2332 = vst [vmem:[%s2320 + $0x81] sm:$0xff] %v2299
        %2333 = vst [vmem:[%s2320 + $0x91] sm:$0xff] %v2300
        %2334 = vst [vmem:[%s2320 + $0x99] sm:$0xff] %v2301
        %2335 = vst [vmem:[%s2320 + $0xa9] sm:$0xff] %v2302
        %2336 = vst [vmem:[%s2320 + $0xb1] sm:$0xff] %v2303
        %2337 = vst [vmem:[%s2320 + $0xc1] sm:$0xff] %v2304
        %2338 = vst [vmem:[%s2320 + $0xc9] sm:$0xff] %v2305
        %2339 = vst [vmem:[%s2320 + $0xd9] sm:$0xff] %v2306
        %2340 = vst [vmem:[%s2320 + $0xe1] sm:$0xff] %v2307
        %2341 = vst [vmem:[%s2320 + $0xf1] sm:$0xff] %v2308
        %2342 = vst [vmem:[%s2320 + $0xf9] sm:$0xff] %v2309
        %2343 = vst [vmem:[%s2320 + $0x109] sm:$0xff] %v2310
        %2344 = vst [vmem:[%s2320 + $0x111] sm:$0xff] %v2311
        %2345 = vst [vmem:[%s2320 + $0x121] sm:$0xff] %v2312
        %2346 = vst [vmem:[%s2320 + $0x129] sm:$0xff] %v2313
        %2347 = vst [vmem:[%s2320 + $0x139] sm:$0xff] %v2314
        %2348 = vst [vmem:[%s2320 + $0x141] sm:$0xff] %v2315
        %2349 = vst [vmem:[%s2320 + $0x151] sm:$0xff] %v2316
        %2350 = vst [vmem:[%s2320 + $0x159] sm:$0xff] %v2317
        %2351 = vst [vmem:[%s2320 + $0x169] sm:$0xff] %v2318
        %2352 = vst [vmem:[%s2320 + $0x171] sm:$0xff] %v2319
        %v2353 = vld [vmem:[#allocation3] sm:$0xff]
        %v2354 = vld [vmem:[#allocation3 + $0x8] sm:$0xff]
        %v2355 = vld [vmem:[#allocation3 + $0x10] sm:$0x3]
        %v2356 = vld [vmem:[#allocation3 + $0x18] sm:$0xff]
        %v2357 = vld [vmem:[#allocation3 + $0x20] sm:$0xff]
        %v2358 = vld [vmem:[#allocation3 + $0x28] sm:$0x3]
        %v2359 = vld [vmem:[#allocation3 + $0x30] sm:$0xff]
        %v2360 = vld [vmem:[#allocation3 + $0x38] sm:$0xff]
        %v2361 = vld [vmem:[#allocation3 + $0x40] sm:$0x3]
        %v2362 = vld [vmem:[#allocation3 + $0x48] sm:$0xff]
        %v2363 = vld [vmem:[#allocation3 + $0x50] sm:$0xff]
        %v2364 = vld [vmem:[#allocation3 + $0x58] sm:$0x3]
        %v2365 = vld [vmem:[#allocation3 + $0x60] sm:$0xff]
        %v2366 = vld [vmem:[#allocation3 + $0x68] sm:$0xff]
        %v2367 = vld [vmem:[#allocation3 + $0x70] sm:$0x3]
        %v2368 = vld [vmem:[#allocation3 + $0x78] sm:$0xff]
        %v2369 = vld [vmem:[#allocation3 + $0x80] sm:$0xff]
        %v2370 = vld [vmem:[#allocation3 + $0x88] sm:$0x3]
        %v2371 = vld [vmem:[#allocation3 + $0x90] sm:$0xff]
        %v2372 = vld [vmem:[#allocation3 + $0x98] sm:$0xff]
        %v2373 = vld [vmem:[#allocation3 + $0xa0] sm:$0x3]
        %v2374 = vld [vmem:[#allocation3 + $0xa8] sm:$0xff]
        %v2375 = vld [vmem:[#allocation3 + $0xb0] sm:$0xff]
        %v2376 = vld [vmem:[#allocation3 + $0xb8] sm:$0x3]
        %v2377 = vld [vmem:[#allocation3 + $0xc0] sm:$0xff]
        %v2378 = vld [vmem:[#allocation3 + $0xc8] sm:$0xff]
        %v2379 = vld [vmem:[#allocation3 + $0xd0] sm:$0x3]
        %v2380 = vld [vmem:[#allocation3 + $0xd8] sm:$0xff]
        %v2381 = vld [vmem:[#allocation3 + $0xe0] sm:$0xff]
        %v2382 = vld [vmem:[#allocation3 + $0xe8] sm:$0x3]
        %v2383 = vld [vmem:[#allocation3 + $0xf0] sm:$0xff]
        %v2384 = vld [vmem:[#allocation3 + $0xf8] sm:$0xff]
        %v2385 = vld [vmem:[#allocation3 + $0x100] sm:$0x3]
        %v2386 = vld [vmem:[#allocation3 + $0x108] sm:$0xff]
        %v2387 = vld [vmem:[#allocation3 + $0x110] sm:$0xff]
        %v2388 = vld [vmem:[#allocation3 + $0x118] sm:$0x3]
        %v2389 = vld [vmem:[#allocation3 + $0x120] sm:$0xff]
        %v2390 = vld [vmem:[#allocation3 + $0x128] sm:$0xff]
        %v2391 = vld [vmem:[#allocation3 + $0x130] sm:$0x3]
        %v2392 = vld [vmem:[#allocation3 + $0x138] sm:$0xff]
        %v2393 = vld [vmem:[#allocation3 + $0x140] sm:$0xff]
        %v2394 = vld [vmem:[#allocation3 + $0x148] sm:$0x3]
        %v2395 = vld [vmem:[#allocation3 + $0x150] sm:$0xff]
        %v2396 = vld [vmem:[#allocation3 + $0x158] sm:$0xff]
        %v2397 = vld [vmem:[#allocation3 + $0x160] sm:$0x3]
        %v2398 = vld [vmem:[#allocation3 + $0x168] sm:$0xff]
        %v2399 = vld [vmem:[#allocation3 + $0x170] sm:$0xff]
        %v2400 = vld [vmem:[#allocation3 + $0x178] sm:$0x3]
        %v2401 = vld [vmem:[#allocation3 + $0x180] sm:$0xff]
        %v2402 = vld [vmem:[#allocation3 + $0x188] sm:$0xff]
        %v2403 = vld [vmem:[#allocation3 + $0x190] sm:$0x3]
        %v2404 = vld [vmem:[#allocation3 + $0x198] sm:$0xff]
        %v2405 = vld [vmem:[#allocation3 + $0x1a0] sm:$0xff]
        %v2406 = vld [vmem:[#allocation3 + $0x1a8] sm:$0x3]
        %v2407 = vpack.c.bf16 %v2354, %v2353
        %v2408 = vpack.c.bf16 %v2355, %v2355
        %v2409 = vpack.c.bf16 %v2357, %v2356
        %v2410 = vpack.c.bf16 %v2358, %v2358
        %v2411 = vpack.c.bf16 %v2360, %v2359
        %v2412 = vpack.c.bf16 %v2361, %v2361
        %v2413 = vpack.c.bf16 %v2363, %v2362
        %v2414 = vpack.c.bf16 %v2364, %v2364
        %v2415 = vpack.c.bf16 %v2366, %v2365
        %v2416 = vpack.c.bf16 %v2367, %v2367
        %v2417 = vpack.c.bf16 %v2369, %v2368
        %v2418 = vpack.c.bf16 %v2370, %v2370
        %v2419 = vpack.c.bf16 %v2372, %v2371
        %v2420 = vpack.c.bf16 %v2373, %v2373
        %v2421 = vpack.c.bf16 %v2375, %v2374
        %v2422 = vpack.c.bf16 %v2376, %v2376
        %v2423 = vpack.c.bf16 %v2378, %v2377
        %v2424 = vpack.c.bf16 %v2379, %v2379
        %v2425 = vpack.c.bf16 %v2381, %v2380
        %v2426 = vpack.c.bf16 %v2382, %v2382
        %v2427 = vpack.c.bf16 %v2384, %v2383
        %v2428 = vpack.c.bf16 %v2385, %v2385
        %v2429 = vpack.c.bf16 %v2387, %v2386
        %v2430 = vpack.c.bf16 %v2388, %v2388
        %v2431 = vpack.c.bf16 %v2390, %v2389
        %v2432 = vpack.c.bf16 %v2391, %v2391
        %v2433 = vpack.c.bf16 %v2393, %v2392
        %v2434 = vpack.c.bf16 %v2394, %v2394
        %v2435 = vpack.c.bf16 %v2396, %v2395
        %v2436 = vpack.c.bf16 %v2397, %v2397
        %v2437 = vpack.c.bf16 %v2399, %v2398
        %v2438 = vpack.c.bf16 %v2400, %v2400
        %v2439 = vpack.c.bf16 %v2402, %v2401
        %v2440 = vpack.c.bf16 %v2403, %v2403
        %v2441 = vpack.c.bf16 %v2405, %v2404
        %v2442 = vpack.c.bf16 %v2406, %v2406
        %v2444 = vshrl.u32 %v2407, 16
        %v2446 = vshll.u32 %v2407, 16
        %v2448 = vrot.slane %v2446, 1
        %v2449 = vor.u32 %v2444, %v2448
        %v2451 = vshll.u32 %v2408, 16
        %v2453 = vrot.slane %v2451, 1
        %v2454 = vsel %vm556, %v2449, %v2453
        %v2456 = vshrl.u32 %v2409, 16
        %v2458 = vshll.u32 %v2409, 16
        %v2460 = vrot.slane %v2458, 1
        %v2461 = vor.u32 %v2456, %v2460
        %v2463 = vshll.u32 %v2410, 16
        %v2465 = vrot.slane %v2463, 1
        %v2466 = vsel %vm556, %v2461, %v2465
        %v2468 = vshrl.u32 %v2411, 16
        %v2470 = vshll.u32 %v2411, 16
        %v2472 = vrot.slane %v2470, 1
        %v2473 = vor.u32 %v2468, %v2472
        %v2475 = vshll.u32 %v2412, 16
        %v2477 = vrot.slane %v2475, 1
        %v2478 = vsel %vm556, %v2473, %v2477
        %v2480 = vshrl.u32 %v2413, 16
        %v2482 = vshll.u32 %v2413, 16
        %v2484 = vrot.slane %v2482, 1
        %v2485 = vor.u32 %v2480, %v2484
        %v2487 = vshll.u32 %v2414, 16
        %v2489 = vrot.slane %v2487, 1
        %v2490 = vsel %vm556, %v2485, %v2489
        %v2492 = vshrl.u32 %v2415, 16
        %v2494 = vshll.u32 %v2415, 16
        %v2496 = vrot.slane %v2494, 1
        %v2497 = vor.u32 %v2492, %v2496
        %v2499 = vshll.u32 %v2416, 16
        %v2501 = vrot.slane %v2499, 1
        %v2502 = vsel %vm556, %v2497, %v2501
        %v2504 = vshrl.u32 %v2417, 16
        %v2506 = vshll.u32 %v2417, 16
        %v2508 = vrot.slane %v2506, 1
        %v2509 = vor.u32 %v2504, %v2508
        %v2511 = vshll.u32 %v2418, 16
        %v2513 = vrot.slane %v2511, 1
        %v2514 = vsel %vm556, %v2509, %v2513
        %v2516 = vshrl.u32 %v2419, 16
        %v2518 = vshll.u32 %v2419, 16
        %v2520 = vrot.slane %v2518, 1
        %v2521 = vor.u32 %v2516, %v2520
        %v2523 = vshll.u32 %v2420, 16
        %v2525 = vrot.slane %v2523, 1
        %v2526 = vsel %vm556, %v2521, %v2525
        %v2528 = vshrl.u32 %v2421, 16
        %v2530 = vshll.u32 %v2421, 16
        %v2532 = vrot.slane %v2530, 1
        %v2533 = vor.u32 %v2528, %v2532
        %v2535 = vshll.u32 %v2422, 16
        %v2537 = vrot.slane %v2535, 1
        %v2538 = vsel %vm556, %v2533, %v2537
        %v2540 = vshrl.u32 %v2423, 16
        %v2542 = vshll.u32 %v2423, 16
        %v2544 = vrot.slane %v2542, 1
        %v2545 = vor.u32 %v2540, %v2544
        %v2547 = vshll.u32 %v2424, 16
        %v2549 = vrot.slane %v2547, 1
        %v2550 = vsel %vm556, %v2545, %v2549
        %v2552 = vshrl.u32 %v2425, 16
        %v2554 = vshll.u32 %v2425, 16
        %v2556 = vrot.slane %v2554, 1
        %v2557 = vor.u32 %v2552, %v2556
        %v2559 = vshll.u32 %v2426, 16
        %v2561 = vrot.slane %v2559, 1
        %v2562 = vsel %vm556, %v2557, %v2561
        %v2564 = vshrl.u32 %v2427, 16
        %v2566 = vshll.u32 %v2427, 16
        %v2568 = vrot.slane %v2566, 1
        %v2569 = vor.u32 %v2564, %v2568
        %v2571 = vshll.u32 %v2428, 16
        %v2573 = vrot.slane %v2571, 1
        %v2574 = vsel %vm556, %v2569, %v2573
        %v2576 = vshrl.u32 %v2429, 16
        %v2578 = vshll.u32 %v2429, 16
        %v2580 = vrot.slane %v2578, 1
        %v2581 = vor.u32 %v2576, %v2580
        %v2583 = vshll.u32 %v2430, 16
        %v2585 = vrot.slane %v2583, 1
        %v2586 = vsel %vm556, %v2581, %v2585
        %v2588 = vshrl.u32 %v2431, 16
        %v2590 = vshll.u32 %v2431, 16
        %v2592 = vrot.slane %v2590, 1
        %v2593 = vor.u32 %v2588, %v2592
        %v2595 = vshll.u32 %v2432, 16
        %v2597 = vrot.slane %v2595, 1
        %v2598 = vsel %vm556, %v2593, %v2597
        %v2600 = vshrl.u32 %v2433, 16
        %v2602 = vshll.u32 %v2433, 16
        %v2604 = vrot.slane %v2602, 1
        %v2605 = vor.u32 %v2600, %v2604
        %v2607 = vshll.u32 %v2434, 16
        %v2609 = vrot.slane %v2607, 1
        %v2610 = vsel %vm556, %v2605, %v2609
        %v2612 = vshrl.u32 %v2435, 16
        %v2614 = vshll.u32 %v2435, 16
        %v2616 = vrot.slane %v2614, 1
        %v2617 = vor.u32 %v2612, %v2616
        %v2619 = vshll.u32 %v2436, 16
        %v2621 = vrot.slane %v2619, 1
        %v2622 = vsel %vm556, %v2617, %v2621
        %v2624 = vshrl.u32 %v2437, 16
        %v2626 = vshll.u32 %v2437, 16
        %v2628 = vrot.slane %v2626, 1
        %v2629 = vor.u32 %v2624, %v2628
        %v2631 = vshll.u32 %v2438, 16
        %v2633 = vrot.slane %v2631, 1
        %v2634 = vsel %vm556, %v2629, %v2633
        %v2683 = vrot.slane %v2407, 1
        %v2684 = vrot.slane %v2408, 1
        %v2685 = vsel %vm797, %v2683, %v2684
        %v2686 = vrot.slane %v2409, 1
        %v2687 = vrot.slane %v2410, 1
        %v2688 = vsel %vm797, %v2686, %v2687
        %v2689 = vrot.slane %v2411, 1
        %v2690 = vrot.slane %v2412, 1
        %v2691 = vsel %vm797, %v2689, %v2690
        %v2692 = vrot.slane %v2413, 1
        %v2693 = vrot.slane %v2414, 1
        %v2694 = vsel %vm797, %v2692, %v2693
        %v2695 = vrot.slane %v2415, 1
        %v2696 = vrot.slane %v2416, 1
        %v2697 = vsel %vm797, %v2695, %v2696
        %v2698 = vrot.slane %v2417, 1
        %v2699 = vrot.slane %v2418, 1
        %v2700 = vsel %vm797, %v2698, %v2699
        %v2701 = vrot.slane %v2419, 1
        %v2702 = vrot.slane %v2420, 1
        %v2703 = vsel %vm797, %v2701, %v2702
        %v2704 = vrot.slane %v2421, 1
        %v2705 = vrot.slane %v2422, 1
        %v2706 = vsel %vm797, %v2704, %v2705
        %v2707 = vrot.slane %v2423, 1
        %v2708 = vrot.slane %v2424, 1
        %v2709 = vsel %vm797, %v2707, %v2708
        %v2710 = vrot.slane %v2425, 1
        %v2711 = vrot.slane %v2426, 1
        %v2712 = vsel %vm797, %v2710, %v2711
        %v2713 = vrot.slane %v2427, 1
        %v2714 = vrot.slane %v2428, 1
        %v2715 = vsel %vm797, %v2713, %v2714
        %v2716 = vrot.slane %v2429, 1
        %v2717 = vrot.slane %v2430, 1
        %v2718 = vsel %vm797, %v2716, %v2717
        %v2719 = vrot.slane %v2431, 1
        %v2720 = vrot.slane %v2432, 1
        %v2721 = vsel %vm797, %v2719, %v2720
        %v2722 = vrot.slane %v2433, 1
        %v2723 = vrot.slane %v2434, 1
        %v2724 = vsel %vm797, %v2722, %v2723
        %v2725 = vrot.slane %v2435, 1
        %v2726 = vrot.slane %v2436, 1
        %v2727 = vsel %vm797, %v2725, %v2726
        %v2728 = vrot.slane %v2437, 1
        %v2729 = vrot.slane %v2438, 1
        %v2730 = vsel %vm797, %v2728, %v2729
        %v2748 = vshrl.u32 %v2439, 16
        %v2750 = vshll.u32 %v2439, 16
        %v2752 = vrot.slane %v2750, 1
        %v2753 = vor.u32 %v2748, %v2752
        %v2755 = vshll.u32 %v2440, 16
        %v2757 = vrot.slane %v2755, 1
        %v2758 = vsel %vm556, %v2753, %v2757
        %v2762 = vrot.slane %v2439, 1
        %v2763 = vrot.slane %v2440, 1
        %v2764 = vsel %vm797, %v2762, %v2763
        %v2767 = vshrl.u32 %v2441, 16
        %v2769 = vshll.u32 %v2441, 16
        %v2771 = vrot.slane %v2769, 1
        %v2772 = vor.u32 %v2767, %v2771
        %v2774 = vshll.u32 %v2442, 16
        %v2776 = vrot.slane %v2774, 1
        %v2777 = vsel %vm556, %v2772, %v2776
        %v2781 = vrot.slane %v2441, 1
        %v2782 = vrot.slane %v2442, 1
        %v2783 = vsel %vm797, %v2781, %v2782
        %v2785 = vld [vmem:[#allocation9] sm:$0xf]
        %v2786 = vld [vmem:[#allocation9 + $0x4] sm:$0xf]
        %v2787 = vld [vmem:[#allocation9 + $0x8] sm:$0xf]
        %v2788 = vld [vmem:[#allocation9 + $0xc] sm:$0xf]
        %v2789 = vld [vmem:[#allocation9 + $0x10] sm:$0xf]
        %v2790 = vld [vmem:[#allocation9 + $0x14] sm:$0xf]
        %v2791 = vld [vmem:[#allocation9 + $0x18] sm:$0xf]
        %v2792 = vld [vmem:[#allocation9 + $0x1c] sm:$0xf]
        %v2793 = vld [vmem:[#allocation9 + $0x20] sm:$0xf]
        %v2794 = vld [vmem:[#allocation9 + $0x24] sm:$0xf]
        %v2795 = vld [vmem:[#allocation9 + $0x28] sm:$0xf]
        %v2796 = vld [vmem:[#allocation9 + $0x2c] sm:$0xf]
        %v2797 = vld [vmem:[#allocation9 + $0x30] sm:$0xf]
        %v2798 = vld [vmem:[#allocation9 + $0x34] sm:$0xf]
        %v2799 = vld [vmem:[#allocation9 + $0x38] sm:$0xf]
        %v2800 = vld [vmem:[#allocation9 + $0x3c] sm:$0xf]
        %v2801 = vld [vmem:[#allocation9 + $0x40] sm:$0xf]
        %v2802 = vld [vmem:[#allocation9 + $0x44] sm:$0xf]
        %v2803 = vld [vmem:[#allocation9 + $0x48] sm:$0xf]
        %v2804 = vld [vmem:[#allocation9 + $0x4c] sm:$0xf]
        %v2805 = vld [vmem:[#allocation9 + $0x50] sm:$0xf]
        %v2806 = vld [vmem:[#allocation9 + $0x54] sm:$0xf]
        %v2807 = vld [vmem:[#allocation9 + $0x58] sm:$0xf]
        %v2808 = vld [vmem:[#allocation9 + $0x5c] sm:$0xf]
        %v2809 = vld [vmem:[#allocation9 + $0x60] sm:$0xf]
        %v2810 = vld [vmem:[#allocation9 + $0x64] sm:$0xf]
        %v2811 = vld [vmem:[#allocation9 + $0x68] sm:$0xf]
        %v2812 = vld [vmem:[#allocation9 + $0x6c] sm:$0xf]
        %v2813 = vld [vmem:[#allocation9 + $0x70] sm:$0xf]
        %v2814 = vld [vmem:[#allocation9 + $0x74] sm:$0xf]
        %v2815 = vld [vmem:[#allocation9 + $0x78] sm:$0xf]
        %v2816 = vld [vmem:[#allocation9 + $0x7c] sm:$0xf]
        %v2817 = vld [vmem:[#allocation9 + $0x80] sm:$0xf]
        %v2818 = vld [vmem:[#allocation9 + $0x84] sm:$0xf]
        %v2819 = vld [vmem:[#allocation9 + $0x88] sm:$0xf]
        %v2820 = vld [vmem:[#allocation9 + $0x8c] sm:$0xf]
        %v2821 = vld [vmem:[#allocation9 + $0x90] sm:$0xf]
        %v2822 = vld [vmem:[#allocation9 + $0x94] sm:$0xf]
        %v2823 = vld [vmem:[#allocation9 + $0x98] sm:$0xf]
        %v2824 = vld [vmem:[#allocation9 + $0x9c] sm:$0xf]
        %v2825 = vld [vmem:[#allocation9 + $0xa0] sm:$0xf]
        %v2826 = vld [vmem:[#allocation9 + $0xa4] sm:$0xf]
        %v2827 = vld [vmem:[#allocation9 + $0xa8] sm:$0xf]
        %v2828 = vld [vmem:[#allocation9 + $0xac] sm:$0xf]
        %v2829 = vld [vmem:[#allocation9 + $0xb0] sm:$0xf]
        %v2830 = vld [vmem:[#allocation9 + $0xb4] sm:$0xf]
        %v2831 = vld [vmem:[#allocation9 + $0xb8] sm:$0xf]
        %v2832 = vld [vmem:[#allocation9 + $0xbc] sm:$0xf]
        %v2833 = vld [vmem:[#allocation9 + $0xc0] sm:$0xf]
        %v2834 = vld [vmem:[#allocation9 + $0xc4] sm:$0xf]
        %v2835 = vld [vmem:[#allocation9 + $0xc8] sm:$0xf]
        %v2836 = vld [vmem:[#allocation9 + $0xcc] sm:$0xf]
        %v2837 = vld [vmem:[#allocation9 + $0xd0] sm:$0xf]
        %v2838 = vld [vmem:[#allocation9 + $0xd4] sm:$0xf]
        %v2839 = vld [vmem:[#allocation9 + $0xd8] sm:$0xf]
        %v2840 = vld [vmem:[#allocation9 + $0xdc] sm:$0xf]
        %v2841 = vld [vmem:[#allocation9 + $0xe0] sm:$0xf]
        %v2842 = vld [vmem:[#allocation9 + $0xe4] sm:$0xf]
        %v2843 = vld [vmem:[#allocation9 + $0xe8] sm:$0xf]
        %v2844 = vld [vmem:[#allocation9 + $0xec] sm:$0xf]
        %v2845 = vld [vmem:[#allocation9 + $0xf0] sm:$0xf]
        %v2846 = vld [vmem:[#allocation9 + $0xf4] sm:$0xf]
        %v2847 = vld [vmem:[#allocation9 + $0xf8] sm:$0xf]
        %v2848 = vld [vmem:[#allocation9 + $0xfc] sm:$0xf]
        %v2849 = vld [vmem:[#allocation9 + $0x100] sm:$0xf]
        %v2850 = vld [vmem:[#allocation9 + $0x104] sm:$0xf]
        %v2851 = vld [vmem:[#allocation9 + $0x108] sm:$0xf]
        %v2852 = vld [vmem:[#allocation9 + $0x10c] sm:$0xf]
        %v2853 = vld [vmem:[#allocation9 + $0x110] sm:$0xf]
        %v2854 = vld [vmem:[#allocation9 + $0x114] sm:$0xf]
        %v2855 = vld [vmem:[#allocation9 + $0x118] sm:$0xf]
        %v2856 = vld [vmem:[#allocation9 + $0x11c] sm:$0xf]
        %v2857 = vld [vmem:[#allocation9 + $0x120] sm:$0xf]
        %v2858 = vld [vmem:[#allocation9 + $0x124] sm:$0xf]
        %v2859 = vld [vmem:[#allocation9 + $0x128] sm:$0xf]
        %v2860 = vld [vmem:[#allocation9 + $0x12c] sm:$0xf]
        %v2861 = vld [vmem:[#allocation9 + $0x130] sm:$0xf]
        %v2862 = vld [vmem:[#allocation9 + $0x134] sm:$0xf]
        %v2863 = vld [vmem:[#allocation9 + $0x138] sm:$0xf]
        %v2864 = vld [vmem:[#allocation9 + $0x13c] sm:$0xf]
        %v2865 = vld [vmem:[#allocation9 + $0x140] sm:$0xf]
        %v2866 = vld [vmem:[#allocation9 + $0x144] sm:$0xf]
        %v2867 = vld [vmem:[#allocation9 + $0x148] sm:$0xf]
        %v2868 = vld [vmem:[#allocation9 + $0x14c] sm:$0xf]
        %v2869 = vld [vmem:[#allocation9 + $0x150] sm:$0xf]
        %v2870 = vld [vmem:[#allocation9 + $0x154] sm:$0xf]
        %v2871 = vld [vmem:[#allocation9 + $0x158] sm:$0xf]
        %v2872 = vld [vmem:[#allocation9 + $0x15c] sm:$0xf]
        %v2873 = vld [vmem:[#allocation9 + $0x160] sm:$0xf]
        %v2874 = vld [vmem:[#allocation9 + $0x164] sm:$0xf]
        %v2875 = vld [vmem:[#allocation9 + $0x168] sm:$0xf]
        %v2876 = vld [vmem:[#allocation9 + $0x16c] sm:$0xf]
        %v2877 = vld [vmem:[#allocation9 + $0x170] sm:$0xf]
        %v2878 = vld [vmem:[#allocation9 + $0x174] sm:$0xf]
        %v2879 = vld [vmem:[#allocation9 + $0x178] sm:$0xf]
        %v2880 = vld [vmem:[#allocation9 + $0x17c] sm:$0xf]
        %v2881 = vld [vmem:[#allocation9 + $0x180] sm:$0xf]
        %v2882 = vld [vmem:[#allocation9 + $0x184] sm:$0xf]
        %v2883 = vld [vmem:[#allocation9 + $0x188] sm:$0xf]
        %v2884 = vld [vmem:[#allocation9 + $0x18c] sm:$0xf]
        %v2885 = vld [vmem:[#allocation9 + $0x190] sm:$0xf]
        %v2886 = vld [vmem:[#allocation9 + $0x194] sm:$0xf]
        %v2887 = vld [vmem:[#allocation9 + $0x198] sm:$0xf]
        %v2888 = vld [vmem:[#allocation9 + $0x19c] sm:$0xf]
        %v2889 = vld [vmem:[#allocation9 + $0x1a0] sm:$0xf]
        %v2890 = vld [vmem:[#allocation9 + $0x1a4] sm:$0xf]
        %v2891 = vld [vmem:[#allocation9 + $0x1a8] sm:$0xf]
        %v2892 = vld [vmem:[#allocation9 + $0x1ac] sm:$0xf]
        %v2893 = vld [vmem:[#allocation9 + $0x1b0] sm:$0xf]
        %v2894 = vld [vmem:[#allocation9 + $0x1b4] sm:$0xf]
        %v2895 = vld [vmem:[#allocation9 + $0x1b8] sm:$0xf]
        %v2896 = vld [vmem:[#allocation9 + $0x1bc] sm:$0xf]
        %v2897 = vld [vmem:[#allocation9 + $0x1c0] sm:$0xf]
        %v2898 = vld [vmem:[#allocation9 + $0x1c4] sm:$0xf]
        %v2899 = vld [vmem:[#allocation9 + $0x1c8] sm:$0xf]
        %v2900 = vld [vmem:[#allocation9 + $0x1cc] sm:$0xf]
        %v2901 = vld [vmem:[#allocation9 + $0x1d0] sm:$0xf]
        %v2902 = vld [vmem:[#allocation9 + $0x1d4] sm:$0xf]
        %v2903 = vld [vmem:[#allocation9 + $0x1d8] sm:$0xf]
        %v2904 = vld [vmem:[#allocation9 + $0x1dc] sm:$0xf]
        %v2905 = vld [vmem:[#allocation9 + $0x1e0] sm:$0xf]
        %v2906 = vld [vmem:[#allocation9 + $0x1e4] sm:$0xf]
        %v2907 = vld [vmem:[#allocation9 + $0x1e8] sm:$0xf]
        %v2908 = vld [vmem:[#allocation9 + $0x1ec] sm:$0xf]
        %v2909 = vld [vmem:[#allocation9 + $0x1f0] sm:$0xf]
        %v2910 = vld [vmem:[#allocation9 + $0x1f4] sm:$0xf]
        %v2911 = vld [vmem:[#allocation9 + $0x1f8] sm:$0xf]
        %v2912 = vld [vmem:[#allocation9 + $0x1fc] sm:$0xf]
        %v2913 = vld [vmem:[#allocation9 + $0x200] sm:$0xf]
        %v2914 = vld [vmem:[#allocation9 + $0x204] sm:$0xf]
        %v2915 = vld [vmem:[#allocation9 + $0x208] sm:$0xf]
        %v2916 = vld [vmem:[#allocation9 + $0x20c] sm:$0xf]
        %v2917 = vld [vmem:[#allocation9 + $0x210] sm:$0xf]
        %v2918 = vld [vmem:[#allocation9 + $0x214] sm:$0xf]
        %v2919 = vld [vmem:[#allocation9 + $0x218] sm:$0xf]
        %v2920 = vld [vmem:[#allocation9 + $0x21c] sm:$0xf]
        %v2921 = vld [vmem:[#allocation9 + $0x220] sm:$0xf]
        %v2922 = vld [vmem:[#allocation9 + $0x224] sm:$0xf]
        %v2923 = vld [vmem:[#allocation9 + $0x228] sm:$0xf]
        %v2924 = vld [vmem:[#allocation9 + $0x22c] sm:$0xf]
        %v2925 = vld [vmem:[#allocation9 + $0x230] sm:$0xf]
        %v2926 = vld [vmem:[#allocation9 + $0x234] sm:$0xf]
        %v2927 = vld [vmem:[#allocation9 + $0x238] sm:$0xf]
        %v2928 = vld [vmem:[#allocation9 + $0x23c] sm:$0xf]
        %v2929 = vld [vmem:[%s433 + $0x1] sm:$0xff]
        %v2930 = vld [vmem:[%s433 + $0x9] sm:$0xff]
        %v2931 = vld [vmem:[%s433 + $0x19] sm:$0xff]
        %v2932 = vld [vmem:[%s433 + $0x21] sm:$0xff]
        %v2933 = vld [vmem:[%s433 + $0x31] sm:$0xff]
        %v2934 = vld [vmem:[%s433 + $0x39] sm:$0xff]
        %v2935 = vld [vmem:[%s433 + $0x49] sm:$0xff]
        %v2936 = vld [vmem:[%s433 + $0x51] sm:$0xff]
        %v2937 = vld [vmem:[%s433 + $0x61] sm:$0xff]
        %v2938 = vld [vmem:[%s433 + $0x69] sm:$0xff]
        %v2939 = vld [vmem:[%s433 + $0x79] sm:$0xff]
        %v2940 = vld [vmem:[%s433 + $0x81] sm:$0xff]
        %v2941 = vld [vmem:[%s433 + $0x91] sm:$0xff]
        %v2942 = vld [vmem:[%s433 + $0x99] sm:$0xff]
        %v2943 = vld [vmem:[%s433 + $0xa9] sm:$0xff]
        %v2944 = vld [vmem:[%s433 + $0xb1] sm:$0xff]
        %v2945 = vld [vmem:[%s433 + $0xc1] sm:$0xff]
        %v2946 = vld [vmem:[%s433 + $0xc9] sm:$0xff]
        %v2947 = vld [vmem:[%s433 + $0xd9] sm:$0xff]
        %v2948 = vld [vmem:[%s433 + $0xe1] sm:$0xff]
        %v2949 = vld [vmem:[%s433 + $0xf1] sm:$0xff]
        %v2950 = vld [vmem:[%s433 + $0xf9] sm:$0xff]
        %v2951 = vld [vmem:[%s433 + $0x109] sm:$0xff]
        %v2952 = vld [vmem:[%s433 + $0x111] sm:$0xff]
        %v2953 = vld [vmem:[%s433 + $0x121] sm:$0xff]
        %v2954 = vld [vmem:[%s433 + $0x129] sm:$0xff]
        %v2955 = vld [vmem:[%s433 + $0x139] sm:$0xff]
        %v2956 = vld [vmem:[%s433 + $0x141] sm:$0xff]
        %v2957 = vld [vmem:[%s433 + $0x151] sm:$0xff]
        %v2958 = vld [vmem:[%s433 + $0x159] sm:$0xff]
        %v2959 = vld [vmem:[%s433 + $0x169] sm:$0xff]
        %v2960 = vld [vmem:[%s433 + $0x171] sm:$0xff]
        %v2961 = vpack.c.bf16 %v2930, %v2929
        %v2962 = vpack.c.bf16 %v2932, %v2931
        %v2963 = vpack.c.bf16 %v2934, %v2933
        %v2964 = vpack.c.bf16 %v2936, %v2935
        %v2965 = vpack.c.bf16 %v2938, %v2937
        %v2966 = vpack.c.bf16 %v2940, %v2939
        %v2967 = vpack.c.bf16 %v2942, %v2941
        %v2968 = vpack.c.bf16 %v2944, %v2943
        %v2969 = vpack.c.bf16 %v2946, %v2945
        %v2970 = vpack.c.bf16 %v2948, %v2947
        %v2971 = vpack.c.bf16 %v2950, %v2949
        %v2972 = vpack.c.bf16 %v2952, %v2951
        %v2973 = vpack.c.bf16 %v2954, %v2953
        %v2974 = vpack.c.bf16 %v2956, %v2955
        %v2975 = vpack.c.bf16 %v2958, %v2957
        %v2976 = vpack.c.bf16 %v2960, %v2959
        %v2977 = vld [vmem:[#allocation10] sm:$0xf]
        %v2978 = vld [vmem:[#allocation10 + $0x4] sm:$0xf]
        %v2979 = vld [vmem:[#allocation10 + $0x8] sm:$0xf]
        %v2980 = vld [vmem:[#allocation10 + $0xc] sm:$0xf]
        %v2981 = vld [vmem:[#allocation10 + $0x10] sm:$0xf]
        %v2982 = vld [vmem:[#allocation10 + $0x14] sm:$0xf]
        %v2983 = vld [vmem:[#allocation10 + $0x18] sm:$0xf]
        %v2984 = vld [vmem:[#allocation10 + $0x1c] sm:$0xf]
        %v2985 = vld [vmem:[#allocation10 + $0x20] sm:$0xf]
        %v2986 = vld [vmem:[#allocation10 + $0x24] sm:$0xf]
        %v2987 = vld [vmem:[#allocation10 + $0x28] sm:$0xf]
        %v2988 = vld [vmem:[#allocation10 + $0x2c] sm:$0xf]
        %v2989 = vld [vmem:[#allocation10 + $0x30] sm:$0xf]
        %v2990 = vld [vmem:[#allocation10 + $0x34] sm:$0xf]
        %v2991 = vld [vmem:[#allocation10 + $0x38] sm:$0xf]
        %v2992 = vld [vmem:[#allocation10 + $0x3c] sm:$0xf]
        %v3009 = vunpack.c.l.b16 %v2977
        %v3010 = vunpack.c.l.b16 %v2978
        %v3011 = vunpack.c.l.b16 %v2979
        %v3012 = vunpack.c.l.b16 %v2980
        %v3013 = vunpack.c.l.b16 %v2981
        %v3014 = vunpack.c.l.b16 %v2982
        %v3015 = vunpack.c.l.b16 %v2983
        %v3016 = vunpack.c.l.b16 %v2984
        %v3017 = vunpack.c.l.b16 %v2985
        %v3018 = vunpack.c.l.b16 %v2986
        %v3019 = vunpack.c.l.b16 %v2987
        %v3020 = vunpack.c.l.b16 %v2988
        %v3021 = vunpack.c.l.b16 %v2989
        %v3022 = vunpack.c.l.b16 %v2990
        %v3023 = vunpack.c.l.b16 %v2991
        %v3024 = vunpack.c.l.b16 %v2992
        %v3025 = vpack.c.b16 %v3010, %v3009
        %v3026 = vpack.c.b16 %v3012, %v3011
        %v3027 = vpack.c.b16 %v3014, %v3013
        %v3028 = vpack.c.b16 %v3016, %v3015
        %v3029 = vpack.c.b16 %v3018, %v3017
        %v3030 = vpack.c.b16 %v3020, %v3019
        %v3031 = vpack.c.b16 %v3022, %v3021
        %v3032 = vpack.c.b16 %v3024, %v3023
        %3041 = vmatprep.subr.bf16.mxu0 0
        %3042 = vmatpush1.bf16.msra.mxu0 %v3032
        %3043 = vmatprep.subr.bf16.mxu0 0
        %3044 = vmatpush1.bf16.msra.mxu0 %v3031
        %3045 = vmatprep.subr.bf16.mxu0 0
        %3046 = vmatpush1.bf16.msra.mxu0 %v3030
        %3047 = vmatprep.subr.bf16.mxu0 0
        %3048 = vmatpush1.bf16.msra.mxu0 %v3029
        %3049 = vmatprep.subr.bf16.mxu0 0
        %3050 = vmatpush1.bf16.msra.mxu0 %v3028
        %3051 = vmatprep.subr.bf16.mxu0 0
        %3052 = vmatpush1.bf16.msra.mxu0 %v3027
        %3053 = vmatprep.subr.bf16.mxu0 0
        %3054 = vmatpush1.bf16.msra.mxu0 %v3026
        %3055 = vmatprep.subr.bf16.mxu0 0
        %3056 = vmatpush1.bf16.msra.mxu0 %v3025
        %3057 = vmatprep.subr.bf16.mxu0 0
        %3058 = vmatpush2.bf16.msra.mxu0 0
        %3059 = vmatprep.subr.bf16.mxu0 0
        %3060 = vmatpush2.bf16.msra.mxu0 0
        %3061 = vmatprep.subr.bf16.mxu0 0
        %3062 = vmatpush2.bf16.msra.mxu0 0
        %3063 = vmatprep.subr.bf16.mxu0 0
        %3064 = vmatpush2.bf16.msra.mxu0 0
        %3065 = vmatprep.subr.bf16.mxu0 0
        %3066 = vmatpush2.bf16.msra.mxu0 0
        %3067 = vmatprep.subr.bf16.mxu0 0
        %3068 = vmatpush2.bf16.msra.mxu0 0
        %3069 = vmatprep.subr.bf16.mxu0 0
        %3070 = vmatpush2.bf16.msra.mxu0 0
        %3071 = vmatprep.subr.bf16.mxu0 0
        %3072 = vmatpush2.bf16.msra.mxu0 0
        %3073 = vmatprep.mubr.bf16.mxu0 0
        %3074 = vmatmul.mubr.bf16.gmra.mxu0 %v2961
        %v3075 = vpop.f32.mrf.mxu0
        %v3076 = vadd.f32 0.0, %v3075
        %v3077 = vpop.f32.mrf.mxu0
        %v3078 = vpop.f32.mrf.mxu0
        %v3079 = vadd.f32 0.0, %v3078
        %v3080 = vpop.f32.mrf.mxu0
        %3081 = vmatprep.mubr.bf16.mxu0 0
        %3082 = vmatmul.mubr.bf16.gmra.mxu0 %v2962
        %v3083 = vpop.f32.mrf.mxu0
        %v3084 = vadd.f32 0.0, %v3083
        %v3085 = vpop.f32.mrf.mxu0
        %v3086 = vpop.f32.mrf.mxu0
        %v3087 = vadd.f32 0.0, %v3086
        %v3088 = vpop.f32.mrf.mxu0
        %3089 = vmatprep.mubr.bf16.mxu0 0
        %3090 = vmatmul.mubr.bf16.gmra.mxu0 %v2963
        %v3091 = vpop.f32.mrf.mxu0
        %v3092 = vadd.f32 0.0, %v3091
        %v3093 = vpop.f32.mrf.mxu0
        %v3094 = vpop.f32.mrf.mxu0
        %v3095 = vadd.f32 0.0, %v3094
        %v3096 = vpop.f32.mrf.mxu0
        %3097 = vmatprep.mubr.bf16.mxu0 0
        %3098 = vmatmul.mubr.bf16.gmra.mxu0 %v2964
        %v3099 = vpop.f32.mrf.mxu0
        %v3100 = vadd.f32 0.0, %v3099
        %v3101 = vpop.f32.mrf.mxu0
        %v3102 = vpop.f32.mrf.mxu0
        %v3103 = vadd.f32 0.0, %v3102
        %v3104 = vpop.f32.mrf.mxu0
        %3105 = vmatprep.mubr.bf16.mxu0 0
        %3106 = vmatmul.mubr.bf16.gmra.mxu0 %v2965
        %v3107 = vpop.f32.mrf.mxu0
        %v3108 = vadd.f32 0.0, %v3107
        %v3109 = vpop.f32.mrf.mxu0
        %v3110 = vpop.f32.mrf.mxu0
        %v3111 = vadd.f32 0.0, %v3110
        %v3112 = vpop.f32.mrf.mxu0
        %3113 = vmatprep.mubr.bf16.mxu0 0
        %3114 = vmatmul.mubr.bf16.gmra.mxu0 %v2966
        %v3115 = vpop.f32.mrf.mxu0
        %v3116 = vadd.f32 0.0, %v3115
        %v3117 = vpop.f32.mrf.mxu0
        %v3118 = vpop.f32.mrf.mxu0
        %v3119 = vadd.f32 0.0, %v3118
        %v3120 = vpop.f32.mrf.mxu0
        %3121 = vmatprep.mubr.bf16.mxu0 0
        %3122 = vmatmul.mubr.bf16.gmra.mxu0 %v2967
        %v3123 = vpop.f32.mrf.mxu0
        %v3124 = vadd.f32 0.0, %v3123
        %v3125 = vpop.f32.mrf.mxu0
        %v3126 = vpop.f32.mrf.mxu0
        %v3127 = vadd.f32 0.0, %v3126
        %v3128 = vpop.f32.mrf.mxu0
        %3129 = vmatprep.mubr.bf16.mxu0 0
        %3130 = vmatmul.mubr.bf16.gmra.mxu0 %v2968
        %v3131 = vpop.f32.mrf.mxu0
        %v3132 = vadd.f32 0.0, %v3131
        %v3133 = vpop.f32.mrf.mxu0
        %v3134 = vpop.f32.mrf.mxu0
        %v3135 = vadd.f32 0.0, %v3134
        %v3136 = vpop.f32.mrf.mxu0
        %3137 = vmatprep.mubr.bf16.mxu0 0
        %3138 = vmatmul.mubr.bf16.gmra.mxu0 %v2969
        %v3139 = vpop.f32.mrf.mxu0
        %v3140 = vadd.f32 0.0, %v3139
        %v3141 = vpop.f32.mrf.mxu0
        %v3142 = vpop.f32.mrf.mxu0
        %v3143 = vadd.f32 0.0, %v3142
        %v3144 = vpop.f32.mrf.mxu0
        %3145 = vmatprep.mubr.bf16.mxu0 0
        %3146 = vmatmul.mubr.bf16.gmra.mxu0 %v2970
        %v3147 = vpop.f32.mrf.mxu0
        %v3148 = vadd.f32 0.0, %v3147
        %v3149 = vpop.f32.mrf.mxu0
        %v3150 = vpop.f32.mrf.mxu0
        %v3151 = vadd.f32 0.0, %v3150
        %v3152 = vpop.f32.mrf.mxu0
        %3153 = vmatprep.mubr.bf16.mxu0 0
        %3154 = vmatmul.mubr.bf16.gmra.mxu0 %v2971
        %v3155 = vpop.f32.mrf.mxu0
        %v3156 = vadd.f32 0.0, %v3155
        %v3157 = vpop.f32.mrf.mxu0
        %v3158 = vpop.f32.mrf.mxu0
        %v3159 = vadd.f32 0.0, %v3158
        %v3160 = vpop.f32.mrf.mxu0
        %3161 = vmatprep.mubr.bf16.mxu0 0
        %3162 = vmatmul.mubr.bf16.gmra.mxu0 %v2972
        %v3163 = vpop.f32.mrf.mxu0
        %v3164 = vadd.f32 0.0, %v3163
        %v3165 = vpop.f32.mrf.mxu0
        %v3166 = vpop.f32.mrf.mxu0
        %v3167 = vadd.f32 0.0, %v3166
        %v3168 = vpop.f32.mrf.mxu0
        %3169 = vmatprep.mubr.bf16.mxu0 0
        %3170 = vmatmul.mubr.bf16.gmra.mxu0 %v2973
        %v3171 = vpop.f32.mrf.mxu0
        %v3172 = vadd.f32 0.0, %v3171
        %v3173 = vpop.f32.mrf.mxu0
        %v3174 = vpop.f32.mrf.mxu0
        %v3175 = vadd.f32 0.0, %v3174
        %v3176 = vpop.f32.mrf.mxu0
        %3177 = vmatprep.mubr.bf16.mxu0 0
        %3178 = vmatmul.mubr.bf16.gmra.mxu0 %v2974
        %v3179 = vpop.f32.mrf.mxu0
        %v3180 = vadd.f32 0.0, %v3179
        %v3181 = vpop.f32.mrf.mxu0
        %v3182 = vpop.f32.mrf.mxu0
        %v3183 = vadd.f32 0.0, %v3182
        %v3184 = vpop.f32.mrf.mxu0
        %3185 = vmatprep.mubr.bf16.mxu0 0
        %3186 = vmatmul.mubr.bf16.gmra.mxu0 %v2975
        %v3187 = vpop.f32.mrf.mxu0
        %v3188 = vadd.f32 0.0, %v3187
        %v3189 = vpop.f32.mrf.mxu0
        %v3190 = vpop.f32.mrf.mxu0
        %v3191 = vadd.f32 0.0, %v3190
        %v3192 = vpop.f32.mrf.mxu0
        %3193 = vmatprep.mubr.bf16.mxu0 0
        %3194 = vmatmul.mubr.bf16.gmra.mxu0 %v2976
        %v3195 = vpop.f32.mrf.mxu0
        %v3196 = vadd.f32 0.0, %v3195
        %v3197 = vpop.f32.mrf.mxu0
        %v3198 = vpop.f32.mrf.mxu0
        %v3199 = vadd.f32 0.0, %v3198
        %v3200 = vpop.f32.mrf.mxu0
        %3201 = vdwg.mxu0
        %v3346 = vunpack.c.l.b16 %v2785
        %v3347 = vunpack.c.l.b16 %v2786
        %v3348 = vunpack.c.l.b16 %v2787
        %v3349 = vunpack.c.l.b16 %v2788
        %v3350 = vunpack.c.l.b16 %v2789
        %v3351 = vunpack.c.l.b16 %v2790
        %v3352 = vunpack.c.l.b16 %v2791
        %v3353 = vunpack.c.l.b16 %v2792
        %v3354 = vunpack.c.l.b16 %v2793
        %v3355 = vunpack.c.l.b16 %v2794
        %v3356 = vunpack.c.l.b16 %v2795
        %v3357 = vunpack.c.l.b16 %v2796
        %v3358 = vunpack.c.l.b16 %v2797
        %v3359 = vunpack.c.l.b16 %v2798
        %v3360 = vunpack.c.l.b16 %v2799
        %v3361 = vunpack.c.l.b16 %v2800
        %v3362 = vunpack.c.l.b16 %v2801
        %v3363 = vunpack.c.l.b16 %v2802
        %v3364 = vunpack.c.l.b16 %v2803
        %v3365 = vunpack.c.l.b16 %v2804
        %v3366 = vunpack.c.l.b16 %v2805
        %v3367 = vunpack.c.l.b16 %v2806
        %v3368 = vunpack.c.l.b16 %v2807
        %v3369 = vunpack.c.l.b16 %v2808
        %v3370 = vunpack.c.l.b16 %v2809
        %v3371 = vunpack.c.l.b16 %v2810
        %v3372 = vunpack.c.l.b16 %v2811
        %v3373 = vunpack.c.l.b16 %v2812
        %v3374 = vunpack.c.l.b16 %v2813
        %v3375 = vunpack.c.l.b16 %v2814
        %v3376 = vunpack.c.l.b16 %v2815
        %v3377 = vunpack.c.l.b16 %v2816
        %v3378 = vunpack.c.l.b16 %v2817
        %v3379 = vunpack.c.l.b16 %v2818
        %v3380 = vunpack.c.l.b16 %v2819
        %v3381 = vunpack.c.l.b16 %v2820
        %v3382 = vunpack.c.l.b16 %v2821
        %v3383 = vunpack.c.l.b16 %v2822
        %v3384 = vunpack.c.l.b16 %v2823
        %v3385 = vunpack.c.l.b16 %v2824
        %v3386 = vunpack.c.l.b16 %v2825
        %v3387 = vunpack.c.l.b16 %v2826
        %v3388 = vunpack.c.l.b16 %v2827
        %v3389 = vunpack.c.l.b16 %v2828
        %v3390 = vunpack.c.l.b16 %v2829
        %v3391 = vunpack.c.l.b16 %v2830
        %v3392 = vunpack.c.l.b16 %v2831
        %v3393 = vunpack.c.l.b16 %v2832
        %v3394 = vunpack.c.l.b16 %v2833
        %v3395 = vunpack.c.l.b16 %v2834
        %v3396 = vunpack.c.l.b16 %v2835
        %v3397 = vunpack.c.l.b16 %v2836
        %v3398 = vunpack.c.l.b16 %v2837
        %v3399 = vunpack.c.l.b16 %v2838
        %v3400 = vunpack.c.l.b16 %v2839
        %v3401 = vunpack.c.l.b16 %v2840
        %v3402 = vunpack.c.l.b16 %v2841
        %v3403 = vunpack.c.l.b16 %v2842
        %v3404 = vunpack.c.l.b16 %v2843
        %v3405 = vunpack.c.l.b16 %v2844
        %v3406 = vunpack.c.l.b16 %v2845
        %v3407 = vunpack.c.l.b16 %v2846
        %v3408 = vunpack.c.l.b16 %v2847
        %v3409 = vunpack.c.l.b16 %v2848
        %v3410 = vunpack.c.l.b16 %v2849
        %v3411 = vunpack.c.l.b16 %v2850
        %v3412 = vunpack.c.l.b16 %v2851
        %v3413 = vunpack.c.l.b16 %v2852
        %v3414 = vunpack.c.l.b16 %v2853
        %v3415 = vunpack.c.l.b16 %v2854
        %v3416 = vunpack.c.l.b16 %v2855
        %v3417 = vunpack.c.l.b16 %v2856
        %v3418 = vunpack.c.l.b16 %v2857
        %v3419 = vunpack.c.l.b16 %v2858
        %v3420 = vunpack.c.l.b16 %v2859
        %v3421 = vunpack.c.l.b16 %v2860
        %v3422 = vunpack.c.l.b16 %v2861
        %v3423 = vunpack.c.l.b16 %v2862
        %v3424 = vunpack.c.l.b16 %v2863
        %v3425 = vunpack.c.l.b16 %v2864
        %v3426 = vunpack.c.l.b16 %v2865
        %v3427 = vunpack.c.l.b16 %v2866
        %v3428 = vunpack.c.l.b16 %v2867
        %v3429 = vunpack.c.l.b16 %v2868
        %v3430 = vunpack.c.l.b16 %v2869
        %v3431 = vunpack.c.l.b16 %v2870
        %v3432 = vunpack.c.l.b16 %v2871
        %v3433 = vunpack.c.l.b16 %v2872
        %v3434 = vunpack.c.l.b16 %v2873
        %v3435 = vunpack.c.l.b16 %v2874
        %v3436 = vunpack.c.l.b16 %v2875
        %v3437 = vunpack.c.l.b16 %v2876
        %v3438 = vunpack.c.l.b16 %v2877
        %v3439 = vunpack.c.l.b16 %v2878
        %v3440 = vunpack.c.l.b16 %v2879
        %v3441 = vunpack.c.l.b16 %v2880
        %v3442 = vunpack.c.l.b16 %v2881
        %v3443 = vunpack.c.l.b16 %v2882
        %v3444 = vunpack.c.l.b16 %v2883
        %v3445 = vunpack.c.l.b16 %v2884
        %v3446 = vunpack.c.l.b16 %v2885
        %v3447 = vunpack.c.l.b16 %v2886
        %v3448 = vunpack.c.l.b16 %v2887
        %v3449 = vunpack.c.l.b16 %v2888
        %v3450 = vunpack.c.l.b16 %v2889
        %v3451 = vunpack.c.l.b16 %v2890
        %v3452 = vunpack.c.l.b16 %v2891
        %v3453 = vunpack.c.l.b16 %v2892
        %v3454 = vunpack.c.l.b16 %v2893
        %v3455 = vunpack.c.l.b16 %v2894
        %v3456 = vunpack.c.l.b16 %v2895
        %v3457 = vunpack.c.l.b16 %v2896
        %v3458 = vunpack.c.l.b16 %v2897
        %v3459 = vunpack.c.l.b16 %v2898
        %v3460 = vunpack.c.l.b16 %v2899
        %v3461 = vunpack.c.l.b16 %v2900
        %v3462 = vunpack.c.l.b16 %v2901
        %v3463 = vunpack.c.l.b16 %v2902
        %v3464 = vunpack.c.l.b16 %v2903
        %v3465 = vunpack.c.l.b16 %v2904
        %v3466 = vunpack.c.l.b16 %v2905
        %v3467 = vunpack.c.l.b16 %v2906
        %v3468 = vunpack.c.l.b16 %v2907
        %v3469 = vunpack.c.l.b16 %v2908
        %v3470 = vunpack.c.l.b16 %v2909
        %v3471 = vunpack.c.l.b16 %v2910
        %v3472 = vunpack.c.l.b16 %v2911
        %v3473 = vunpack.c.l.b16 %v2912
        %v3474 = vunpack.c.l.b16 %v2913
        %v3475 = vunpack.c.l.b16 %v2914
        %v3476 = vunpack.c.l.b16 %v2915
        %v3477 = vunpack.c.l.b16 %v2916
        %v3478 = vunpack.c.l.b16 %v2917
        %v3479 = vunpack.c.l.b16 %v2918
        %v3480 = vunpack.c.l.b16 %v2919
        %v3481 = vunpack.c.l.b16 %v2920
        %v3482 = vunpack.c.l.b16 %v2921
        %v3483 = vunpack.c.l.b16 %v2922
        %v3484 = vunpack.c.l.b16 %v2923
        %v3485 = vunpack.c.l.b16 %v2924
        %v3486 = vunpack.c.l.b16 %v2925
        %v3487 = vunpack.c.l.b16 %v2926
        %v3488 = vunpack.c.l.b16 %v2927
        %v3489 = vunpack.c.l.b16 %v2928
        %v3490 = vpack.c.b16 %v3347, %v3346
        %v3491 = vpack.c.b16 %v3349, %v3348
        %v3492 = vpack.c.b16 %v3351, %v3350
        %v3493 = vpack.c.b16 %v3353, %v3352
        %v3494 = vpack.c.b16 %v3355, %v3354
        %v3495 = vpack.c.b16 %v3357, %v3356
        %v3496 = vpack.c.b16 %v3359, %v3358
        %v3497 = vpack.c.b16 %v3361, %v3360
        %v3498 = vpack.c.b16 %v3363, %v3362
        %v3499 = vpack.c.b16 %v3365, %v3364
        %v3500 = vpack.c.b16 %v3367, %v3366
        %v3501 = vpack.c.b16 %v3369, %v3368
        %v3502 = vpack.c.b16 %v3371, %v3370
        %v3503 = vpack.c.b16 %v3373, %v3372
        %v3504 = vpack.c.b16 %v3375, %v3374
        %v3505 = vpack.c.b16 %v3377, %v3376
        %v3506 = vpack.c.b16 %v3379, %v3378
        %v3507 = vpack.c.b16 %v3381, %v3380
        %v3508 = vpack.c.b16 %v3383, %v3382
        %v3509 = vpack.c.b16 %v3385, %v3384
        %v3510 = vpack.c.b16 %v3387, %v3386
        %v3511 = vpack.c.b16 %v3389, %v3388
        %v3512 = vpack.c.b16 %v3391, %v3390
        %v3513 = vpack.c.b16 %v3393, %v3392
        %v3514 = vpack.c.b16 %v3395, %v3394
        %v3515 = vpack.c.b16 %v3397, %v3396
        %v3516 = vpack.c.b16 %v3399, %v3398
        %v3517 = vpack.c.b16 %v3401, %v3400
        %v3518 = vpack.c.b16 %v3403, %v3402
        %v3519 = vpack.c.b16 %v3405, %v3404
        %v3520 = vpack.c.b16 %v3407, %v3406
        %v3521 = vpack.c.b16 %v3409, %v3408
        %v3522 = vpack.c.b16 %v3411, %v3410
        %v3523 = vpack.c.b16 %v3413, %v3412
        %v3524 = vpack.c.b16 %v3415, %v3414
        %v3525 = vpack.c.b16 %v3417, %v3416
        %v3526 = vpack.c.b16 %v3419, %v3418
        %v3527 = vpack.c.b16 %v3421, %v3420
        %v3528 = vpack.c.b16 %v3423, %v3422
        %v3529 = vpack.c.b16 %v3425, %v3424
        %v3530 = vpack.c.b16 %v3427, %v3426
        %v3531 = vpack.c.b16 %v3429, %v3428
        %v3532 = vpack.c.b16 %v3431, %v3430
        %v3533 = vpack.c.b16 %v3433, %v3432
        %v3534 = vpack.c.b16 %v3435, %v3434
        %v3535 = vpack.c.b16 %v3437, %v3436
        %v3536 = vpack.c.b16 %v3439, %v3438
        %v3537 = vpack.c.b16 %v3441, %v3440
        %v3538 = vpack.c.b16 %v3443, %v3442
        %v3539 = vpack.c.b16 %v3445, %v3444
        %v3540 = vpack.c.b16 %v3447, %v3446
        %v3541 = vpack.c.b16 %v3449, %v3448
        %v3542 = vpack.c.b16 %v3451, %v3450
        %v3543 = vpack.c.b16 %v3453, %v3452
        %v3544 = vpack.c.b16 %v3455, %v3454
        %v3545 = vpack.c.b16 %v3457, %v3456
        %v3546 = vpack.c.b16 %v3459, %v3458
        %v3547 = vpack.c.b16 %v3461, %v3460
        %v3548 = vpack.c.b16 %v3463, %v3462
        %v3549 = vpack.c.b16 %v3465, %v3464
        %v3550 = vpack.c.b16 %v3467, %v3466
        %v3551 = vpack.c.b16 %v3469, %v3468
        %v3552 = vpack.c.b16 %v3471, %v3470
        %v3553 = vpack.c.b16 %v3473, %v3472
        %v3554 = vpack.c.b16 %v3475, %v3474
        %v3555 = vpack.c.b16 %v3477, %v3476
        %v3556 = vpack.c.b16 %v3479, %v3478
        %v3557 = vpack.c.b16 %v3481, %v3480
        %v3558 = vpack.c.b16 %v3483, %v3482
        %v3559 = vpack.c.b16 %v3485, %v3484
        %v3560 = vpack.c.b16 %v3487, %v3486
        %v3561 = vpack.c.b16 %v3489, %v3488
        %3634 = vmatprep.subr.bf16.mxu0 0
        %3635 = vmatpush1.bf16.msra.mxu0 %v3497
        %3636 = vmatprep.subr.bf16.mxu0 0
        %3637 = vmatpush1.bf16.msra.mxu0 %v3496
        %3638 = vmatprep.subr.bf16.mxu0 0
        %3639 = vmatpush1.bf16.msra.mxu0 %v3495
        %3640 = vmatprep.subr.bf16.mxu0 0
        %3641 = vmatpush1.bf16.msra.mxu0 %v3494
        %3642 = vmatprep.subr.bf16.mxu0 0
        %3643 = vmatpush1.bf16.msra.mxu0 %v3493
        %3644 = vmatprep.subr.bf16.mxu0 0
        %3645 = vmatpush1.bf16.msra.mxu0 %v3492
        %3646 = vmatprep.subr.bf16.mxu0 0
        %3647 = vmatpush1.bf16.msra.mxu0 %v3491
        %3648 = vmatprep.subr.bf16.mxu0 0
        %3649 = vmatpush1.bf16.msra.mxu0 %v3490
        %3650 = vmatprep.subr.bf16.mxu0 0
        %3651 = vmatpush2.bf16.msra.mxu0 %v3505
        %3652 = vmatprep.subr.bf16.mxu0 0
        %3653 = vmatpush2.bf16.msra.mxu0 %v3504
        %3654 = vmatprep.subr.bf16.mxu0 0
        %3655 = vmatpush2.bf16.msra.mxu0 %v3503
        %3656 = vmatprep.subr.bf16.mxu0 0
        %3657 = vmatpush2.bf16.msra.mxu0 %v3502
        %3658 = vmatprep.subr.bf16.mxu0 0
        %3659 = vmatpush2.bf16.msra.mxu0 %v3501
        %3660 = vmatprep.subr.bf16.mxu0 0
        %3661 = vmatpush2.bf16.msra.mxu0 %v3500
        %3662 = vmatprep.subr.bf16.mxu0 0
        %3663 = vmatpush2.bf16.msra.mxu0 %v3499
        %3664 = vmatprep.subr.bf16.mxu0 0
        %3665 = vmatpush2.bf16.msra.mxu0 %v3498
        %3666 = vmatprep.mubr.bf16.mxu0 %v2454
        %3667 = vmatmul.mubr.bf16.gmra.mxu0 %v2407
        %v3668 = vpop.f32.mrf.mxu0
        %v3669 = vadd.f32 %v3076, %v3668
        %v3670 = vpop.f32.mrf.mxu0
        %v3671 = vpop.f32.mrf.mxu0
        %v3672 = vadd.f32 %v3079, %v3671
        %v3673 = vpop.f32.mrf.mxu0
        %3674 = vmatprep.mubr.bf16.mxu0 %v2466
        %3675 = vmatmul.mubr.bf16.gmra.mxu0 %v2409
        %v3676 = vpop.f32.mrf.mxu0
        %v3677 = vadd.f32 %v3084, %v3676
        %v3678 = vpop.f32.mrf.mxu0
        %v3679 = vpop.f32.mrf.mxu0
        %v3680 = vadd.f32 %v3087, %v3679
        %v3681 = vpop.f32.mrf.mxu0
        %3682 = vmatprep.mubr.bf16.mxu0 %v2478
        %3683 = vmatmul.mubr.bf16.gmra.mxu0 %v2411
        %v3684 = vpop.f32.mrf.mxu0
        %v3685 = vadd.f32 %v3092, %v3684
        %v3686 = vpop.f32.mrf.mxu0
        %v3687 = vpop.f32.mrf.mxu0
        %v3688 = vadd.f32 %v3095, %v3687
        %v3689 = vpop.f32.mrf.mxu0
        %3690 = vmatprep.mubr.bf16.mxu0 %v2490
        %3691 = vmatmul.mubr.bf16.gmra.mxu0 %v2413
        %v3692 = vpop.f32.mrf.mxu0
        %v3693 = vadd.f32 %v3100, %v3692
        %v3694 = vpop.f32.mrf.mxu0
        %v3695 = vpop.f32.mrf.mxu0
        %v3696 = vadd.f32 %v3103, %v3695
        %v3697 = vpop.f32.mrf.mxu0
        %3698 = vmatprep.mubr.bf16.mxu0 %v2502
        %3699 = vmatmul.mubr.bf16.gmra.mxu0 %v2415
        %v3700 = vpop.f32.mrf.mxu0
        %v3701 = vadd.f32 %v3108, %v3700
        %v3702 = vpop.f32.mrf.mxu0
        %v3703 = vpop.f32.mrf.mxu0
        %v3704 = vadd.f32 %v3111, %v3703
        %v3705 = vpop.f32.mrf.mxu0
        %3706 = vmatprep.mubr.bf16.mxu0 %v2514
        %3707 = vmatmul.mubr.bf16.gmra.mxu0 %v2417
        %v3708 = vpop.f32.mrf.mxu0
        %v3709 = vadd.f32 %v3116, %v3708
        %v3710 = vpop.f32.mrf.mxu0
        %v3711 = vpop.f32.mrf.mxu0
        %v3712 = vadd.f32 %v3119, %v3711
        %v3713 = vpop.f32.mrf.mxu0
        %3714 = vmatprep.mubr.bf16.mxu0 %v2526
        %3715 = vmatmul.mubr.bf16.gmra.mxu0 %v2419
        %v3716 = vpop.f32.mrf.mxu0
        %v3717 = vadd.f32 %v3124, %v3716
        %v3718 = vpop.f32.mrf.mxu0
        %v3719 = vpop.f32.mrf.mxu0
        %v3720 = vadd.f32 %v3127, %v3719
        %v3721 = vpop.f32.mrf.mxu0
        %3722 = vmatprep.mubr.bf16.mxu0 %v2538
        %3723 = vmatmul.mubr.bf16.gmra.mxu0 %v2421
        %v3724 = vpop.f32.mrf.mxu0
        %v3725 = vadd.f32 %v3132, %v3724
        %v3726 = vpop.f32.mrf.mxu0
        %v3727 = vpop.f32.mrf.mxu0
        %v3728 = vadd.f32 %v3135, %v3727
        %v3729 = vpop.f32.mrf.mxu0
        %3730 = vmatprep.mubr.bf16.mxu0 %v2550
        %3731 = vmatmul.mubr.bf16.gmra.mxu0 %v2423
        %v3732 = vpop.f32.mrf.mxu0
        %v3733 = vadd.f32 %v3140, %v3732
        %v3734 = vpop.f32.mrf.mxu0
        %v3735 = vpop.f32.mrf.mxu0
        %v3736 = vadd.f32 %v3143, %v3735
        %v3737 = vpop.f32.mrf.mxu0
        %3738 = vmatprep.mubr.bf16.mxu0 %v2562
        %3739 = vmatmul.mubr.bf16.gmra.mxu0 %v2425
        %v3740 = vpop.f32.mrf.mxu0
        %v3741 = vadd.f32 %v3148, %v3740
        %v3742 = vpop.f32.mrf.mxu0
        %v3743 = vpop.f32.mrf.mxu0
        %v3744 = vadd.f32 %v3151, %v3743
        %v3745 = vpop.f32.mrf.mxu0
        %3746 = vmatprep.mubr.bf16.mxu0 %v2574
        %3747 = vmatmul.mubr.bf16.gmra.mxu0 %v2427
        %v3748 = vpop.f32.mrf.mxu0
        %v3749 = vadd.f32 %v3156, %v3748
        %v3750 = vpop.f32.mrf.mxu0
        %v3751 = vpop.f32.mrf.mxu0
        %v3752 = vadd.f32 %v3159, %v3751
        %v3753 = vpop.f32.mrf.mxu0
        %3754 = vmatprep.mubr.bf16.mxu0 %v2586
        %3755 = vmatmul.mubr.bf16.gmra.mxu0 %v2429
        %v3756 = vpop.f32.mrf.mxu0
        %v3757 = vadd.f32 %v3164, %v3756
        %v3758 = vpop.f32.mrf.mxu0
        %v3759 = vpop.f32.mrf.mxu0
        %v3760 = vadd.f32 %v3167, %v3759
        %v3761 = vpop.f32.mrf.mxu0
        %3762 = vmatprep.mubr.bf16.mxu0 %v2598
        %3763 = vmatmul.mubr.bf16.gmra.mxu0 %v2431
        %v3764 = vpop.f32.mrf.mxu0
        %v3765 = vadd.f32 %v3172, %v3764
        %v3766 = vpop.f32.mrf.mxu0
        %v3767 = vpop.f32.mrf.mxu0
        %v3768 = vadd.f32 %v3175, %v3767
        %v3769 = vpop.f32.mrf.mxu0
        %3770 = vmatprep.mubr.bf16.mxu0 %v2610
        %3771 = vmatmul.mubr.bf16.gmra.mxu0 %v2433
        %v3772 = vpop.f32.mrf.mxu0
        %v3773 = vadd.f32 %v3180, %v3772
        %v3774 = vpop.f32.mrf.mxu0
        %v3775 = vpop.f32.mrf.mxu0
        %v3776 = vadd.f32 %v3183, %v3775
        %v3777 = vpop.f32.mrf.mxu0
        %3778 = vmatprep.mubr.bf16.mxu0 %v2622
        %3779 = vmatmul.mubr.bf16.gmra.mxu0 %v2435
        %v3780 = vpop.f32.mrf.mxu0
        %v3781 = vadd.f32 %v3188, %v3780
        %v3782 = vpop.f32.mrf.mxu0
        %v3783 = vpop.f32.mrf.mxu0
        %v3784 = vadd.f32 %v3191, %v3783
        %v3785 = vpop.f32.mrf.mxu0
        %3786 = vmatprep.mubr.bf16.mxu0 %v2634
        %3787 = vmatmul.mubr.bf16.gmra.mxu0 %v2437
        %v3788 = vpop.f32.mrf.mxu0
        %v3789 = vadd.f32 %v3196, %v3788
        %v3790 = vpop.f32.mrf.mxu0
        %v3791 = vpop.f32.mrf.mxu0
        %v3792 = vadd.f32 %v3199, %v3791
        %v3793 = vpop.f32.mrf.mxu0
        %3794 = vdwg.mxu0
        %3795 = vmatprep.subr.bf16.mxu0 0
        %3796 = vmatpush1.bf16.msra.mxu0 %v3513
        %3797 = vmatprep.subr.bf16.mxu0 0
        %3798 = vmatpush1.bf16.msra.mxu0 %v3512
        %3799 = vmatprep.subr.bf16.mxu0 0
        %3800 = vmatpush1.bf16.msra.mxu0 %v3511
        %3801 = vmatprep.subr.bf16.mxu0 0
        %3802 = vmatpush1.bf16.msra.mxu0 %v3510
        %3803 = vmatprep.subr.bf16.mxu0 0
        %3804 = vmatpush1.bf16.msra.mxu0 %v3509
        %3805 = vmatprep.subr.bf16.mxu0 0
        %3806 = vmatpush1.bf16.msra.mxu0 %v3508
        %3807 = vmatprep.subr.bf16.mxu0 0
        %3808 = vmatpush1.bf16.msra.mxu0 %v3507
        %3809 = vmatprep.subr.bf16.mxu0 0
        %3810 = vmatpush1.bf16.msra.mxu0 %v3506
        %3811 = vmatprep.subr.bf16.mxu0 0
        %3812 = vmatpush2.bf16.msra.mxu0 %v3521
        %3813 = vmatprep.subr.bf16.mxu0 0
        %3814 = vmatpush2.bf16.msra.mxu0 %v3520
        %3815 = vmatprep.subr.bf16.mxu0 0
        %3816 = vmatpush2.bf16.msra.mxu0 %v3519
        %3817 = vmatprep.subr.bf16.mxu0 0
        %3818 = vmatpush2.bf16.msra.mxu0 %v3518
        %3819 = vmatprep.subr.bf16.mxu0 0
        %3820 = vmatpush2.bf16.msra.mxu0 %v3517
        %3821 = vmatprep.subr.bf16.mxu0 0
        %3822 = vmatpush2.bf16.msra.mxu0 %v3516
        %3823 = vmatprep.subr.bf16.mxu0 0
        %3824 = vmatpush2.bf16.msra.mxu0 %v3515
        %3825 = vmatprep.subr.bf16.mxu0 0
        %3826 = vmatpush2.bf16.msra.mxu0 %v3514
        %3827 = vmatprep.mubr.bf16.mxu0 %v2409
        %3828 = vmatmul.mubr.bf16.gmra.mxu0 %v2685
        %v3829 = vpop.f32.mrf.mxu0
        %v3830 = vadd.f32 %v3669, %v3829
        %v3831 = vpop.f32.mrf.mxu0
        %v3832 = vpop.f32.mrf.mxu0
        %v3833 = vadd.f32 %v3672, %v3832
        %v3834 = vpop.f32.mrf.mxu0
        %3835 = vmatprep.mubr.bf16.mxu0 %v2411
        %3836 = vmatmul.mubr.bf16.gmra.mxu0 %v2688
        %v3837 = vpop.f32.mrf.mxu0
        %v3838 = vadd.f32 %v3677, %v3837
        %v3839 = vpop.f32.mrf.mxu0
        %v3840 = vpop.f32.mrf.mxu0
        %v3841 = vadd.f32 %v3680, %v3840
        %v3842 = vpop.f32.mrf.mxu0
        %3843 = vmatprep.mubr.bf16.mxu0 %v2413
        %3844 = vmatmul.mubr.bf16.gmra.mxu0 %v2691
        %v3845 = vpop.f32.mrf.mxu0
        %v3846 = vadd.f32 %v3685, %v3845
        %v3847 = vpop.f32.mrf.mxu0
        %v3848 = vpop.f32.mrf.mxu0
        %v3849 = vadd.f32 %v3688, %v3848
        %v3850 = vpop.f32.mrf.mxu0
        %3851 = vmatprep.mubr.bf16.mxu0 %v2415
        %3852 = vmatmul.mubr.bf16.gmra.mxu0 %v2694
        %v3853 = vpop.f32.mrf.mxu0
        %v3854 = vadd.f32 %v3693, %v3853
        %v3855 = vpop.f32.mrf.mxu0
        %v3856 = vpop.f32.mrf.mxu0
        %v3857 = vadd.f32 %v3696, %v3856
        %v3858 = vpop.f32.mrf.mxu0
        %3859 = vmatprep.mubr.bf16.mxu0 %v2417
        %3860 = vmatmul.mubr.bf16.gmra.mxu0 %v2697
        %v3861 = vpop.f32.mrf.mxu0
        %v3862 = vadd.f32 %v3701, %v3861
        %v3863 = vpop.f32.mrf.mxu0
        %v3864 = vpop.f32.mrf.mxu0
        %v3865 = vadd.f32 %v3704, %v3864
        %v3866 = vpop.f32.mrf.mxu0
        %3867 = vmatprep.mubr.bf16.mxu0 %v2419
        %3868 = vmatmul.mubr.bf16.gmra.mxu0 %v2700
        %v3869 = vpop.f32.mrf.mxu0
        %v3870 = vadd.f32 %v3709, %v3869
        %v3871 = vpop.f32.mrf.mxu0
        %v3872 = vpop.f32.mrf.mxu0
        %v3873 = vadd.f32 %v3712, %v3872
        %v3874 = vpop.f32.mrf.mxu0
        %3875 = vmatprep.mubr.bf16.mxu0 %v2421
        %3876 = vmatmul.mubr.bf16.gmra.mxu0 %v2703
        %v3877 = vpop.f32.mrf.mxu0
        %v3878 = vadd.f32 %v3717, %v3877
        %v3879 = vpop.f32.mrf.mxu0
        %v3880 = vpop.f32.mrf.mxu0
        %v3881 = vadd.f32 %v3720, %v3880
        %v3882 = vpop.f32.mrf.mxu0
        %3883 = vmatprep.mubr.bf16.mxu0 %v2423
        %3884 = vmatmul.mubr.bf16.gmra.mxu0 %v2706
        %v3885 = vpop.f32.mrf.mxu0
        %v3886 = vadd.f32 %v3725, %v3885
        %v3887 = vpop.f32.mrf.mxu0
        %v3888 = vpop.f32.mrf.mxu0
        %v3889 = vadd.f32 %v3728, %v3888
        %v3890 = vpop.f32.mrf.mxu0
        %3891 = vmatprep.mubr.bf16.mxu0 %v2425
        %3892 = vmatmul.mubr.bf16.gmra.mxu0 %v2709
        %v3893 = vpop.f32.mrf.mxu0
        %v3894 = vadd.f32 %v3733, %v3893
        %v3895 = vpop.f32.mrf.mxu0
        %v3896 = vpop.f32.mrf.mxu0
        %v3897 = vadd.f32 %v3736, %v3896
        %v3898 = vpop.f32.mrf.mxu0
        %3899 = vmatprep.mubr.bf16.mxu0 %v2427
        %3900 = vmatmul.mubr.bf16.gmra.mxu0 %v2712
        %v3901 = vpop.f32.mrf.mxu0
        %v3902 = vadd.f32 %v3741, %v3901
        %v3903 = vpop.f32.mrf.mxu0
        %v3904 = vpop.f32.mrf.mxu0
        %v3905 = vadd.f32 %v3744, %v3904
        %v3906 = vpop.f32.mrf.mxu0
        %3907 = vmatprep.mubr.bf16.mxu0 %v2429
        %3908 = vmatmul.mubr.bf16.gmra.mxu0 %v2715
        %v3909 = vpop.f32.mrf.mxu0
        %v3910 = vadd.f32 %v3749, %v3909
        %v3911 = vpop.f32.mrf.mxu0
        %v3912 = vpop.f32.mrf.mxu0
        %v3913 = vadd.f32 %v3752, %v3912
        %v3914 = vpop.f32.mrf.mxu0
        %3915 = vmatprep.mubr.bf16.mxu0 %v2431
        %3916 = vmatmul.mubr.bf16.gmra.mxu0 %v2718
        %v3917 = vpop.f32.mrf.mxu0
        %v3918 = vadd.f32 %v3757, %v3917
        %v3919 = vpop.f32.mrf.mxu0
        %v3920 = vpop.f32.mrf.mxu0
        %v3921 = vadd.f32 %v3760, %v3920
        %v3922 = vpop.f32.mrf.mxu0
        %3923 = vmatprep.mubr.bf16.mxu0 %v2433
        %3924 = vmatmul.mubr.bf16.gmra.mxu0 %v2721
        %v3925 = vpop.f32.mrf.mxu0
        %v3926 = vadd.f32 %v3765, %v3925
        %v3927 = vpop.f32.mrf.mxu0
        %v3928 = vpop.f32.mrf.mxu0
        %v3929 = vadd.f32 %v3768, %v3928
        %v3930 = vpop.f32.mrf.mxu0
        %3931 = vmatprep.mubr.bf16.mxu0 %v2435
        %3932 = vmatmul.mubr.bf16.gmra.mxu0 %v2724
        %v3933 = vpop.f32.mrf.mxu0
        %v3934 = vadd.f32 %v3773, %v3933
        %v3935 = vpop.f32.mrf.mxu0
        %v3936 = vpop.f32.mrf.mxu0
        %v3937 = vadd.f32 %v3776, %v3936
        %v3938 = vpop.f32.mrf.mxu0
        %3939 = vmatprep.mubr.bf16.mxu0 %v2437
        %3940 = vmatmul.mubr.bf16.gmra.mxu0 %v2727
        %v3941 = vpop.f32.mrf.mxu0
        %v3942 = vadd.f32 %v3781, %v3941
        %v3943 = vpop.f32.mrf.mxu0
        %v3944 = vpop.f32.mrf.mxu0
        %v3945 = vadd.f32 %v3784, %v3944
        %v3946 = vpop.f32.mrf.mxu0
        %3947 = vmatprep.mubr.bf16.mxu0 %v2439
        %3948 = vmatmul.mubr.bf16.gmra.mxu0 %v2730
        %v3949 = vpop.f32.mrf.mxu0
        %v3950 = vadd.f32 %v3789, %v3949
        %v3951 = vpop.f32.mrf.mxu0
        %v3952 = vpop.f32.mrf.mxu0
        %v3953 = vadd.f32 %v3792, %v3952
        %v3954 = vpop.f32.mrf.mxu0
        %3955 = vdwg.mxu0
        %3956 = vmatprep.subr.bf16.mxu0 0
        %3957 = vmatpush1.bf16.msra.mxu0 %v3529
        %3958 = vmatprep.subr.bf16.mxu0 0
        %3959 = vmatpush1.bf16.msra.mxu0 %v3528
        %3960 = vmatprep.subr.bf16.mxu0 0
        %3961 = vmatpush1.bf16.msra.mxu0 %v3527
        %3962 = vmatprep.subr.bf16.mxu0 0
        %3963 = vmatpush1.bf16.msra.mxu0 %v3526
        %3964 = vmatprep.subr.bf16.mxu0 0
        %3965 = vmatpush1.bf16.msra.mxu0 %v3525
        %3966 = vmatprep.subr.bf16.mxu0 0
        %3967 = vmatpush1.bf16.msra.mxu0 %v3524
        %3968 = vmatprep.subr.bf16.mxu0 0
        %3969 = vmatpush1.bf16.msra.mxu0 %v3523
        %3970 = vmatprep.subr.bf16.mxu0 0
        %3971 = vmatpush1.bf16.msra.mxu0 %v3522
        %3972 = vmatprep.subr.bf16.mxu0 0
        %3973 = vmatpush2.bf16.msra.mxu0 %v3537
        %3974 = vmatprep.subr.bf16.mxu0 0
        %3975 = vmatpush2.bf16.msra.mxu0 %v3536
        %3976 = vmatprep.subr.bf16.mxu0 0
        %3977 = vmatpush2.bf16.msra.mxu0 %v3535
        %3978 = vmatprep.subr.bf16.mxu0 0
        %3979 = vmatpush2.bf16.msra.mxu0 %v3534
        %3980 = vmatprep.subr.bf16.mxu0 0
        %3981 = vmatpush2.bf16.msra.mxu0 %v3533
        %3982 = vmatprep.subr.bf16.mxu0 0
        %3983 = vmatpush2.bf16.msra.mxu0 %v3532
        %3984 = vmatprep.subr.bf16.mxu0 0
        %3985 = vmatpush2.bf16.msra.mxu0 %v3531
        %3986 = vmatprep.subr.bf16.mxu0 0
        %3987 = vmatpush2.bf16.msra.mxu0 %v3530
        %3988 = vmatprep.mubr.bf16.mxu0 %v2688
        %3989 = vmatmul.mubr.bf16.gmra.mxu0 %v2466
        %v3990 = vpop.f32.mrf.mxu0
        %v3991 = vadd.f32 %v3830, %v3990
        %v3992 = vpop.f32.mrf.mxu0
        %v3993 = vpop.f32.mrf.mxu0
        %v3994 = vadd.f32 %v3833, %v3993
        %v3995 = vpop.f32.mrf.mxu0
        %3996 = vmatprep.mubr.bf16.mxu0 %v2691
        %3997 = vmatmul.mubr.bf16.gmra.mxu0 %v2478
        %v3998 = vpop.f32.mrf.mxu0
        %v3999 = vadd.f32 %v3838, %v3998
        %v4000 = vpop.f32.mrf.mxu0
        %v4001 = vpop.f32.mrf.mxu0
        %v4002 = vadd.f32 %v3841, %v4001
        %v4003 = vpop.f32.mrf.mxu0
        %4004 = vmatprep.mubr.bf16.mxu0 %v2694
        %4005 = vmatmul.mubr.bf16.gmra.mxu0 %v2490
        %v4006 = vpop.f32.mrf.mxu0
        %v4007 = vadd.f32 %v3846, %v4006
        %v4008 = vpop.f32.mrf.mxu0
        %v4009 = vpop.f32.mrf.mxu0
        %v4010 = vadd.f32 %v3849, %v4009
        %v4011 = vpop.f32.mrf.mxu0
        %4012 = vmatprep.mubr.bf16.mxu0 %v2697
        %4013 = vmatmul.mubr.bf16.gmra.mxu0 %v2502
        %v4014 = vpop.f32.mrf.mxu0
        %v4015 = vadd.f32 %v3854, %v4014
        %v4016 = vpop.f32.mrf.mxu0
        %v4017 = vpop.f32.mrf.mxu0
        %v4018 = vadd.f32 %v3857, %v4017
        %v4019 = vpop.f32.mrf.mxu0
        %4020 = vmatprep.mubr.bf16.mxu0 %v2700
        %4021 = vmatmul.mubr.bf16.gmra.mxu0 %v2514
        %v4022 = vpop.f32.mrf.mxu0
        %v4023 = vadd.f32 %v3862, %v4022
        %v4024 = vpop.f32.mrf.mxu0
        %v4025 = vpop.f32.mrf.mxu0
        %v4026 = vadd.f32 %v3865, %v4025
        %v4027 = vpop.f32.mrf.mxu0
        %4028 = vmatprep.mubr.bf16.mxu0 %v2703
        %4029 = vmatmul.mubr.bf16.gmra.mxu0 %v2526
        %v4030 = vpop.f32.mrf.mxu0
        %v4031 = vadd.f32 %v3870, %v4030
        %v4032 = vpop.f32.mrf.mxu0
        %v4033 = vpop.f32.mrf.mxu0
        %v4034 = vadd.f32 %v3873, %v4033
        %v4035 = vpop.f32.mrf.mxu0
        %4036 = vmatprep.mubr.bf16.mxu0 %v2706
        %4037 = vmatmul.mubr.bf16.gmra.mxu0 %v2538
        %v4038 = vpop.f32.mrf.mxu0
        %v4039 = vadd.f32 %v3878, %v4038
        %v4040 = vpop.f32.mrf.mxu0
        %v4041 = vpop.f32.mrf.mxu0
        %v4042 = vadd.f32 %v3881, %v4041
        %v4043 = vpop.f32.mrf.mxu0
        %4044 = vmatprep.mubr.bf16.mxu0 %v2709
        %4045 = vmatmul.mubr.bf16.gmra.mxu0 %v2550
        %v4046 = vpop.f32.mrf.mxu0
        %v4047 = vadd.f32 %v3886, %v4046
        %v4048 = vpop.f32.mrf.mxu0
        %v4049 = vpop.f32.mrf.mxu0
        %v4050 = vadd.f32 %v3889, %v4049
        %v4051 = vpop.f32.mrf.mxu0
        %4052 = vmatprep.mubr.bf16.mxu0 %v2712
        %4053 = vmatmul.mubr.bf16.gmra.mxu0 %v2562
        %v4054 = vpop.f32.mrf.mxu0
        %v4055 = vadd.f32 %v3894, %v4054
        %v4056 = vpop.f32.mrf.mxu0
        %v4057 = vpop.f32.mrf.mxu0
        %v4058 = vadd.f32 %v3897, %v4057
        %v4059 = vpop.f32.mrf.mxu0
        %4060 = vmatprep.mubr.bf16.mxu0 %v2715
        %4061 = vmatmul.mubr.bf16.gmra.mxu0 %v2574
        %v4062 = vpop.f32.mrf.mxu0
        %v4063 = vadd.f32 %v3902, %v4062
        %v4064 = vpop.f32.mrf.mxu0
        %v4065 = vpop.f32.mrf.mxu0
        %v4066 = vadd.f32 %v3905, %v4065
        %v4067 = vpop.f32.mrf.mxu0
        %4068 = vmatprep.mubr.bf16.mxu0 %v2718
        %4069 = vmatmul.mubr.bf16.gmra.mxu0 %v2586
        %v4070 = vpop.f32.mrf.mxu0
        %v4071 = vadd.f32 %v3910, %v4070
        %v4072 = vpop.f32.mrf.mxu0
        %v4073 = vpop.f32.mrf.mxu0
        %v4074 = vadd.f32 %v3913, %v4073
        %v4075 = vpop.f32.mrf.mxu0
        %4076 = vmatprep.mubr.bf16.mxu0 %v2721
        %4077 = vmatmul.mubr.bf16.gmra.mxu0 %v2598
        %v4078 = vpop.f32.mrf.mxu0
        %v4079 = vadd.f32 %v3918, %v4078
        %v4080 = vpop.f32.mrf.mxu0
        %v4081 = vpop.f32.mrf.mxu0
        %v4082 = vadd.f32 %v3921, %v4081
        %v4083 = vpop.f32.mrf.mxu0
        %4084 = vmatprep.mubr.bf16.mxu0 %v2724
        %4085 = vmatmul.mubr.bf16.gmra.mxu0 %v2610
        %v4086 = vpop.f32.mrf.mxu0
        %v4087 = vadd.f32 %v3926, %v4086
        %v4088 = vpop.f32.mrf.mxu0
        %v4089 = vpop.f32.mrf.mxu0
        %v4090 = vadd.f32 %v3929, %v4089
        %v4091 = vpop.f32.mrf.mxu0
        %4092 = vmatprep.mubr.bf16.mxu0 %v2727
        %4093 = vmatmul.mubr.bf16.gmra.mxu0 %v2622
        %v4094 = vpop.f32.mrf.mxu0
        %v4095 = vadd.f32 %v3934, %v4094
        %v4096 = vpop.f32.mrf.mxu0
        %v4097 = vpop.f32.mrf.mxu0
        %v4098 = vadd.f32 %v3937, %v4097
        %v4099 = vpop.f32.mrf.mxu0
        %4100 = vmatprep.mubr.bf16.mxu0 %v2730
        %4101 = vmatmul.mubr.bf16.gmra.mxu0 %v2634
        %v4102 = vpop.f32.mrf.mxu0
        %v4103 = vadd.f32 %v3942, %v4102
        %v4104 = vpop.f32.mrf.mxu0
        %v4105 = vpop.f32.mrf.mxu0
        %v4106 = vadd.f32 %v3945, %v4105
        %v4107 = vpop.f32.mrf.mxu0
        %4108 = vmatprep.mubr.bf16.mxu0 %v2764
        %4109 = vmatmul.mubr.bf16.gmra.mxu0 %v2758
        %v4110 = vpop.f32.mrf.mxu0
        %v4111 = vadd.f32 %v3950, %v4110
        %v4112 = vpop.f32.mrf.mxu0
        %v4113 = vpop.f32.mrf.mxu0
        %v4114 = vadd.f32 %v3953, %v4113
        %v4115 = vpop.f32.mrf.mxu0
        %4116 = vdwg.mxu0
        %4117 = vmatprep.subr.bf16.mxu0 0
        %4118 = vmatpush1.bf16.msra.mxu0 %v3545
        %4119 = vmatprep.subr.bf16.mxu0 0
        %4120 = vmatpush1.bf16.msra.mxu0 %v3544
        %4121 = vmatprep.subr.bf16.mxu0 0
        %4122 = vmatpush1.bf16.msra.mxu0 %v3543
        %4123 = vmatprep.subr.bf16.mxu0 0
        %4124 = vmatpush1.bf16.msra.mxu0 %v3542
        %4125 = vmatprep.subr.bf16.mxu0 0
        %4126 = vmatpush1.bf16.msra.mxu0 %v3541
        %4127 = vmatprep.subr.bf16.mxu0 0
        %4128 = vmatpush1.bf16.msra.mxu0 %v3540
        %4129 = vmatprep.subr.bf16.mxu0 0
        %4130 = vmatpush1.bf16.msra.mxu0 %v3539
        %4131 = vmatprep.subr.bf16.mxu0 0
        %4132 = vmatpush1.bf16.msra.mxu0 %v3538
        %4133 = vmatprep.subr.bf16.mxu0 0
        %4134 = vmatpush2.bf16.msra.mxu0 %v3553
        %4135 = vmatprep.subr.bf16.mxu0 0
        %4136 = vmatpush2.bf16.msra.mxu0 %v3552
        %4137 = vmatprep.subr.bf16.mxu0 0
        %4138 = vmatpush2.bf16.msra.mxu0 %v3551
        %4139 = vmatprep.subr.bf16.mxu0 0
        %4140 = vmatpush2.bf16.msra.mxu0 %v3550
        %4141 = vmatprep.subr.bf16.mxu0 0
        %4142 = vmatpush2.bf16.msra.mxu0 %v3549
        %4143 = vmatprep.subr.bf16.mxu0 0
        %4144 = vmatpush2.bf16.msra.mxu0 %v3548
        %4145 = vmatprep.subr.bf16.mxu0 0
        %4146 = vmatpush2.bf16.msra.mxu0 %v3547
        %4147 = vmatprep.subr.bf16.mxu0 0
        %4148 = vmatpush2.bf16.msra.mxu0 %v3546
        %4149 = vmatprep.mubr.bf16.mxu0 %v2478
        %4150 = vmatmul.mubr.bf16.gmra.mxu0 %v2411
        %v4151 = vpop.f32.mrf.mxu0
        %v4152 = vadd.f32 %v3991, %v4151
        %v4153 = vpop.f32.mrf.mxu0
        %v4154 = vpop.f32.mrf.mxu0
        %v4155 = vadd.f32 %v3994, %v4154
        %v4156 = vpop.f32.mrf.mxu0
        %4157 = vmatprep.mubr.bf16.mxu0 %v2490
        %4158 = vmatmul.mubr.bf16.gmra.mxu0 %v2413
        %v4159 = vpop.f32.mrf.mxu0
        %v4160 = vadd.f32 %v3999, %v4159
        %v4161 = vpop.f32.mrf.mxu0
        %v4162 = vpop.f32.mrf.mxu0
        %v4163 = vadd.f32 %v4002, %v4162
        %v4164 = vpop.f32.mrf.mxu0
        %4165 = vmatprep.mubr.bf16.mxu0 %v2502
        %4166 = vmatmul.mubr.bf16.gmra.mxu0 %v2415
        %v4167 = vpop.f32.mrf.mxu0
        %v4168 = vadd.f32 %v4007, %v4167
        %v4169 = vpop.f32.mrf.mxu0
        %v4170 = vpop.f32.mrf.mxu0
        %v4171 = vadd.f32 %v4010, %v4170
        %v4172 = vpop.f32.mrf.mxu0
        %4173 = vmatprep.mubr.bf16.mxu0 %v2514
        %4174 = vmatmul.mubr.bf16.gmra.mxu0 %v2417
        %v4175 = vpop.f32.mrf.mxu0
        %v4176 = vadd.f32 %v4015, %v4175
        %v4177 = vpop.f32.mrf.mxu0
        %v4178 = vpop.f32.mrf.mxu0
        %v4179 = vadd.f32 %v4018, %v4178
        %v4180 = vpop.f32.mrf.mxu0
        %4181 = vmatprep.mubr.bf16.mxu0 %v2526
        %4182 = vmatmul.mubr.bf16.gmra.mxu0 %v2419
        %v4183 = vpop.f32.mrf.mxu0
        %v4184 = vadd.f32 %v4023, %v4183
        %v4185 = vpop.f32.mrf.mxu0
        %v4186 = vpop.f32.mrf.mxu0
        %v4187 = vadd.f32 %v4026, %v4186
        %v4188 = vpop.f32.mrf.mxu0
        %4189 = vmatprep.mubr.bf16.mxu0 %v2538
        %4190 = vmatmul.mubr.bf16.gmra.mxu0 %v2421
        %v4191 = vpop.f32.mrf.mxu0
        %v4192 = vadd.f32 %v4031, %v4191
        %v4193 = vpop.f32.mrf.mxu0
        %v4194 = vpop.f32.mrf.mxu0
        %v4195 = vadd.f32 %v4034, %v4194
        %v4196 = vpop.f32.mrf.mxu0
        %4197 = vmatprep.mubr.bf16.mxu0 %v2550
        %4198 = vmatmul.mubr.bf16.gmra.mxu0 %v2423
        %v4199 = vpop.f32.mrf.mxu0
        %v4200 = vadd.f32 %v4039, %v4199
        %v4201 = vpop.f32.mrf.mxu0
        %v4202 = vpop.f32.mrf.mxu0
        %v4203 = vadd.f32 %v4042, %v4202
        %v4204 = vpop.f32.mrf.mxu0
        %4205 = vmatprep.mubr.bf16.mxu0 %v2562
        %4206 = vmatmul.mubr.bf16.gmra.mxu0 %v2425
        %v4207 = vpop.f32.mrf.mxu0
        %v4208 = vadd.f32 %v4047, %v4207
        %v4209 = vpop.f32.mrf.mxu0
        %v4210 = vpop.f32.mrf.mxu0
        %v4211 = vadd.f32 %v4050, %v4210
        %v4212 = vpop.f32.mrf.mxu0
        %4213 = vmatprep.mubr.bf16.mxu0 %v2574
        %4214 = vmatmul.mubr.bf16.gmra.mxu0 %v2427
        %v4215 = vpop.f32.mrf.mxu0
        %v4216 = vadd.f32 %v4055, %v4215
        %v4217 = vpop.f32.mrf.mxu0
        %v4218 = vpop.f32.mrf.mxu0
        %v4219 = vadd.f32 %v4058, %v4218
        %v4220 = vpop.f32.mrf.mxu0
        %4221 = vmatprep.mubr.bf16.mxu0 %v2586
        %4222 = vmatmul.mubr.bf16.gmra.mxu0 %v2429
        %v4223 = vpop.f32.mrf.mxu0
        %v4224 = vadd.f32 %v4063, %v4223
        %v4225 = vpop.f32.mrf.mxu0
        %v4226 = vpop.f32.mrf.mxu0
        %v4227 = vadd.f32 %v4066, %v4226
        %v4228 = vpop.f32.mrf.mxu0
        %4229 = vmatprep.mubr.bf16.mxu0 %v2598
        %4230 = vmatmul.mubr.bf16.gmra.mxu0 %v2431
        %v4231 = vpop.f32.mrf.mxu0
        %v4232 = vadd.f32 %v4071, %v4231
        %v4233 = vpop.f32.mrf.mxu0
        %v4234 = vpop.f32.mrf.mxu0
        %v4235 = vadd.f32 %v4074, %v4234
        %v4236 = vpop.f32.mrf.mxu0
        %4237 = vmatprep.mubr.bf16.mxu0 %v2610
        %4238 = vmatmul.mubr.bf16.gmra.mxu0 %v2433
        %v4239 = vpop.f32.mrf.mxu0
        %v4240 = vadd.f32 %v4079, %v4239
        %v4241 = vpop.f32.mrf.mxu0
        %v4242 = vpop.f32.mrf.mxu0
        %v4243 = vadd.f32 %v4082, %v4242
        %v4244 = vpop.f32.mrf.mxu0
        %4245 = vmatprep.mubr.bf16.mxu0 %v2622
        %4246 = vmatmul.mubr.bf16.gmra.mxu0 %v2435
        %v4247 = vpop.f32.mrf.mxu0
        %v4248 = vadd.f32 %v4087, %v4247
        %v4249 = vpop.f32.mrf.mxu0
        %v4250 = vpop.f32.mrf.mxu0
        %v4251 = vadd.f32 %v4090, %v4250
        %v4252 = vpop.f32.mrf.mxu0
        %4253 = vmatprep.mubr.bf16.mxu0 %v2634
        %4254 = vmatmul.mubr.bf16.gmra.mxu0 %v2437
        %v4255 = vpop.f32.mrf.mxu0
        %v4256 = vadd.f32 %v4095, %v4255
        %v4257 = vpop.f32.mrf.mxu0
        %v4258 = vpop.f32.mrf.mxu0
        %v4259 = vadd.f32 %v4098, %v4258
        %v4260 = vpop.f32.mrf.mxu0
        %4261 = vmatprep.mubr.bf16.mxu0 %v2758
        %4262 = vmatmul.mubr.bf16.gmra.mxu0 %v2439
        %v4263 = vpop.f32.mrf.mxu0
        %v4264 = vadd.f32 %v4103, %v4263
        %v4265 = vpop.f32.mrf.mxu0
        %v4266 = vpop.f32.mrf.mxu0
        %v4267 = vadd.f32 %v4106, %v4266
        %v4268 = vpop.f32.mrf.mxu0
        %4269 = vmatprep.mubr.bf16.mxu0 %v2777
        %4270 = vmatmul.mubr.bf16.gmra.mxu0 %v2441
        %v4271 = vpop.f32.mrf.mxu0
        %v4272 = vadd.f32 %v4111, %v4271
        %v4273 = vpop.f32.mrf.mxu0
        %v4274 = vpop.f32.mrf.mxu0
        %v4275 = vadd.f32 %v4114, %v4274
        %v4276 = vpop.f32.mrf.mxu0
        %4277 = vdwg.mxu0
        %4278 = vmatprep.subr.bf16.mxu0 0
        %4279 = vmatpush1.bf16.msra.mxu0 %v3561
        %4280 = vmatprep.subr.bf16.mxu0 0
        %4281 = vmatpush1.bf16.msra.mxu0 %v3560
        %4282 = vmatprep.subr.bf16.mxu0 0
        %4283 = vmatpush1.bf16.msra.mxu0 %v3559
        %4284 = vmatprep.subr.bf16.mxu0 0
        %4285 = vmatpush1.bf16.msra.mxu0 %v3558
        %4286 = vmatprep.subr.bf16.mxu0 0
        %4287 = vmatpush1.bf16.msra.mxu0 %v3557
        %4288 = vmatprep.subr.bf16.mxu0 0
        %4289 = vmatpush1.bf16.msra.mxu0 %v3556
        %4290 = vmatprep.subr.bf16.mxu0 0
        %4291 = vmatpush1.bf16.msra.mxu0 %v3555
        %4292 = vmatprep.subr.bf16.mxu0 0
        %4293 = vmatpush1.bf16.msra.mxu0 %v3554
        %4294 = vmatprep.subr.bf16.mxu0 0
        %4295 = vmatpush2.bf16.msra.mxu0 0
        %4296 = vmatprep.subr.bf16.mxu0 0
        %4297 = vmatpush2.bf16.msra.mxu0 0
        %4298 = vmatprep.subr.bf16.mxu0 0
        %4299 = vmatpush2.bf16.msra.mxu0 0
        %4300 = vmatprep.subr.bf16.mxu0 0
        %4301 = vmatpush2.bf16.msra.mxu0 0
        %4302 = vmatprep.subr.bf16.mxu0 0
        %4303 = vmatpush2.bf16.msra.mxu0 0
        %4304 = vmatprep.subr.bf16.mxu0 0
        %4305 = vmatpush2.bf16.msra.mxu0 0
        %4306 = vmatprep.subr.bf16.mxu0 0
        %4307 = vmatpush2.bf16.msra.mxu0 0
        %4308 = vmatprep.subr.bf16.mxu0 0
        %4309 = vmatpush2.bf16.msra.mxu0 0
        %4310 = vmatprep.mubr.bf16.mxu0 0
        %4311 = vmatmul.mubr.bf16.gmra.mxu0 %v2691
        %v4312 = vpop.f32.mrf.mxu0
        %v4313 = vadd.f32 %v4152, %v4312
        %v4314 = vpop.f32.mrf.mxu0
        %v4315 = vpop.f32.mrf.mxu0
        %v4316 = vadd.f32 %v4155, %v4315
        %v4317 = vpop.f32.mrf.mxu0
        %4318 = vmatprep.mubr.bf16.mxu0 0
        %4319 = vmatmul.mubr.bf16.gmra.mxu0 %v2694
        %v4320 = vpop.f32.mrf.mxu0
        %v4321 = vadd.f32 %v4160, %v4320
        %v4322 = vpop.f32.mrf.mxu0
        %v4323 = vpop.f32.mrf.mxu0
        %v4324 = vadd.f32 %v4163, %v4323
        %v4325 = vpop.f32.mrf.mxu0
        %4326 = vmatprep.mubr.bf16.mxu0 0
        %4327 = vmatmul.mubr.bf16.gmra.mxu0 %v2697
        %v4328 = vpop.f32.mrf.mxu0
        %v4329 = vadd.f32 %v4168, %v4328
        %v4330 = vpop.f32.mrf.mxu0
        %v4331 = vpop.f32.mrf.mxu0
        %v4332 = vadd.f32 %v4171, %v4331
        %v4333 = vpop.f32.mrf.mxu0
        %4334 = vmatprep.mubr.bf16.mxu0 0
        %4335 = vmatmul.mubr.bf16.gmra.mxu0 %v2700
        %v4336 = vpop.f32.mrf.mxu0
        %v4337 = vadd.f32 %v4176, %v4336
        %v4338 = vpop.f32.mrf.mxu0
        %v4339 = vpop.f32.mrf.mxu0
        %v4340 = vadd.f32 %v4179, %v4339
        %v4341 = vpop.f32.mrf.mxu0
        %4342 = vmatprep.mubr.bf16.mxu0 0
        %4343 = vmatmul.mubr.bf16.gmra.mxu0 %v2703
        %v4344 = vpop.f32.mrf.mxu0
        %v4345 = vadd.f32 %v4184, %v4344
        %v4346 = vpop.f32.mrf.mxu0
        %v4347 = vpop.f32.mrf.mxu0
        %v4348 = vadd.f32 %v4187, %v4347
        %v4349 = vpop.f32.mrf.mxu0
        %4350 = vmatprep.mubr.bf16.mxu0 0
        %4351 = vmatmul.mubr.bf16.gmra.mxu0 %v2706
        %v4352 = vpop.f32.mrf.mxu0
        %v4353 = vadd.f32 %v4192, %v4352
        %v4354 = vpop.f32.mrf.mxu0
        %v4355 = vpop.f32.mrf.mxu0
        %v4356 = vadd.f32 %v4195, %v4355
        %v4357 = vpop.f32.mrf.mxu0
        %4358 = vmatprep.mubr.bf16.mxu0 0
        %4359 = vmatmul.mubr.bf16.gmra.mxu0 %v2709
        %v4360 = vpop.f32.mrf.mxu0
        %v4361 = vadd.f32 %v4200, %v4360
        %v4362 = vpop.f32.mrf.mxu0
        %v4363 = vpop.f32.mrf.mxu0
        %v4364 = vadd.f32 %v4203, %v4363
        %v4365 = vpop.f32.mrf.mxu0
        %4366 = vmatprep.mubr.bf16.mxu0 0
        %4367 = vmatmul.mubr.bf16.gmra.mxu0 %v2712
        %v4368 = vpop.f32.mrf.mxu0
        %v4369 = vadd.f32 %v4208, %v4368
        %v4370 = vpop.f32.mrf.mxu0
        %v4371 = vpop.f32.mrf.mxu0
        %v4372 = vadd.f32 %v4211, %v4371
        %v4373 = vpop.f32.mrf.mxu0
        %4374 = vmatprep.mubr.bf16.mxu0 0
        %4375 = vmatmul.mubr.bf16.gmra.mxu0 %v2715
        %v4376 = vpop.f32.mrf.mxu0
        %v4377 = vadd.f32 %v4216, %v4376
        %v4378 = vpop.f32.mrf.mxu0
        %v4379 = vpop.f32.mrf.mxu0
        %v4380 = vadd.f32 %v4219, %v4379
        %v4381 = vpop.f32.mrf.mxu0
        %4382 = vmatprep.mubr.bf16.mxu0 0
        %4383 = vmatmul.mubr.bf16.gmra.mxu0 %v2718
        %v4384 = vpop.f32.mrf.mxu0
        %v4385 = vadd.f32 %v4224, %v4384
        %v4386 = vpop.f32.mrf.mxu0
        %v4387 = vpop.f32.mrf.mxu0
        %v4388 = vadd.f32 %v4227, %v4387
        %v4389 = vpop.f32.mrf.mxu0
        %4390 = vmatprep.mubr.bf16.mxu0 0
        %4391 = vmatmul.mubr.bf16.gmra.mxu0 %v2721
        %v4392 = vpop.f32.mrf.mxu0
        %v4393 = vadd.f32 %v4232, %v4392
        %v4394 = vpop.f32.mrf.mxu0
        %v4395 = vpop.f32.mrf.mxu0
        %v4396 = vadd.f32 %v4235, %v4395
        %v4397 = vpop.f32.mrf.mxu0
        %4398 = vmatprep.mubr.bf16.mxu0 0
        %4399 = vmatmul.mubr.bf16.gmra.mxu0 %v2724
        %v4400 = vpop.f32.mrf.mxu0
        %v4401 = vadd.f32 %v4240, %v4400
        %v4402 = vpop.f32.mrf.mxu0
        %v4403 = vpop.f32.mrf.mxu0
        %v4404 = vadd.f32 %v4243, %v4403
        %v4405 = vpop.f32.mrf.mxu0
        %4406 = vmatprep.mubr.bf16.mxu0 0
        %4407 = vmatmul.mubr.bf16.gmra.mxu0 %v2727
        %v4408 = vpop.f32.mrf.mxu0
        %v4409 = vadd.f32 %v4248, %v4408
        %v4410 = vpop.f32.mrf.mxu0
        %v4411 = vpop.f32.mrf.mxu0
        %v4412 = vadd.f32 %v4251, %v4411
        %v4413 = vpop.f32.mrf.mxu0
        %4414 = vmatprep.mubr.bf16.mxu0 0
        %4415 = vmatmul.mubr.bf16.gmra.mxu0 %v2730
        %v4416 = vpop.f32.mrf.mxu0
        %v4417 = vadd.f32 %v4256, %v4416
        %v4418 = vpop.f32.mrf.mxu0
        %v4419 = vpop.f32.mrf.mxu0
        %v4420 = vadd.f32 %v4259, %v4419
        %v4421 = vpop.f32.mrf.mxu0
        %4422 = vmatprep.mubr.bf16.mxu0 0
        %4423 = vmatmul.mubr.bf16.gmra.mxu0 %v2764
        %v4424 = vpop.f32.mrf.mxu0
        %v4425 = vadd.f32 %v4264, %v4424
        %v4426 = vpop.f32.mrf.mxu0
        %v4427 = vpop.f32.mrf.mxu0
        %v4428 = vadd.f32 %v4267, %v4427
        %v4429 = vpop.f32.mrf.mxu0
        %4430 = vmatprep.mubr.bf16.mxu0 0
        %4431 = vmatmul.mubr.bf16.gmra.mxu0 %v2783
        %v4432 = vpop.f32.mrf.mxu0
        %v4433 = vadd.f32 %v4272, %v4432
        %v4434 = vpop.f32.mrf.mxu0
        %v4435 = vpop.f32.mrf.mxu0
        %v4436 = vadd.f32 %v4275, %v4435
        %v4437 = vpop.f32.mrf.mxu0
        %4438 = vdwg.mxu0
        %v4439 = vld [vmem:[%s4] sm:$0x1]
        %v4441 = vlaneseq
        %v4442 = vshrl.u32 %v4441, 7
        %v4443 = vsub.s32 0, %v4442
        %v4444 = vrot.slane %v4439, %v4443
        %v4446 = vadd.f32 %v4313, %v4444
        %v4447 = vadd.f32 %v4316, %v4444
        %v4448 = vadd.f32 %v4321, %v4444
        %v4449 = vadd.f32 %v4324, %v4444
        %v4450 = vadd.f32 %v4329, %v4444
        %v4451 = vadd.f32 %v4332, %v4444
        %v4452 = vadd.f32 %v4337, %v4444
        %v4453 = vadd.f32 %v4340, %v4444
        %v4454 = vadd.f32 %v4345, %v4444
        %v4455 = vadd.f32 %v4348, %v4444
        %v4456 = vadd.f32 %v4353, %v4444
        %v4457 = vadd.f32 %v4356, %v4444
        %v4458 = vadd.f32 %v4361, %v4444
        %v4459 = vadd.f32 %v4364, %v4444
        %v4460 = vadd.f32 %v4369, %v4444
        %v4461 = vadd.f32 %v4372, %v4444
        %v4462 = vadd.f32 %v4377, %v4444
        %v4463 = vadd.f32 %v4380, %v4444
        %v4464 = vadd.f32 %v4385, %v4444
        %v4465 = vadd.f32 %v4388, %v4444
        %v4466 = vadd.f32 %v4393, %v4444
        %v4467 = vadd.f32 %v4396, %v4444
        %v4468 = vadd.f32 %v4401, %v4444
        %v4469 = vadd.f32 %v4404, %v4444
        %v4470 = vadd.f32 %v4409, %v4444
        %v4471 = vadd.f32 %v4412, %v4444
        %v4472 = vadd.f32 %v4417, %v4444
        %v4473 = vadd.f32 %v4420, %v4444
        %v4474 = vadd.f32 %v4425, %v4444
        %v4475 = vadd.f32 %v4428, %v4444
        %v4476 = vadd.f32 %v4433, %v4444
        %v4477 = vadd.f32 %v4436, %v4444
        %v4478 = vmax.f32 %v4446, 0.0
        %v4479 = vmax.f32 %v4447, 0.0
        %v4480 = vmax.f32 %v4448, 0.0
        %v4481 = vmax.f32 %v4449, 0.0
        %v4482 = vmax.f32 %v4450, 0.0
        %v4483 = vmax.f32 %v4451, 0.0
        %v4484 = vmax.f32 %v4452, 0.0
        %v4485 = vmax.f32 %v4453, 0.0
        %v4486 = vmax.f32 %v4454, 0.0
        %v4487 = vmax.f32 %v4455, 0.0
        %v4488 = vmax.f32 %v4456, 0.0
        %v4489 = vmax.f32 %v4457, 0.0
        %v4490 = vmax.f32 %v4458, 0.0
        %v4491 = vmax.f32 %v4459, 0.0
        %v4492 = vmax.f32 %v4460, 0.0
        %v4493 = vmax.f32 %v4461, 0.0
        %v4494 = vmax.f32 %v4462, 0.0
        %v4495 = vmax.f32 %v4463, 0.0
        %v4496 = vmax.f32 %v4464, 0.0
        %v4497 = vmax.f32 %v4465, 0.0
        %v4498 = vmax.f32 %v4466, 0.0
        %v4499 = vmax.f32 %v4467, 0.0
        %v4500 = vmax.f32 %v4468, 0.0
        %v4501 = vmax.f32 %v4469, 0.0
        %v4502 = vmax.f32 %v4470, 0.0
        %v4503 = vmax.f32 %v4471, 0.0
        %v4504 = vmax.f32 %v4472, 0.0
        %v4505 = vmax.f32 %v4473, 0.0
        %v4506 = vmax.f32 %v4474, 0.0
        %v4507 = vmax.f32 %v4475, 0.0
        %v4508 = vmax.f32 %v4476, 0.0
        %v4509 = vmax.f32 %v4477, 0.0
        %4510 = vst [vmem:[%s313] sm:$0xff] %v4478
        %4511 = vst [vmem:[%s313 + $0x8] sm:$0xff] %v4479
        %4512 = vst [vmem:[%s313 + $0x10] sm:$0xff] %v4480
        %4513 = vst [vmem:[%s313 + $0x18] sm:$0xff] %v4481
        %4514 = vst [vmem:[%s313 + $0x20] sm:$0xff] %v4482
        %4515 = vst [vmem:[%s313 + $0x28] sm:$0xff] %v4483
        %4516 = vst [vmem:[%s313 + $0x30] sm:$0xff] %v4484
        %4517 = vst [vmem:[%s313 + $0x38] sm:$0xff] %v4485
        %4518 = vst [vmem:[%s313 + $0x40] sm:$0xff] %v4486
        %4519 = vst [vmem:[%s313 + $0x48] sm:$0xff] %v4487
        %4520 = vst [vmem:[%s313 + $0x50] sm:$0xff] %v4488
        %4521 = vst [vmem:[%s313 + $0x58] sm:$0xff] %v4489
        %4522 = vst [vmem:[%s313 + $0x60] sm:$0xff] %v4490
        %4523 = vst [vmem:[%s313 + $0x68] sm:$0xff] %v4491
        %4524 = vst [vmem:[%s313 + $0x70] sm:$0xff] %v4492
        %4525 = vst [vmem:[%s313 + $0x78] sm:$0xff] %v4493
        %4526 = vst [vmem:[%s313 + $0x80] sm:$0xff] %v4494
        %4527 = vst [vmem:[%s313 + $0x88] sm:$0xff] %v4495
        %4528 = vst [vmem:[%s313 + $0x90] sm:$0xff] %v4496
        %4529 = vst [vmem:[%s313 + $0x98] sm:$0xff] %v4497
        %4530 = vst [vmem:[%s313 + $0xa0] sm:$0xff] %v4498
        %4531 = vst [vmem:[%s313 + $0xa8] sm:$0xff] %v4499
        %4532 = vst [vmem:[%s313 + $0xb0] sm:$0xff] %v4500
        %4533 = vst [vmem:[%s313 + $0xb8] sm:$0xff] %v4501
        %4534 = vst [vmem:[%s313 + $0xc0] sm:$0xff] %v4502
        %4535 = vst [vmem:[%s313 + $0xc8] sm:$0xff] %v4503
        %4536 = vst [vmem:[%s313 + $0xd0] sm:$0xff] %v4504
        %4537 = vst [vmem:[%s313 + $0xd8] sm:$0xff] %v4505
        %4538 = vst [vmem:[%s313 + $0xe0] sm:$0xff] %v4506
        %4539 = vst [vmem:[%s313 + $0xe8] sm:$0xff] %v4507
        %4540 = vst [vmem:[%s313 + $0xf0] sm:$0xff] %v4508
        %4541 = vst [vmem:[%s313 + $0xf8] sm:$0xff] %v4509
        %s4542 = sand.u32 %s164, 1
        %s4543 = scalar_lea.sflag [#allocation6], %s4542
        %s4544 = sand.u32 %s164, 1
        %s4545 = smul.addr %s4544, 256
        %s4546 = scalar_lea.vmem [#allocation12], %s4545
        // Predicated region
        $region61: #{tpu_custom_call.1} parent=43 // pred_check
          %p4547 = pneg %p174
        $region62: #{tpu_custom_call.1} parent=43 // pred_check_branch
          %4549 = sbr.rel (%p4547) target = $region64
        $region63: #{tpu_custom_call.1} parent=43 // pred_region
          %s4551 = ssub.s32 4096, 4096
          %4552 = vsyncadd %s4543, %s4551
          %s4553 = smul.addr %s25, 32
          %s4554 = smul.addr %s4553, 128
          %s4555 = scalar_lea.hbm %s6, %s4554
          %s4556 = sshll.u32 %s4546, 4
          %s4557 = int_to_ptr.vmem [resolvable:$true] %s4556
          %4562 = dma.vmem_to_hbm [thread:$0]  %s4557, 4096, %s4555, %s4543, 128, 128, 8
        $region64: #{tpu_custom_call.1} parent=43 // pred_fallthru
          _
      $region44: #{tpu_custom_call.1} parent=5 // pred_fallthru
        _
      %p4563 = scmp.le.s32.totalorder 2, %s20
      // Predicated region
      $region65: #{tpu_custom_call.1} parent=5 // pred_check
        %p4564 = pneg %p4563
      $region66: #{tpu_custom_call.1} parent=5 // pred_check_branch
        %4566 = sbr.rel (%p4564) target = $region68
      $region67: #{tpu_custom_call.1} parent=5 // pred_region
        %s4567 = ssub.s32 %s20, 2
        // Predicated region
        $region69: #{tpu_custom_call.1} parent=67 // pred_check
          %p4568 = pneg %p180
        $region70: #{tpu_custom_call.1} parent=67 // pred_check_branch
          %4570 = sbr.rel (%p4568) target = $region72
        $region71: #{tpu_custom_call.1} parent=67 // pred_region
          %s4571 = sand.u32 %s165, 1
          %s4572 = scalar_lea.sflag [#allocation6], %s4571
          %s4573 = sand.u32 %s165, 1
          %s4574 = smul.addr %s4573, 256
          %s4575 = scalar_lea.vmem [#allocation12], %s4574
          %4576 = dma.done %s4572, 4096
        $region72: #{tpu_custom_call.1} parent=67 // pred_fallthru
          _
      $region68: #{tpu_custom_call.1} parent=5 // pred_fallthru
        _
    $region6: #{tpu_custom_call.1} parent=1 // loop_footer
      %s24 = sadd.s32 1, %s20
    $region7: #{tpu_custom_call.1} parent=1 // loop_footer_branch
      %19 = sbr.rel target = $region3
    $region8: #{tpu_custom_call.1} parent=1 // loop_exit
      _
    %4577 = vsyncpa [#allocation5], 1
    %s4578 = scalar_lea.sflag [#allocation5], 1
    %4579 = vsyncpa %s4578, 1
    %4580 = vsyncpa [#allocation8], 1
    %4581 = vsyncpa [#allocation11], 1
    %4582 = vsyncpa [#allocation6], 1
    %s4583 = scalar_lea.sflag [#allocation6], 1
    %4584 = vsyncpa %s4583, 1

</llo_original>
